<compile_context>
chip_gen: v7x
topology: tpu7x:2x2x1
jax: 0.10.0
libtpu: 0.0.40
codegen_flags: <defaults>
</compile_context>

<pallas_src>
import numpy as np
import jax
import jax.numpy as jnp
from jax import lax
from jax.experimental import pallas as pl
from jax.experimental.pallas import tpu as pltpu

# ----------------------- module-consistent config (scaled-down) -----------------------
BATCH        = 2
ENC_IN       = 4          # opt.enc_in
SEQ_LEN      = 16         # opt.input_size
D_MODEL      = 128        # opt.d_model (original hard-codes 512 / Linear(169,169); same structure)
HEADS        = 4
HEAD_DIM     = D_MODEL // HEADS
WINDOW       = [2, 2, 2]  # opt.window_size
D_BOTTLENECK = 32         # opt.d_bottleneck
PREDICT_STEP = 4          # opt.predict_step
N_MARK       = 4          # time-feature channels
NEG_SLOPE    = 0.2
PE           = PREDICT_STEP * ENC_IN

# multi-scale sizes (get_mask's all_size).
# TODO(synk): original get_mask uses input_size+1 for the finest scale; we use input_size so the
# CSCM output length and the hypergraph node count stay consistent.
ALL_SIZE = [SEQ_LEN]
for _w in WINDOW:
    ALL_SIZE.append(ALL_SIZE[-1] // _w)
N_SCALES = len(ALL_SIZE)                      # 4
N_NODES  = sum(ALL_SIZE)                      # 30
OFFSETS  = [int(v) for v in np.cumsum([0] + ALL_SIZE)]
L0       = ALL_SIZE[0]
NW       = len(WINDOW)


# ----------------------- host-side structural graph constants -----------------------
def _build_hypergraph(all_sizes, window_sizes):
    # TODO(synk): original get_mask builds intra+inter-scale hyperedges via a repo helper (not
    # provided); here every coarse-scale node defines one hyperedge over its window children plus
    # itself (same incidence-matrix family / shapes).
    src, edg = [], []
    eid = 0
    for j, w in enumerate(window_sizes):
        for pidx in range(all_sizes[j + 1]):
            members = [int(OFFSETS[j] + pidx * w + r) for r in range(w)]
            members.append(int(OFFSETS[j + 1] + pidx))
            for m in members:
                src.append(m)
                edg.append(eid)
            eid += 1
    return np.asarray(src, np.int32), np.asarray(edg, np.int32), eid


HG_SRC, HG_EDG, N_EDGES = _build_hypergraph(ALL_SIZE, WINDOW)   # E entries, Eu hyperedges
N_ENTRIES = int(HG_SRC.shape[0])


def _refer_points(all_sizes, window_sizes):
    input_size = all_sizes[0]
    indexes = np.zeros((input_size, len(all_sizes)), dtype=np.int32)
    for i in range(input_size):
        indexes[i, 0] = i
        former = i
        for j in range(1, len(all_sizes)):
            start = int(sum(all_sizes[:j]))
            inner = former - (start - all_sizes[j - 1])
            former = start + min(inner // window_sizes[j - 1], all_sizes[j] - 1)
            indexes[i, j] = former
    return indexes


# ----------------------- weight-slab layouts (static, module level) -----------------------
class _Slab:
    """Packs many small weight matrices into one (rows, width) f32 slab; every entry's start row
    is sublane(8)-aligned so all in-kernel static slices are aligned loads."""

    def __init__(self, width):
        self.width = width
        self.rows = 0
        self.slices = {}

    def add(self, name, nrows, ncols):
        assert ncols <= self.width
        start = -(-self.rows // 8) * 8
        self.slices[name] = (start, nrows, ncols)
        self.rows = start + nrows

    def pack(self, arrays):
        self.rows = -(-self.rows // 8) * 8
        buf = np.zeros((self.rows, self.width), np.float32)
        for name, arr in arrays.items():
            r0, nr, nc = self.slices[name]
            a = np.asarray(arr, np.float32).reshape(nr, nc)
            buf[r0:r0 + nr, :nc] = a
        return jnp.asarray(buf)


WIDE = _Slab(D_MODEL)                                     # 128-lane weights
WIDE.add("embed_w", 3 * ENC_IN + N_MARK, D_MODEL)         # [tok_w(prev); tok_w(cur); tok_w(next); time_w]
WIDE.add("pos_emb", SEQ_LEN, D_MODEL)
WIDE.add("up_w", D_BOTTLENECK, D_MODEL)
WIDE.add("up_b", 1, D_MODEL)
WIDE.add("ln_g", 1, D_MODEL)
WIDE.add("ln_b", 1, D_MODEL)
WIDE.add("tmp_w", D_MODEL, D_MODEL)                       # TMP.weight
WIDE.add("W_w", 1, D_MODEL)                               # TMP.W = Linear(1, d_model)
WIDE.add("W_b", 1, D_MODEL)
WIDE.add("att_i", 1, D_MODEL)                             # att[:, :, :hd] flattened head-major
WIDE.add("att_j", 1, D_MODEL)                             # att[:, :, hd:] flattened head-major
WIDE.add("head_expand", HEADS, D_MODEL)                   # (H, D) 0/1 head broadcast
WIDE.add("pred_w", N_SCALES * D_MODEL, D_MODEL)           # Predictor weight, zero-padded to 128 lanes

BOTT = _Slab(D_BOTTLENECK)                                # 32-lane weights
BOTT.add("down_w", D_MODEL, D_BOTTLENECK)
BOTT.add("down_b", 1, D_BOTTLENECK)
for _s, _wsz in enumerate(WINDOW):
    BOTT.add(f"conv{_s}_w", _wsz * D_BOTTLENECK, D_BOTTLENECK)
    BOTT.add(f"conv{_s}_b", 1, D_BOTTLENECK)
    BOTT.add(f"perm{_s}", ALL_SIZE[_s], ALL_SIZE[_s])     # window-tap row permutation

GRAPH = _Slab(D_MODEL)                                    # graph / structural constants (128-lane padded)
GRAPH.add("gsrc", N_ENTRIES, N_NODES)                     # one-hot of hyperedge_index[0]
GRAPH.add("gsrcT", N_NODES, N_ENTRIES)
GRAPH.add("gedge", N_ENTRIES, N_EDGES)                    # one-hot of hyperedge_index[1]
GRAPH.add("gedgeT", N_EDGES, N_ENTRIES)
GRAPH.add("hmat", N_EDGES, N_NODES)                       # incidence (Gedge^T @ Gsrc)
GRAPH.add("adj", N_EDGES, N_EDGES)
GRAPH.add("eye_eu", N_EDGES, N_EDGES)
GRAPH.add("head_pool", D_MODEL, HEADS)                    # (D, H) 0/1 per-head sum
GRAPH.add("binv", N_ENTRIES, 1)                           # 1/deg(edge) per entry
GRAPH.add("dinv", N_ENTRIES, 1)                           # 1/deg(node) per entry
GRAPH.add("cmat", N_SCALES, N_NODES)                      # refer_points gather folded with convtra last row
GRAPH.add("bias_row", 1, D_MODEL)                         # convtra bias (last step), broadcast
GRAPH.add("chan_tile", ENC_IN, D_MODEL)                   # channel -> output-lane tile matrix


# =============================== the single fused kernel ===============================
def _fused_kernel(x_ref, xm_ref, wide_ref, bott_ref, graph_ref, out_ref):
    f32 = jnp.float32

    def mm(a, b):
        return jnp.dot(a, b, preferred_element_type=f32)

    def _ld(ref, layout, name):
        r0, nr, nc = layout.slices[name]
        return ref[r0:r0 + nr, 0:nc]

    def W(name):
        return _ld(wide_ref, WIDE, name)

    def Bw(name):
        return _ld(bott_ref, BOTT, name)

    def G(name):
        return _ld(graph_ref, GRAPH, name)

    # ---------- RevIN: instance normalization over time ----------
    x = x_ref[...]                                            # (L0, ENC_IN)
    xm = xm_ref[...]                                          # (L0, N_MARK)
    mean = jnp.mean(x, axis=0, keepdims=True)                 # (1, C)
    xc = x - mean
    var = jnp.mean(xc * xc, axis=0, keepdims=True)            # unbiased=False
    std = jnp.sqrt(var + 1e-5)
    xn = xc / std

    # ---------- DataEmbedding: circular Conv1d(k=3) + time linear + positional, one matmul ----------
    x_prev = jnp.concatenate([xn[L0 - 1:L0, :], xn[0:L0 - 1, :]], axis=0)   # x[(t-1) mod L]
    x_next = jnp.concatenate([xn[1:L0, :], xn[0:1, :]], axis=0)             # x[(t+1) mod L]
    feat = jnp.concatenate([x_prev, xn, x_next, xm], axis=-1)               # (L0, 3C+M)
    emb = mm(feat, W("embed_w")) + W("pos_emb")                             # (L0, D); dropout = eval identity

    # ---------- CSCM Bottleneck_Construct ----------
    cur = mm(emb, Bw("down_w")) + Bw("down_b")                              # (L0, d_b)
    ys = []
    for s in range(NW):
        w = WINDOW[s]
        h = ALL_SIZE[s + 1]
        u = mm(Bw(f"perm{s}"), cur)                                         # rows grouped by tap: [tap0 | tap1]
        rearr = jnp.concatenate([u[r * h:(r + 1) * h, :] for r in range(w)], axis=-1)   # (h, w*d_b)
        y = mm(rearr, Bw(f"conv{s}_w")) + Bw(f"conv{s}_b")
        # TODO(synk): original ConvLayer also applies BatchNorm1d (eval-mode default stats ~ identity), omitted.
        y = jnp.where(y > 0.0, y, jnp.exp(jnp.minimum(y, 0.0)) - 1.0)       # ELU(alpha=1), overflow-safe
        ys.append(y)
        cur = y
    up = mm(jnp.concatenate(ys, axis=0), W("up_w")) + W("up_b")             # (N_NODES-L0, D)
    allinp = jnp.concatenate([emb, up], axis=0)                             # (N_NODES, D)

    # LayerNorm (row-wise, so stacking all scales is exact) + TMP input projection
    mu = jnp.mean(allinp, axis=-1, keepdims=True)
    vc = allinp - mu
    vr = jnp.mean(vc * vc, axis=-1, keepdims=True)
    ln = vc * lax.rsqrt(vr + 1e-5) * W("ln_g") + W("ln_b")
    xb = mm(ln, W("tmp_w"))                                                 # x @ TMP.weight  (N_NODES, D)

    # ---------- hypergraph attention message passing, dense incidence-matrix form ----------
    # TODO(synk): hyperedge attention (agg over heads/feats, softmax(agg*adj), diagonal weighting)
    # is the same simplified stand-in for the original MessagePassing attention as before.
    agg_col = jnp.sum(mm(G("hmat"), xb), axis=-1, keepdims=True)            # (Eu, 1)
    eye_eu = G("eye_eu")
    m_mat = mm(G("adj"), eye_eu * agg_col)                                  # M[eu,k] = adj[eu,k]*agg[k]
    m_max = jnp.max(m_mat, axis=-1, keepdims=True)
    m_exp = jnp.exp(m_mat - m_max)
    attw = m_exp / jnp.sum(m_exp, axis=-1, keepdims=True)                   # softmax(agg*adj, -1)
    diag_col = jnp.sum(attw * eye_eu, axis=-1, keepdims=True)               # diag(attw)
    attval = (diag_col * agg_col) * W("W_w") + W("W_b")                     # Linear(1, d_model); dropout1 = eval id

    x_i = mm(G("gsrc"), xb)                                                 # x[src]        (E, D)
    x_j = mm(G("gedge"), attval)                                            # attended[edg] (E, D)
    alpha = mm(x_i * W("att_i") + x_j * W("att_j"), G("head_pool"))         # per-head att logits (E, H)
    alpha = jnp.where(alpha > 0.0, alpha, NEG_SLOPE * alpha)                # leaky_relu
    # segment softmax grouped by src node; a global shift keeps it exact & stable
    a_max = jnp.max(jnp.max(alpha, axis=-1, keepdims=True), axis=0, keepdims=True)
    ex = jnp.exp(alpha - a_max)
    den = mm(G("gsrc"), mm(G("gsrcT"), ex)) + 1e-16                         # per-entry group sums
    alpha = ex / den
    alpha_full = mm(alpha, W("head_expand"))                                # broadcast per head -> (E, D)

    msg1 = alpha_full * G("binv") * x_i                                     # nodes -> hyperedges (norm 1/deg(edge))
    efeat = mm(G("gedgeT"), msg1)                                           # (Eu, D)
    msg2 = alpha_full * G("dinv") * mm(G("gedge"), efeat)                   # hyperedges -> nodes (norm 1/deg(node))
    nfeat = mm(G("gsrcT"), msg2)                                            # (N_NODES, D)

    # ---------- refer_points gather + convtra(last step) + Predictor + RevIN denorm ----------
    e = mm(G("cmat"), nfeat) + G("bias_row")                                # (S, D)
    pw0, _, _ = WIDE.slices["pred_w"]
    acc = None
    for s in range(N_SCALES):
        blk = wide_ref[pw0 + s * D_MODEL: pw0 + (s + 1) * D_MODEL, :]       # (D, 128) (logical PE lanes)
        t = mm(e[s:s + 1, :], blk)
        acc = t if acc is None else acc + t                                 # (1, 128), lane-dense
    std_t = mm(std, G("chan_tile"))                                         # std[k % ENC_IN] over 128 lanes
    mean_t = mm(mean, G("chan_tile"))
    out_ref[...] = acc * std_t + mean_t                                     # lanes >= PE are don't-care


# =============================== wrapper ===============================
def model_forward(p, x_enc, x_mark_enc, x_dec, x_mark_dec, pretrain=False):
    del x_dec, x_mark_dec, pretrain                                         # unused by the torch forward
    B = x_enc.shape[0]
    out = pl.pallas_call(
        _fused_kernel,
        out_shape=jax.ShapeDtypeStruct((B, 1, D_MODEL), jnp.float32),
        grid=(B,),
        in_specs=[
            pl.BlockSpec((None, SEQ_LEN, ENC_IN), lambda b: (b, 0, 0)),
            pl.BlockSpec((None, SEQ_LEN, N_MARK), lambda b: (b, 0, 0)),
            pl.BlockSpec(p["wide"].shape, lambda b: (0, 0)),
            pl.BlockSpec(p["bott"].shape, lambda b: (0, 0)),
            pl.BlockSpec(p["graph"].shape, lambda b: (0, 0)),
        ],
        out_specs=pl.BlockSpec((None, 1, D_MODEL), lambda b: (b, 0, 0)),
        compiler_params=pltpu.CompilerParams(dimension_semantics=("parallel",)),
    )(x_enc.astype(jnp.float32), x_mark_enc.astype(jnp.float32),
      p["wide"], p["bott"], p["graph"])
    return out[:, 0, :PE].reshape(B, PREDICT_STEP, ENC_IN)


# =============================== parameters ===============================
def _sinusoid_pos_emb(L, D):
    pos = np.arange(L)[:, None].astype(np.float64)
    div = np.exp(np.arange(0, D, 2).astype(np.float64) * -(np.log(10000.0) / D))
    pe = np.zeros((L, D), np.float32)
    pe[:, 0::2] = np.sin(pos * div)
    pe[:, 1::2] = np.cos(pos * div)
    return pe


def _glorot(key, shape):
    fan_in, fan_out = shape[0], shape[-1]
    lim = float(np.sqrt(6.0 / (fan_in + fan_out)))
    return np.asarray(jax.random.uniform(key, shape, jnp.float32, -lim, lim))


def init_params(key):
    ks = list(jax.random.split(key, 16))

    # ---- learned weights ----
    tok_w = _glorot(ks[0], (3 * ENC_IN, D_MODEL))
    time_w = _glorot(ks[1], (N_MARK, D_MODEL))
    embed_w = np.concatenate([tok_w, time_w], axis=0)                # applies to [x_prev | x | x_next | x_mark]
    down_w = _glorot(ks[2], (D_MODEL, D_BOTTLENECK))
    down_b = np.zeros((1, D_BOTTLENECK), np.float32)
    conv_w = [_glorot(ks[3 + s], (WINDOW[s] * D_BOTTLENECK, D_BOTTLENECK)) for s in range(NW)]
    conv_b = [np.zeros((1, D_BOTTLENECK), np.float32) for _ in range(NW)]
    up_w = _glorot(ks[6], (D_BOTTLENECK, D_MODEL))
    up_b = np.zeros((1, D_MODEL), np.float32)
    ln_g = np.ones((1, D_MODEL), np.float32)
    ln_b = np.zeros((1, D_MODEL), np.float32)
    tmp_w = _glorot(ks[7], (D_MODEL, D_MODEL))
    att = _glorot(ks[8], (1, HEADS, 2 * HEAD_DIM))
    W_w = _glorot(ks[9], (1, D_MODEL))
    W_b = np.zeros((1, D_MODEL), np.float32)
    convtra_w = _glorot(ks[10], (L0, L0))
    convtra_b = np.zeros((L0,), np.float32)
    pred_w = _glorot(ks[11], (N_SCALES * D_MODEL, PE))
    adj = 0.1 * np.asarray(jax.random.normal(ks[12], (N_EDGES, N_EDGES), jnp.float32))

    # ---- derived / structural constants ----
    pos_emb = _sinusoid_pos_emb(SEQ_LEN, D_MODEL)
    att_i = att[0, :, :HEAD_DIM].reshape(1, D_MODEL)
    att_j = att[0, :, HEAD_DIM:].reshape(1, D_MODEL)
    head_pool = np.zeros((D_MODEL, HEADS), np.float32)
    for h in range(HEADS):
        head_pool[h * HEAD_DIM:(h + 1) * HEAD_DIM, h] = 1.0
    head_expand = head_pool.T.copy()

    gsrc = np.zeros((N_ENTRIES, N_NODES), np.float32)
    gsrc[np.arange(N_ENTRIES), HG_SRC] = 1.0
    gedge = np.zeros((N_ENTRIES, N_EDGES), np.float32)
    gedge[np.arange(N_ENTRIES), HG_EDG] = 1.0
    hmat = gedge.T @ gsrc
    eye_eu = np.eye(N_EDGES, dtype=np.float32)

    cnt_edge = np.bincount(HG_EDG, minlength=N_EDGES).astype(np.float32)
    cnt_node = np.bincount(HG_SRC, minlength=N_NODES).astype(np.float32)
    binv = np.where(cnt_edge[HG_EDG] > 0, 1.0 / np.maximum(cnt_edge[HG_EDG], 1.0), 0.0).reshape(-1, 1)
    dinv = np.where(cnt_node[HG_SRC] > 0, 1.0 / np.maximum(cnt_node[HG_SRC], 1.0), 0.0).reshape(-1, 1)

    idx = _refer_points(ALL_SIZE, WINDOW)                            # (L0, N_SCALES)
    w_last = convtra_w[:, L0 - 1]                                    # convtra row consumed by [:, -1, :]
    cmat = np.zeros((N_SCALES, N_NODES), np.float32)
    for i in range(L0):
        for s in range(N_SCALES):
            cmat[s, idx[i, s]] += w_last[i]
    bias_row = np.full((1, D_MODEL), convtra_b[L0 - 1], np.float32)

    chan_tile = np.zeros((ENC_IN, D_MODEL), np.float32)
    for k in range(D_MODEL):
        chan_tile[k % ENC_IN, k] = 1.0

    perms = []
    for s, w in enumerate(WINDOW):
        Lc = ALL_SIZE[s]
        h = ALL_SIZE[s + 1]
        P = np.zeros((Lc, Lc), np.float32)
        for r in range(w):
            for j in range(h):
                P[r * h + j, w * j + r] = 1.0
        perms.append(P)

    pred_w_pad = np.zeros((N_SCALES * D_MODEL, D_MODEL), np.float32)
    pred_w_pad[:, :PE] = pred_w

    # ---- pack slabs ----
    wide = WIDE.pack({
        "embed_w": embed_w, "pos_emb": pos_emb, "up_w": up_w, "up_b": up_b,
        "ln_g": ln_g, "ln_b": ln_b, "tmp_w": tmp_w, "W_w": W_w, "W_b": W_b,
        "att_i": att_i, "att_j": att_j, "head_expand": head_expand,
        "pred_w": pred_w_pad,
    })
    bott_entries = {"down_w": down_w, "down_b": down_b}
    for s in range(NW):
        bott_entries[f"conv{s}_w"] = conv_w[s]
        bott_entries[f"conv{s}_b"] = conv_b[s]
        bott_entries[f"perm{s}"] = perms[s]
    bott = BOTT.pack(bott_entries)
    graph = GRAPH.pack({
        "gsrc": gsrc, "gsrcT": gsrc.T, "gedge": gedge, "gedgeT": gedge.T,
        "hmat": hmat, "adj": adj, "eye_eu": eye_eu, "head_pool": head_pool,
        "binv": binv, "dinv": dinv, "cmat": cmat, "bias_row": bias_row,
        "chan_tile": chan_tile,
    })
    return {"wide": wide, "bott": bott, "graph": graph}


# =============================== main ===============================
if __name__ == "__main__":
    key = jax.random.PRNGKey(0)
    pkey, k1, k2 = jax.random.split(key, 3)
    params = init_params(pkey)

    x_enc = jax.random.normal(k1, (BATCH, SEQ_LEN, ENC_IN), jnp.float32)
    x_mark_enc = jax.random.normal(k2, (BATCH, SEQ_LEN, N_MARK), jnp.float32)
    x_dec = jnp.zeros((BATCH, PREDICT_STEP, ENC_IN), jnp.float32)        # unused by forward
    x_mark_dec = jnp.zeros((BATCH, PREDICT_STEP, N_MARK), jnp.float32)   # unused by forward

    fwd = jax.jit(model_forward)
    pred = fwd(params, x_enc, x_mark_enc, x_dec, x_mark_dec)
    pred = jax.block_until_ready(pred)

    assert pred.shape == (BATCH, PREDICT_STEP, ENC_IN), pred.shape
    assert bool(jnp.all(jnp.isfinite(pred)))
    print("KERNEL_OK")
</pallas_src>

<mosaic_0001>
module attributes {stable_mosaic.version = 11 : i64} {
  func.func @_fused_kernel(%arg0: i32, %arg1: memref<1x16x4xf32, #tpu.memory_space<vmem>>, %arg2: memref<1x16x4xf32, #tpu.memory_space<vmem>>, %arg3: memref<768x128xf32, #tpu.memory_space<vmem>>, %arg4: memref<384x32xf32, #tpu.memory_space<vmem>>, %arg5: memref<440x128xf32, #tpu.memory_space<vmem>>, %arg6: memref<1x1x128xf32, #tpu.memory_space<vmem>>) attributes {dimension_semantics = [#tpu.dimension_semantics<parallel>], iteration_bounds = array<i64: 2>, scalar_prefetch = 0 : i64, scratch_operands = 0 : i64, tpu.core_type = #tpu.core_type<tc>, window_params = [{transform_indices = @transform_0, window_bounds = array<i64: 1, 16, 4>}, {transform_indices = @transform_1, window_bounds = array<i64: 1, 16, 4>}, {pipeline_mode = #tpu.pipeline_mode<synchronous>, transform_indices = @transform_2, window_bounds = array<i64: 768, 128>}, {pipeline_mode = #tpu.pipeline_mode<synchronous>, transform_indices = @transform_3, window_bounds = array<i64: 384, 32>}, {pipeline_mode = #tpu.pipeline_mode<synchronous>, transform_indices = @transform_4, window_bounds = array<i64: 440, 128>}, {transform_indices = @transform_5, window_bounds = array<i64: 1, 1, 128>}]} {
    %c0 = arith.constant 0 : index
    %c0_0 = arith.constant 0 : index
    %c0_1 = arith.constant 0 : index
    %0 = vector.load %arg1[%c0, %c0_0, %c0_1] : memref<1x16x4xf32, #tpu.memory_space<vmem>>, vector<1x16x4xf32>
    %1 = vector.shape_cast %0 : vector<1x16x4xf32> to vector<16x4xf32>
    %c0_2 = arith.constant 0 : index
    %c0_3 = arith.constant 0 : index
    %c0_4 = arith.constant 0 : index
    %2 = vector.load %arg2[%c0_2, %c0_3, %c0_4] : memref<1x16x4xf32, #tpu.memory_space<vmem>>, vector<1x16x4xf32>
    %3 = vector.shape_cast %2 : vector<1x16x4xf32> to vector<16x4xf32>
    %cst = arith.constant dense<0.000000e+00> : vector<4xf32>
    %4 = vector.multi_reduction <add>, %1, %cst [0] : vector<16x4xf32> to vector<4xf32>
    %5 = vector.shape_cast %4 : vector<4xf32> to vector<1x4xf32>
    %cst_5 = arith.constant 1.600000e+01 : f32
    %6 = vector.broadcast %cst_5 : f32 to vector<1x4xf32>
    %7 = arith.divf %5, %6 : vector<1x4xf32>
    %8 = vector.broadcast %7 : vector<1x4xf32> to vector<16x4xf32>
    %9 = arith.subf %1, %8 : vector<16x4xf32>
    %10 = arith.mulf %9, %9 : vector<16x4xf32>
    %cst_6 = arith.constant dense<0.000000e+00> : vector<4xf32>
    %11 = vector.multi_reduction <add>, %10, %cst_6 [0] : vector<16x4xf32> to vector<4xf32>
    %12 = vector.shape_cast %11 : vector<4xf32> to vector<1x4xf32>
    %cst_7 = arith.constant 1.600000e+01 : f32
    %13 = vector.broadcast %cst_7 : f32 to vector<1x4xf32>
    %14 = arith.divf %12, %13 : vector<1x4xf32>
    %cst_8 = arith.constant 9.99999974E-6 : f32
    %15 = vector.broadcast %cst_8 : f32 to vector<1x4xf32>
    %16 = arith.addf %14, %15 : vector<1x4xf32>
    %17 = math.sqrt %16 : vector<1x4xf32>
    %18 = vector.broadcast %17 : vector<1x4xf32> to vector<16x4xf32>
    %19 = arith.divf %9, %18 : vector<16x4xf32>
    %20 = vector.extract_strided_slice %19 {offsets = [15, 0], sizes = [1, 4], strides = [1, 1]} : vector<16x4xf32> to vector<1x4xf32>
    %21 = vector.extract_strided_slice %19 {offsets = [0, 0], sizes = [15, 4], strides = [1, 1]} : vector<16x4xf32> to vector<15x4xf32>
    %22 = tpu.concatenate %20, %21 in 0 : vector<1x4xf32>, vector<15x4xf32> -> vector<16x4xf32>
    %23 = vector.extract_strided_slice %19 {offsets = [1, 0], sizes = [15, 4], strides = [1, 1]} : vector<16x4xf32> to vector<15x4xf32>
    %24 = vector.extract_strided_slice %19 {offsets = [0, 0], sizes = [1, 4], strides = [1, 1]} : vector<16x4xf32> to vector<1x4xf32>
    %25 = tpu.concatenate %23, %24 in 0 : vector<15x4xf32>, vector<1x4xf32> -> vector<16x4xf32>
    %26 = tpu.concatenate %22, %19, %25, %3 in 1 : vector<16x4xf32>, vector<16x4xf32>, vector<16x4xf32>, vector<16x4xf32> -> vector<16x16xf32>
    %c0_9 = arith.constant 0 : index
    %c0_10 = arith.constant 0 : index
    %27 = vector.load %arg3[%c0_9, %c0_10] : memref<768x128xf32, #tpu.memory_space<vmem>>, vector<16x128xf32>
    %cst_11 = arith.constant dense<0.000000e+00> : vector<16x128xf32>
    %28 = tpu.matmul %26, %27, %cst_11 {dimension_numbers = #tpu.dot_dimension_numbers<[1], [0], [0], [1], [0, 0, 1, 1], [], []>} : vector<16x16xf32>, vector<16x128xf32>, vector<16x128xf32> -> vector<16x128xf32>
    %c16 = arith.constant 16 : index
    %c0_12 = arith.constant 0 : index
    %29 = vector.load %arg3[%c16, %c0_12] : memref<768x128xf32, #tpu.memory_space<vmem>>, vector<16x128xf32>
    %30 = arith.addf %28, %29 : vector<16x128xf32>
    %c0_13 = arith.constant 0 : index
    %c0_14 = arith.constant 0 : index
    %31 = vector.load %arg4[%c0_13, %c0_14] : memref<384x32xf32, #tpu.memory_space<vmem>>, vector<128x32xf32>
    %cst_15 = arith.constant dense<0.000000e+00> : vector<16x32xf32>
    %32 = tpu.matmul %30, %31, %cst_15 {dimension_numbers = #tpu.dot_dimension_numbers<[1], [0], [0], [1], [0, 0, 1, 1], [], []>} : vector<16x128xf32>, vector<128x32xf32>, vector<16x32xf32> -> vector<16x32xf32>
    %c128 = arith.constant 128 : index
    %c0_16 = arith.constant 0 : index
    %33 = vector.load %arg4[%c128, %c0_16] : memref<384x32xf32, #tpu.memory_space<vmem>>, vector<1x32xf32>
    %34 = vector.broadcast %33 : vector<1x32xf32> to vector<16x32xf32>
    %35 = arith.addf %32, %34 : vector<16x32xf32>
    %c208 = arith.constant 208 : index
    %c0_17 = arith.constant 0 : index
    %36 = vector.load %arg4[%c208, %c0_17] : memref<384x32xf32, #tpu.memory_space<vmem>>, vector<16x16xf32>
    %cst_18 = arith.constant dense<0.000000e+00> : vector<16x32xf32>
    %37 = tpu.matmul %36, %35, %cst_18 {dimension_numbers = #tpu.dot_dimension_numbers<[1], [0], [0], [1], [0, 0, 1, 1], [], []>} : vector<16x16xf32>, vector<16x32xf32>, vector<16x32xf32> -> vector<16x32xf32>
    %38 = vector.extract_strided_slice %37 {offsets = [0, 0], sizes = [8, 32], strides = [1, 1]} : vector<16x32xf32> to vector<8x32xf32>
    %39 = vector.extract_strided_slice %37 {offsets = [8, 0], sizes = [8, 32], strides = [1, 1]} : vector<16x32xf32> to vector<8x32xf32>
    %40 = tpu.concatenate %38, %39 in 1 : vector<8x32xf32>, vector<8x32xf32> -> vector<8x64xf32>
    %c136 = arith.constant 136 : index
    %c0_19 = arith.constant 0 : index
    %41 = vector.load %arg4[%c136, %c0_19] : memref<384x32xf32, #tpu.memory_space<vmem>>, vector<64x32xf32>
    %cst_20 = arith.constant dense<0.000000e+00> : vector<8x32xf32>
    %42 = tpu.matmul %40, %41, %cst_20 {dimension_numbers = #tpu.dot_dimension_numbers<[1], [0], [0], [1], [0, 0, 1, 1], [], []>} : vector<8x64xf32>, vector<64x32xf32>, vector<8x32xf32> -> vector<8x32xf32>
    %c200 = arith.constant 200 : index
    %c0_21 = arith.constant 0 : index
    %43 = vector.load %arg4[%c200, %c0_21] : memref<384x32xf32, #tpu.memory_space<vmem>>, vector<1x32xf32>
    %44 = vector.broadcast %43 : vector<1x32xf32> to vector<8x32xf32>
    %45 = arith.addf %42, %44 : vector<8x32xf32>
    %cst_22 = arith.constant 0.000000e+00 : f32
    %46 = vector.broadcast %cst_22 : f32 to vector<8x32xf32>
    %47 = arith.cmpf ogt, %45, %46 : vector<8x32xf32>
    %cst_23 = arith.constant 0.000000e+00 : f32
    %48 = vector.broadcast %cst_23 : f32 to vector<8x32xf32>
    %49 = arith.minimumf %45, %48 : vector<8x32xf32>
    %50 = math.exp %49 : vector<8x32xf32>
    %cst_24 = arith.constant 1.000000e+00 : f32
    %51 = vector.broadcast %cst_24 : f32 to vector<8x32xf32>
    %52 = arith.subf %50, %51 : vector<8x32xf32>
    %53 = arith.select %47, %45, %52 : vector<8x32xi1>, vector<8x32xf32>
    %c296 = arith.constant 296 : index
    %c0_25 = arith.constant 0 : index
    %54 = vector.load %arg4[%c296, %c0_25] : memref<384x32xf32, #tpu.memory_space<vmem>>, vector<8x8xf32>
    %cst_26 = arith.constant dense<0.000000e+00> : vector<8x32xf32>
    %55 = tpu.matmul %54, %53, %cst_26 {dimension_numbers = #tpu.dot_dimension_numbers<[1], [0], [0], [1], [0, 0, 1, 1], [], []>} : vector<8x8xf32>, vector<8x32xf32>, vector<8x32xf32> -> vector<8x32xf32>
    %56 = vector.extract_strided_slice %55 {offsets = [0, 0], sizes = [4, 32], strides = [1, 1]} : vector<8x32xf32> to vector<4x32xf32>
    %57 = vector.extract_strided_slice %55 {offsets = [4, 0], sizes = [4, 32], strides = [1, 1]} : vector<8x32xf32> to vector<4x32xf32>
    %58 = tpu.concatenate %56, %57 in 1 : vector<4x32xf32>, vector<4x32xf32> -> vector<4x64xf32>
    %c224 = arith.constant 224 : index
    %c0_27 = arith.constant 0 : index
    %59 = vector.load %arg4[%c224, %c0_27] : memref<384x32xf32, #tpu.memory_space<vmem>>, vector<64x32xf32>
    %cst_28 = arith.constant dense<0.000000e+00> : vector<4x32xf32>
    %60 = tpu.matmul %58, %59, %cst_28 {dimension_numbers = #tpu.dot_dimension_numbers<[1], [0], [0], [1], [0, 0, 1, 1], [], []>} : vector<4x64xf32>, vector<64x32xf32>, vector<4x32xf32> -> vector<4x32xf32>
    %c288 = arith.constant 288 : index
    %c0_29 = arith.constant 0 : index
    %61 = vector.load %arg4[%c288, %c0_29] : memref<384x32xf32, #tpu.memory_space<vmem>>, vector<1x32xf32>
    %62 = vector.broadcast %61 : vector<1x32xf32> to vector<4x32xf32>
    %63 = arith.addf %60, %62 : vector<4x32xf32>
    %cst_30 = arith.constant 0.000000e+00 : f32
    %64 = vector.broadcast %cst_30 : f32 to vector<4x32xf32>
    %65 = arith.cmpf ogt, %63, %64 : vector<4x32xf32>
    %cst_31 = arith.constant 0.000000e+00 : f32
    %66 = vector.broadcast %cst_31 : f32 to vector<4x32xf32>
    %67 = arith.minimumf %63, %66 : vector<4x32xf32>
    %68 = math.exp %67 : vector<4x32xf32>
    %cst_32 = arith.constant 1.000000e+00 : f32
    %69 = vector.broadcast %cst_32 : f32 to vector<4x32xf32>
    %70 = arith.subf %68, %69 : vector<4x32xf32>
    %71 = arith.select %65, %63, %70 : vector<4x32xi1>, vector<4x32xf32>
    %c376 = arith.constant 376 : index
    %c0_33 = arith.constant 0 : index
    %72 = vector.load %arg4[%c376, %c0_33] : memref<384x32xf32, #tpu.memory_space<vmem>>, vector<4x4xf32>
    %cst_34 = arith.constant dense<0.000000e+00> : vector<4x32xf32>
    %73 = tpu.matmul %72, %71, %cst_34 {dimension_numbers = #tpu.dot_dimension_numbers<[1], [0], [0], [1], [0, 0, 1, 1], [], []>} : vector<4x4xf32>, vector<4x32xf32>, vector<4x32xf32> -> vector<4x32xf32>
    %74 = vector.extract_strided_slice %73 {offsets = [0, 0], sizes = [2, 32], strides = [1, 1]} : vector<4x32xf32> to vector<2x32xf32>
    %75 = vector.extract_strided_slice %73 {offsets = [2, 0], sizes = [2, 32], strides = [1, 1]} : vector<4x32xf32> to vector<2x32xf32>
    %76 = tpu.concatenate %74, %75 in 1 : vector<2x32xf32>, vector<2x32xf32> -> vector<2x64xf32>
    %c304 = arith.constant 304 : index
    %c0_35 = arith.constant 0 : index
    %77 = vector.load %arg4[%c304, %c0_35] : memref<384x32xf32, #tpu.memory_space<vmem>>, vector<64x32xf32>
    %cst_36 = arith.constant dense<0.000000e+00> : vector<2x32xf32>
    %78 = tpu.matmul %76, %77, %cst_36 {dimension_numbers = #tpu.dot_dimension_numbers<[1], [0], [0], [1], [0, 0, 1, 1], [], []>} : vector<2x64xf32>, vector<64x32xf32>, vector<2x32xf32> -> vector<2x32xf32>
    %c368 = arith.constant 368 : index
    %c0_37 = arith.constant 0 : index
    %79 = vector.load %arg4[%c368, %c0_37] : memref<384x32xf32, #tpu.memory_space<vmem>>, vector<1x32xf32>
    %80 = vector.broadcast %79 : vector<1x32xf32> to vector<2x32xf32>
    %81 = arith.addf %78, %80 : vector<2x32xf32>
    %cst_38 = arith.constant 0.000000e+00 : f32
    %82 = vector.broadcast %cst_38 : f32 to vector<2x32xf32>
    %83 = arith.cmpf ogt, %81, %82 : vector<2x32xf32>
    %cst_39 = arith.constant 0.000000e+00 : f32
    %84 = vector.broadcast %cst_39 : f32 to vector<2x32xf32>
    %85 = arith.minimumf %81, %84 : vector<2x32xf32>
    %86 = math.exp %85 : vector<2x32xf32>
    %cst_40 = arith.constant 1.000000e+00 : f32
    %87 = vector.broadcast %cst_40 : f32 to vector<2x32xf32>
    %88 = arith.subf %86, %87 : vector<2x32xf32>
    %89 = arith.select %83, %81, %88 : vector<2x32xi1>, vector<2x32xf32>
    %90 = tpu.concatenate %53, %71, %89 in 0 : vector<8x32xf32>, vector<4x32xf32>, vector<2x32xf32> -> vector<14x32xf32>
    %c32 = arith.constant 32 : index
    %c0_41 = arith.constant 0 : index
    %91 = vector.load %arg3[%c32, %c0_41] : memref<768x128xf32, #tpu.memory_space<vmem>>, vector<32x128xf32>
    %cst_42 = arith.constant dense<0.000000e+00> : vector<14x128xf32>
    %92 = tpu.matmul %90, %91, %cst_42 {dimension_numbers = #tpu.dot_dimension_numbers<[1], [0], [0], [1], [0, 0, 1, 1], [], []>} : vector<14x32xf32>, vector<32x128xf32>, vector<14x128xf32> -> vector<14x128xf32>
    %c64 = arith.constant 64 : index
    %c0_43 = arith.constant 0 : index
    %93 = vector.load %arg3[%c64, %c0_43] : memref<768x128xf32, #tpu.memory_space<vmem>>, vector<1x128xf32>
    %94 = vector.broadcast %93 : vector<1x128xf32> to vector<14x128xf32>
    %95 = arith.addf %92, %94 : vector<14x128xf32>
    %96 = tpu.concatenate %30, %95 in 0 : vector<16x128xf32>, vector<14x128xf32> -> vector<30x128xf32>
    %cst_44 = arith.constant dense<0.000000e+00> : vector<30xf32>
    %97 = vector.multi_reduction <add>, %96, %cst_44 [1] : vector<30x128xf32> to vector<30xf32>
    %98 = vector.shape_cast %97 : vector<30xf32> to vector<30x1xf32>
    %cst_45 = arith.constant 1.280000e+02 : f32
    %99 = vector.broadcast %cst_45 : f32 to vector<30x1xf32>
    %100 = arith.divf %98, %99 : vector<30x1xf32>
    %101 = vector.broadcast %100 : vector<30x1xf32> to vector<30x128xf32>
    %102 = arith.subf %96, %101 : vector<30x128xf32>
    %103 = arith.mulf %102, %102 : vector<30x128xf32>
    %cst_46 = arith.constant dense<0.000000e+00> : vector<30xf32>
    %104 = vector.multi_reduction <add>, %103, %cst_46 [1] : vector<30x128xf32> to vector<30xf32>
    %105 = vector.shape_cast %104 : vector<30xf32> to vector<30x1xf32>
    %cst_47 = arith.constant 1.280000e+02 : f32
    %106 = vector.broadcast %cst_47 : f32 to vector<30x1xf32>
    %107 = arith.divf %105, %106 : vector<30x1xf32>
    %cst_48 = arith.constant 9.99999974E-6 : f32
    %108 = vector.broadcast %cst_48 : f32 to vector<30x1xf32>
    %109 = arith.addf %107, %108 : vector<30x1xf32>
    %110 = math.rsqrt %109 : vector<30x1xf32>
    %111 = vector.broadcast %110 : vector<30x1xf32> to vector<30x128xf32>
    %112 = arith.mulf %102, %111 : vector<30x128xf32>
    %c72 = arith.constant 72 : index
    %c0_49 = arith.constant 0 : index
    %113 = vector.load %arg3[%c72, %c0_49] : memref<768x128xf32, #tpu.memory_space<vmem>>, vector<1x128xf32>
    %114 = vector.broadcast %113 : vector<1x128xf32> to vector<30x128xf32>
    %115 = arith.mulf %112, %114 : vector<30x128xf32>
    %c80 = arith.constant 80 : index
    %c0_50 = arith.constant 0 : index
    %116 = vector.load %arg3[%c80, %c0_50] : memref<768x128xf32, #tpu.memory_space<vmem>>, vector<1x128xf32>
    %117 = vector.broadcast %116 : vector<1x128xf32> to vector<30x128xf32>
    %118 = arith.addf %115, %117 : vector<30x128xf32>
    %c88 = arith.constant 88 : index
    %c0_51 = arith.constant 0 : index
    %119 = vector.load %arg3[%c88, %c0_51] : memref<768x128xf32, #tpu.memory_space<vmem>>, vector<128x128xf32>
    %cst_52 = arith.constant dense<0.000000e+00> : vector<30x128xf32>
    %120 = tpu.matmul %118, %119, %cst_52 {dimension_numbers = #tpu.dot_dimension_numbers<[1], [0], [0], [1], [0, 0, 1, 1], [], []>} : vector<30x128xf32>, vector<128x128xf32>, vector<30x128xf32> -> vector<30x128xf32>
    %c144 = arith.constant 144 : index
    %c0_53 = arith.constant 0 : index
    %121 = vector.load %arg5[%c144, %c0_53] : memref<440x128xf32, #tpu.memory_space<vmem>>, vector<14x30xf32>
    %cst_54 = arith.constant dense<0.000000e+00> : vector<14x128xf32>
    %122 = tpu.matmul %121, %120, %cst_54 {dimension_numbers = #tpu.dot_dimension_numbers<[1], [0], [0], [1], [0, 0, 1, 1], [], []>} : vector<14x30xf32>, vector<30x128xf32>, vector<14x128xf32> -> vector<14x128xf32>
    %cst_55 = arith.constant dense<0.000000e+00> : vector<14xf32>
    %123 = vector.multi_reduction <add>, %122, %cst_55 [1] : vector<14x128xf32> to vector<14xf32>
    %124 = vector.shape_cast %123 : vector<14xf32> to vector<14x1xf32>
    %c176 = arith.constant 176 : index
    %c0_56 = arith.constant 0 : index
    %125 = vector.load %arg5[%c176, %c0_56] : memref<440x128xf32, #tpu.memory_space<vmem>>, vector<14x14xf32>
    %c160 = arith.constant 160 : index
    %c0_57 = arith.constant 0 : index
    %126 = vector.load %arg5[%c160, %c0_57] : memref<440x128xf32, #tpu.memory_space<vmem>>, vector<14x14xf32>
    %127 = vector.broadcast %124 : vector<14x1xf32> to vector<14x14xf32>
    %128 = arith.mulf %125, %127 : vector<14x14xf32>
    %cst_58 = arith.constant dense<0.000000e+00> : vector<14x14xf32>
    %129 = tpu.matmul %126, %128, %cst_58 {dimension_numbers = #tpu.dot_dimension_numbers<[1], [0], [0], [1], [0, 0, 1, 1], [], []>} : vector<14x14xf32>, vector<14x14xf32>, vector<14x14xf32> -> vector<14x14xf32>
    %cst_59 = arith.constant dense<0xFF800000> : vector<14xf32>
    %130 = vector.multi_reduction <maximumf>, %129, %cst_59 [1] : vector<14x14xf32> to vector<14xf32>
    %131 = vector.shape_cast %130 : vector<14xf32> to vector<14x1xf32>
    %132 = vector.broadcast %131 : vector<14x1xf32> to vector<14x14xf32>
    %133 = arith.subf %129, %132 : vector<14x14xf32>
    %134 = math.exp %133 : vector<14x14xf32>
    %cst_60 = arith.constant dense<0.000000e+00> : vector<14xf32>
    %135 = vector.multi_reduction <add>, %134, %cst_60 [1] : vector<14x14xf32> to vector<14xf32>
    %136 = vector.shape_cast %135 : vector<14xf32> to vector<14x1xf32>
    %137 = vector.broadcast %136 : vector<14x1xf32> to vector<14x14xf32>
    %138 = arith.divf %134, %137 : vector<14x14xf32>
    %139 = arith.mulf %138, %125 : vector<14x14xf32>
    %cst_61 = arith.constant dense<0.000000e+00> : vector<14xf32>
    %140 = vector.multi_reduction <add>, %139, %cst_61 [1] : vector<14x14xf32> to vector<14xf32>
    %141 = vector.shape_cast %140 : vector<14xf32> to vector<14x1xf32>
    %142 = arith.mulf %141, %124 : vector<14x1xf32>
    %c216 = arith.constant 216 : index
    %c0_62 = arith.constant 0 : index
    %143 = vector.load %arg3[%c216, %c0_62] : memref<768x128xf32, #tpu.memory_space<vmem>>, vector<1x128xf32>
    %144 = vector.broadcast %142 : vector<14x1xf32> to vector<14x128xf32>
    %145 = vector.broadcast %143 : vector<1x128xf32> to vector<14x128xf32>
    %146 = arith.mulf %144, %145 : vector<14x128xf32>
    %c224_63 = arith.constant 224 : index
    %c0_64 = arith.constant 0 : index
    %147 = vector.load %arg3[%c224_63, %c0_64] : memref<768x128xf32, #tpu.memory_space<vmem>>, vector<1x128xf32>
    %148 = vector.broadcast %147 : vector<1x128xf32> to vector<14x128xf32>
    %149 = arith.addf %146, %148 : vector<14x128xf32>
    %c0_65 = arith.constant 0 : index
    %c0_66 = arith.constant 0 : index
    %150 = vector.load %arg5[%c0_65, %c0_66] : memref<440x128xf32, #tpu.memory_space<vmem>>, vector<42x30xf32>
    %cst_67 = arith.constant dense<0.000000e+00> : vector<42x128xf32>
    %151 = tpu.matmul %150, %120, %cst_67 {dimension_numbers = #tpu.dot_dimension_numbers<[1], [0], [0], [1], [0, 0, 1, 1], [], []>} : vector<42x30xf32>, vector<30x128xf32>, vector<42x128xf32> -> vector<42x128xf32>
    %c80_68 = arith.constant 80 : index
    %c0_69 = arith.constant 0 : index
    %152 = vector.load %arg5[%c80_68, %c0_69] : memref<440x128xf32, #tpu.memory_space<vmem>>, vector<42x14xf32>
    %cst_70 = arith.constant dense<0.000000e+00> : vector<42x128xf32>
    %153 = tpu.matmul %152, %149, %cst_70 {dimension_numbers = #tpu.dot_dimension_numbers<[1], [0], [0], [1], [0, 0, 1, 1], [], []>} : vector<42x14xf32>, vector<14x128xf32>, vector<42x128xf32> -> vector<42x128xf32>
    %c232 = arith.constant 232 : index
    %c0_71 = arith.constant 0 : index
    %154 = vector.load %arg3[%c232, %c0_71] : memref<768x128xf32, #tpu.memory_space<vmem>>, vector<1x128xf32>
    %155 = vector.broadcast %154 : vector<1x128xf32> to vector<42x128xf32>
    %156 = arith.mulf %151, %155 : vector<42x128xf32>
    %c240 = arith.constant 240 : index
    %c0_72 = arith.constant 0 : index
    %157 = vector.load %arg3[%c240, %c0_72] : memref<768x128xf32, #tpu.memory_space<vmem>>, vector<1x128xf32>
    %158 = vector.broadcast %157 : vector<1x128xf32> to vector<42x128xf32>
    %159 = arith.mulf %153, %158 : vector<42x128xf32>
    %160 = arith.addf %156, %159 : vector<42x128xf32>
    %c192 = arith.constant 192 : index
    %c0_73 = arith.constant 0 : index
    %161 = vector.load %arg5[%c192, %c0_73] : memref<440x128xf32, #tpu.memory_space<vmem>>, vector<128x4xf32>
    %cst_74 = arith.constant dense<0.000000e+00> : vector<42x4xf32>
    %162 = tpu.matmul %160, %161, %cst_74 {dimension_numbers = #tpu.dot_dimension_numbers<[1], [0], [0], [1], [0, 0, 1, 1], [], []>} : vector<42x128xf32>, vector<128x4xf32>, vector<42x4xf32> -> vector<42x4xf32>
    %cst_75 = arith.constant 0.000000e+00 : f32
    %163 = vector.broadcast %cst_75 : f32 to vector<42x4xf32>
    %164 = arith.cmpf ogt, %162, %163 : vector<42x4xf32>
    %cst_76 = arith.constant 2.000000e-01 : f32
    %165 = vector.broadcast %cst_76 : f32 to vector<42x4xf32>
    %166 = arith.mulf %165, %162 : vector<42x4xf32>
    %167 = arith.select %164, %162, %166 : vector<42x4xi1>, vector<42x4xf32>
    %cst_77 = arith.constant dense<0xFF800000> : vector<42xf32>
    %168 = vector.multi_reduction <maximumf>, %167, %cst_77 [1] : vector<42x4xf32> to vector<42xf32>
    %169 = vector.shape_cast %168 : vector<42xf32> to vector<42x1xf32>
    %cst_78 = arith.constant dense<0xFF800000> : vector<1xf32>
    %170 = vector.multi_reduction <maximumf>, %169, %cst_78 [0] : vector<42x1xf32> to vector<1xf32>
    %171 = vector.shape_cast %170 : vector<1xf32> to vector<1x1xf32>
    %172 = vector.broadcast %171 : vector<1x1xf32> to vector<42x4xf32>
    %173 = arith.subf %167, %172 : vector<42x4xf32>
    %174 = math.exp %173 : vector<42x4xf32>
    %c0_79 = arith.constant 0 : index
    %c0_80 = arith.constant 0 : index
    %175 = vector.load %arg5[%c0_79, %c0_80] : memref<440x128xf32, #tpu.memory_space<vmem>>, vector<42x30xf32>
    %c48 = arith.constant 48 : index
    %c0_81 = arith.constant 0 : index
    %176 = vector.load %arg5[%c48, %c0_81] : memref<440x128xf32, #tpu.memory_space<vmem>>, vector<30x42xf32>
    %cst_82 = arith.constant dense<0.000000e+00> : vector<30x4xf32>
    %177 = tpu.matmul %176, %174, %cst_82 {dimension_numbers = #tpu.dot_dimension_numbers<[1], [0], [0], [1], [0, 0, 1, 1], [], []>} : vector<30x42xf32>, vector<42x4xf32>, vector<30x4xf32> -> vector<30x4xf32>
    %cst_83 = arith.constant dense<0.000000e+00> : vector<42x4xf32>
    %178 = tpu.matmul %175, %177, %cst_83 {dimension_numbers = #tpu.dot_dimension_numbers<[1], [0], [0], [1], [0, 0, 1, 1], [], []>} : vector<42x30xf32>, vector<30x4xf32>, vector<42x4xf32> -> vector<42x4xf32>
    %cst_84 = arith.constant 1.000000e-16 : f32
    %179 = vector.broadcast %cst_84 : f32 to vector<42x4xf32>
    %180 = arith.addf %178, %179 : vector<42x4xf32>
    %181 = arith.divf %174, %180 : vector<42x4xf32>
    %c248 = arith.constant 248 : index
    %c0_85 = arith.constant 0 : index
    %182 = vector.load %arg3[%c248, %c0_85] : memref<768x128xf32, #tpu.memory_space<vmem>>, vector<4x128xf32>
    %cst_86 = arith.constant dense<0.000000e+00> : vector<42x128xf32>
    %183 = tpu.matmul %181, %182, %cst_86 {dimension_numbers = #tpu.dot_dimension_numbers<[1], [0], [0], [1], [0, 0, 1, 1], [], []>} : vector<42x4xf32>, vector<4x128xf32>, vector<42x128xf32> -> vector<42x128xf32>
    %c320 = arith.constant 320 : index
    %c0_87 = arith.constant 0 : index
    %184 = vector.load %arg5[%c320, %c0_87] : memref<440x128xf32, #tpu.memory_space<vmem>>, vector<42x1xf32>
    %185 = vector.broadcast %184 : vector<42x1xf32> to vector<42x128xf32>
    %186 = arith.mulf %183, %185 : vector<42x128xf32>
    %187 = arith.mulf %186, %151 : vector<42x128xf32>
    %c128_88 = arith.constant 128 : index
    %c0_89 = arith.constant 0 : index
    %188 = vector.load %arg5[%c128_88, %c0_89] : memref<440x128xf32, #tpu.memory_space<vmem>>, vector<14x42xf32>
    %cst_90 = arith.constant dense<0.000000e+00> : vector<14x128xf32>
    %189 = tpu.matmul %188, %187, %cst_90 {dimension_numbers = #tpu.dot_dimension_numbers<[1], [0], [0], [1], [0, 0, 1, 1], [], []>} : vector<14x42xf32>, vector<42x128xf32>, vector<14x128xf32> -> vector<14x128xf32>
    %c368_91 = arith.constant 368 : index
    %c0_92 = arith.constant 0 : index
    %190 = vector.load %arg5[%c368_91, %c0_92] : memref<440x128xf32, #tpu.memory_space<vmem>>, vector<42x1xf32>
    %191 = vector.broadcast %190 : vector<42x1xf32> to vector<42x128xf32>
    %192 = arith.mulf %183, %191 : vector<42x128xf32>
    %c80_93 = arith.constant 80 : index
    %c0_94 = arith.constant 0 : index
    %193 = vector.load %arg5[%c80_93, %c0_94] : memref<440x128xf32, #tpu.memory_space<vmem>>, vector<42x14xf32>
    %cst_95 = arith.constant dense<0.000000e+00> : vector<42x128xf32>
    %194 = tpu.matmul %193, %189, %cst_95 {dimension_numbers = #tpu.dot_dimension_numbers<[1], [0], [0], [1], [0, 0, 1, 1], [], []>} : vector<42x14xf32>, vector<14x128xf32>, vector<42x128xf32> -> vector<42x128xf32>
    %195 = arith.mulf %192, %194 : vector<42x128xf32>
    %c48_96 = arith.constant 48 : index
    %c0_97 = arith.constant 0 : index
    %196 = vector.load %arg5[%c48_96, %c0_97] : memref<440x128xf32, #tpu.memory_space<vmem>>, vector<30x42xf32>
    %cst_98 = arith.constant dense<0.000000e+00> : vector<30x128xf32>
    %197 = tpu.matmul %196, %195, %cst_98 {dimension_numbers = #tpu.dot_dimension_numbers<[1], [0], [0], [1], [0, 0, 1, 1], [], []>} : vector<30x42xf32>, vector<42x128xf32>, vector<30x128xf32> -> vector<30x128xf32>
    %c416 = arith.constant 416 : index
    %c0_99 = arith.constant 0 : index
    %198 = vector.load %arg5[%c416, %c0_99] : memref<440x128xf32, #tpu.memory_space<vmem>>, vector<4x30xf32>
    %cst_100 = arith.constant dense<0.000000e+00> : vector<4x128xf32>
    %199 = tpu.matmul %198, %197, %cst_100 {dimension_numbers = #tpu.dot_dimension_numbers<[1], [0], [0], [1], [0, 0, 1, 1], [], []>} : vector<4x30xf32>, vector<30x128xf32>, vector<4x128xf32> -> vector<4x128xf32>
    %c424 = arith.constant 424 : index
    %c0_101 = arith.constant 0 : index
    %200 = vector.load %arg5[%c424, %c0_101] : memref<440x128xf32, #tpu.memory_space<vmem>>, vector<1x128xf32>
    %201 = vector.broadcast %200 : vector<1x128xf32> to vector<4x128xf32>
    %202 = arith.addf %199, %201 : vector<4x128xf32>
    %c256 = arith.constant 256 : index
    %c0_102 = arith.constant 0 : index
    %203 = vector.load %arg3[%c256, %c0_102] : memref<768x128xf32, #tpu.memory_space<vmem>>, vector<128x128xf32>
    %204 = vector.extract_strided_slice %202 {offsets = [0, 0], sizes = [1, 128], strides = [1, 1]} : vector<4x128xf32> to vector<1x128xf32>
    %cst_103 = arith.constant dense<0.000000e+00> : vector<1x128xf32>
    %205 = tpu.matmul %204, %203, %cst_103 {dimension_numbers = #tpu.dot_dimension_numbers<[1], [0], [0], [1], [0, 0, 1, 1], [], []>} : vector<1x128xf32>, vector<128x128xf32>, vector<1x128xf32> -> vector<1x128xf32>
    %c384 = arith.constant 384 : index
    %c0_104 = arith.constant 0 : index
    %206 = vector.load %arg3[%c384, %c0_104] : memref<768x128xf32, #tpu.memory_space<vmem>>, vector<128x128xf32>
    %207 = vector.extract_strided_slice %202 {offsets = [1, 0], sizes = [1, 128], strides = [1, 1]} : vector<4x128xf32> to vector<1x128xf32>
    %cst_105 = arith.constant dense<0.000000e+00> : vector<1x128xf32>
    %208 = tpu.matmul %207, %206, %cst_105 {dimension_numbers = #tpu.dot_dimension_numbers<[1], [0], [0], [1], [0, 0, 1, 1], [], []>} : vector<1x128xf32>, vector<128x128xf32>, vector<1x128xf32> -> vector<1x128xf32>
    %209 = arith.addf %205, %208 : vector<1x128xf32>
    %c512 = arith.constant 512 : index
    %c0_106 = arith.constant 0 : index
    %210 = vector.load %arg3[%c512, %c0_106] : memref<768x128xf32, #tpu.memory_space<vmem>>, vector<128x128xf32>
    %211 = vector.extract_strided_slice %202 {offsets = [2, 0], sizes = [1, 128], strides = [1, 1]} : vector<4x128xf32> to vector<1x128xf32>
    %cst_107 = arith.constant dense<0.000000e+00> : vector<1x128xf32>
    %212 = tpu.matmul %211, %210, %cst_107 {dimension_numbers = #tpu.dot_dimension_numbers<[1], [0], [0], [1], [0, 0, 1, 1], [], []>} : vector<1x128xf32>, vector<128x128xf32>, vector<1x128xf32> -> vector<1x128xf32>
    %213 = arith.addf %209, %212 : vector<1x128xf32>
    %c640 = arith.constant 640 : index
    %c0_108 = arith.constant 0 : index
    %214 = vector.load %arg3[%c640, %c0_108] : memref<768x128xf32, #tpu.memory_space<vmem>>, vector<128x128xf32>
    %215 = vector.extract_strided_slice %202 {offsets = [3, 0], sizes = [1, 128], strides = [1, 1]} : vector<4x128xf32> to vector<1x128xf32>
    %cst_109 = arith.constant dense<0.000000e+00> : vector<1x128xf32>
    %216 = tpu.matmul %215, %214, %cst_109 {dimension_numbers = #tpu.dot_dimension_numbers<[1], [0], [0], [1], [0, 0, 1, 1], [], []>} : vector<1x128xf32>, vector<128x128xf32>, vector<1x128xf32> -> vector<1x128xf32>
    %217 = arith.addf %213, %216 : vector<1x128xf32>
    %c432 = arith.constant 432 : index
    %c0_110 = arith.constant 0 : index
    %218 = vector.load %arg5[%c432, %c0_110] : memref<440x128xf32, #tpu.memory_space<vmem>>, vector<4x128xf32>
    %cst_111 = arith.constant dense<0.000000e+00> : vector<1x128xf32>
    %219 = tpu.matmul %17, %218, %cst_111 {dimension_numbers = #tpu.dot_dimension_numbers<[1], [0], [0], [1], [0, 0, 1, 1], [], []>} : vector<1x4xf32>, vector<4x128xf32>, vector<1x128xf32> -> vector<1x128xf32>
    %c432_112 = arith.constant 432 : index
    %c0_113 = arith.constant 0 : index
    %220 = vector.load %arg5[%c432_112, %c0_113] : memref<440x128xf32, #tpu.memory_space<vmem>>, vector<4x128xf32>
    %cst_114 = arith.constant dense<0.000000e+00> : vector<1x128xf32>
    %221 = tpu.matmul %7, %220, %cst_114 {dimension_numbers = #tpu.dot_dimension_numbers<[1], [0], [0], [1], [0, 0, 1, 1], [], []>} : vector<1x4xf32>, vector<4x128xf32>, vector<1x128xf32> -> vector<1x128xf32>
    %222 = arith.mulf %217, %219 : vector<1x128xf32>
    %223 = arith.addf %222, %221 : vector<1x128xf32>
    %c0_115 = arith.constant 0 : index
    %c0_116 = arith.constant 0 : index
    %c0_117 = arith.constant 0 : index
    %224 = vector.load %arg6[%c0_115, %c0_116, %c0_117] : memref<1x1x128xf32, #tpu.memory_space<vmem>>, vector<1x1x128xf32>
    %225 = vector.shape_cast %224 : vector<1x1x128xf32> to vector<1x128xf32>
    %226 = vector.shape_cast %223 : vector<1x128xf32> to vector<1x1x128xf32>
    tpu.vector_store %arg6[%c0_115, %c0_116, %c0_117], %226 {strides = array<i32>} : memref<1x1x128xf32, #tpu.memory_space<vmem>>, vector<1x1x128xf32>,
    return
  }
  func.func @transform_0(%arg0: i32) -> (i32, i32, i32) {
    %c0_i32 = arith.constant 0 : i32
    %c0_i32_0 = arith.constant 0 : i32
    %c0_i32_1 = arith.constant 0 : i32
    return %arg0, %c0_i32, %c0_i32_0 : i32, i32, i32
  }
  func.func @transform_1(%arg0: i32) -> (i32, i32, i32) {
    %c0_i32 = arith.constant 0 : i32
    %c0_i32_0 = arith.constant 0 : i32
    %c0_i32_1 = arith.constant 0 : i32
    return %arg0, %c0_i32, %c0_i32_0 : i32, i32, i32
  }
  func.func @transform_2(%arg0: i32) -> (i32, i32) {
    %c0_i32 = arith.constant 0 : i32
    %c0_i32_0 = arith.constant 0 : i32
    %c0_i32_1 = arith.constant 0 : i32
    return %c0_i32, %c0_i32_0 : i32, i32
  }
  func.func @transform_3(%arg0: i32) -> (i32, i32) {
    %c0_i32 = arith.constant 0 : i32
    %c0_i32_0 = arith.constant 0 : i32
    %c0_i32_1 = arith.constant 0 : i32
    return %c0_i32, %c0_i32_0 : i32, i32
  }
  func.func @transform_4(%arg0: i32) -> (i32, i32) {
    %c0_i32 = arith.constant 0 : i32
    %c0_i32_0 = arith.constant 0 : i32
    %c0_i32_1 = arith.constant 0 : i32
    return %c0_i32, %c0_i32_0 : i32, i32
  }
  func.func @transform_5(%arg0: i32) -> (i32, i32, i32) {
    %c0_i32 = arith.constant 0 : i32
    %c0_i32_0 = arith.constant 0 : i32
    %c0_i32_1 = arith.constant 0 : i32
    return %arg0, %c0_i32, %c0_i32_0 : i32, i32, i32
  }
}

</mosaic_0001>

<llo_original>
// kernel: squeeze.1
$region0: #{squeeze.1}
  %s0 = inlined_call_operand.vmem [shape: f32[2,16], index: 0, kind: input, shape index: {}]
  %s1 = inlined_call_operand.hbm [shape: f32[2,4,4], index: 1, kind: output, shape index: {}]
  $region1: #{squeeze.1} parent=0
    #allocation0 [shape = 'u8[4096]{0}', space=vmem, size = 0x1000, scoped, tag = 'operand span for operand 1']
    #allocation1 [shape = 's32[1]{0}', space=sflag, size = 0x4, scoped, tag = 'scoped memory for squeeze.1']
    #allocation2 [shape = 'u8[8192]{0}', space=vmem, size = 0x2000, scoped, tag = 'scoped mem for output reshape']
    #allocation3 [shape = 'u8[4096]{0}', space=vmem, size = 0x1000, scoped, tag = 'scoped mem for input reshape']
    %2 = vsyncpa [#allocation1], 0
    %s4 = sshllo.u32 0, 2
    %v5 = vld [vmem:[%s0] sm:%s4]
    %6 = vst [vmem:[#allocation3] sm:%s4] %v5
    %v7 = vld [vmem:[#allocation3] sm:$0x3]
    %vm8 = vcmask 31744
    %9 = vst.msk [vmem:[#allocation2] ss:$8 sm:$0x3] %vm8, %v7
    %v10 = vld [vmem:[#allocation3] sm:$0x3]
    %11 = vrot.lane.b32.xlu0 %v10, 124
    %v12 = vpop.permute.xlu0 %11
    %vm13 = vcmask 31744
    %s14 = scalar_lea.vmem [#allocation2], 1
    %15 = vst.msk [vmem:[%s14] ss:$8 sm:$0x3] %vm13, %v12
    %v16 = vld [vmem:[#allocation3] sm:$0x3]
    %17 = vrot.lane.b32.xlu0 %v16, 120
    %v18 = vpop.permute.xlu0 %17
    %vm19 = vcmask 31744
    %s20 = scalar_lea.vmem [#allocation2], 2
    %21 = vst.msk [vmem:[%s20] ss:$8 sm:$0x3] %vm19, %v18
    %v22 = vld [vmem:[#allocation3] sm:$0x3]
    %23 = vrot.lane.b32.xlu0 %v22, 116
    %v24 = vpop.permute.xlu0 %23
    %vm25 = vcmask 31744
    %s26 = scalar_lea.vmem [#allocation2], 3
    %27 = vst.msk [vmem:[%s26] ss:$8 sm:$0x3] %vm25, %v24
    %s29 = sshllo.u32 0, 4
    %v31 = vld [vmem:[#allocation2] sm:%s29]
    %s32 = sshllo.u32 0, 4
    %33 = vst [vmem:[#allocation0] sm:%s32] %v31
    %s34 = scalar_lea.vmem [#allocation2], 8
    %v35 = vld [vmem:[%s34] sm:%s29]
    %s36 = sshllo.u32 0, 4
    %s37 = scalar_lea.vmem [#allocation0], 4
    %38 = vst [vmem:[%s37] sm:%s36] %v35
    %s40 = ssub.s32 128, 128
    %41 = vsyncadd [#allocation1], %s40
    %s43 = sshll.u32 [#allocation0], 4
    %s44 = int_to_ptr.vmem [resolvable:$true] %s43
    %46 = dma.vmem_to_hbm [thread:$0]  %s44, 128, %s1, [#allocation1]
    %47 = dma.done [#allocation1], 128
    %48 = vsyncpa [#allocation1], 1

// kernel: model_forward.1
$region0: #{model_forward.1}
  #allocation0 [shape = 'u32[]', space=smem, size = 0x4, offset = 0x4, fixed_abs, tag = 'smem constant byte address 0x4 - core index']
  #allocation1 [shape = 'u32[144,128]{1,0:T(1,128)}', space=vmem, size = 0x12000, scoped, tag = 'internal scratch']
  %s0 = inlined_call_operand.vmem [shape: f32[2,16,4], index: 0, kind: input, shape index: {}]
  %s1 = inlined_call_operand.vmem [shape: f32[2,16,4], index: 1, kind: input, shape index: {}]
  %s2 = inlined_call_operand.hbm [shape: f32[768,128], index: 2, kind: input, shape index: {}]
  %s3 = inlined_call_operand.vmem [shape: f32[384,32], index: 3, kind: input, shape index: {}]
  %s4 = inlined_call_operand.vmem [shape: f32[440,128], index: 4, kind: input, shape index: {}]
  %s5 = inlined_call_operand.vmem [shape: f32[2,1,128], index: 5, kind: output, shape index: {}]
  %s6 = sld [smem:[#allocation0]]
  $region57: #{model_forward.1} parent=0
    _
  %s8 = ssub.s32 1, %s6
  %s9 = scalar_select 0, %s8, %s6
  $region1: #{model_forward.1} parent=0
    #allocation2 [shape = 'u8[393216]{0}', space=vmem, size = 0x60000, scoped, tag = 'input window, operand 2, single buffered']
    #allocation3 [shape = 's32[2]{0}', space=sflag, size = 0x8, scoped, tag = 'scoped memory for model_forward.1']
    %10 = vsyncpa [#allocation3], 0
    loop: start=0, step=1, limit=4
    $region2: #{model_forward.1} parent=1 // loop_pre_header
      _
    $region3: #{model_forward.1} parent=1 // loop_header
      %s12 = sphi 0, %s16
      %p13 = scmp.ge.s32.totalorder %s12, 4
      %s22 = sphi 0, %s24
      %s25 = sphi 0, %s22
      %s26 = sphi 0, %s25
      %s42 = sphi 0, %s26
      %s48 = sphi 0, %s50
      %s51 = sphi 0, %s48
      %s52 = sphi 0, %s51
      %s68 = sphi 0, %s52
      %s72 = sphi 0, %s72
      %s74 = sphi 0, %s72
      %s75 = sphi 0, %s74
      %s89 = sphi 0, %s75
      %s93 = sphi 0, %s93
      %s95 = sphi 0, %s93
      %s96 = sphi 0, %s95
      %s110 = sphi 0, %s96
      %s114 = sphi 0, %s114
      %s116 = sphi 0, %s114
      %s117 = sphi 0, %s116
      %s131 = sphi 0, %s117
      %s137 = sphi 0, %s139
      %s140 = sphi 0, %s137
      %s141 = sphi 0, %s140
      %s157 = sphi 0, %s141
    $region4: #{model_forward.1} parent=1 // loop_header_branch
      %15 = sbr.rel (%p13) target = $region8
    $region5: #{model_forward.1} parent=1 // loop_body
      %s17 = ssub.s32 %s12, 1
      %s18 = ssub.s32 %s12, 2
      %s19 = sadd.s32 %s12, 1
      %s20 = ssub.s32 %s12, %s19
      %p21 = scmp.eq.s32.totalorder %s20, 0
      %s23 = sadd.s32 %s22, 1
      %s24 = scalar_select %p21, %s22, %s23
      %p27 = pneg %p21
      %p28 = scmp.eq.s32.totalorder %s12, 1
      %p29 = por %p27, %p28
      %p30 = scmp.ne.s32.totalorder %s22, %s25
      %p31 = scmp.eq.s32.totalorder %s12, 0
      %p32 = por %p30, %p31
      %p33 = scmp.ne.s32.totalorder %s22, %s25
      %p34 = scmp.eq.s32.totalorder %s17, 1
      %p35 = por %p33, %p34
      %p36 = scmp.ne.s32.totalorder %s25, %s26
      %p37 = scmp.eq.s32.totalorder %s17, 0
      %p38 = por %p36, %p37
      %p39 = scmp.ne.s32.totalorder %s25, %s26
      %p40 = scmp.eq.s32.totalorder %s18, 1
      %p41 = por %p39, %p40
      %p43 = scmp.ne.s32.totalorder %s26, %s42
      %p44 = scmp.eq.s32.totalorder %s18, 0
      %p45 = por %p43, %p44
      %s46 = ssub.s32 %s12, %s19
      %p47 = scmp.eq.s32.totalorder %s46, 0
      %s49 = sadd.s32 %s48, 1
      %s50 = scalar_select %p47, %s48, %s49
      %p53 = pneg %p47
      %p54 = scmp.eq.s32.totalorder %s12, 1
      %p55 = por %p53, %p54
      %p56 = scmp.ne.s32.totalorder %s48, %s51
      %p57 = scmp.eq.s32.totalorder %s12, 0
      %p58 = por %p56, %p57
      %p59 = scmp.ne.s32.totalorder %s48, %s51
      %p60 = scmp.eq.s32.totalorder %s17, 1
      %p61 = por %p59, %p60
      %p62 = scmp.ne.s32.totalorder %s51, %s52
      %p63 = scmp.eq.s32.totalorder %s17, 0
      %p64 = por %p62, %p63
      %p65 = scmp.ne.s32.totalorder %s51, %s52
      %p66 = scmp.eq.s32.totalorder %s18, 1
      %p67 = por %p65, %p66
      %p69 = scmp.ne.s32.totalorder %s52, %s68
      %p70 = scmp.eq.s32.totalorder %s18, 0
      %p71 = por %p69, %p70
      %s73 = sadd.s32 %s72, 1
      %p76 = scmp.eq.s32.totalorder %s12, 1
      %p77 = scmp.ne.s32.totalorder %s72, %s74
      %p78 = scmp.eq.s32.totalorder %s12, 0
      %p79 = por %p77, %p78
      %p80 = scmp.ne.s32.totalorder %s72, %s74
      %p81 = scmp.eq.s32.totalorder %s17, 1
      %p82 = por %p80, %p81
      %p83 = scmp.ne.s32.totalorder %s74, %s75
      %p84 = scmp.eq.s32.totalorder %s17, 0
      %p85 = por %p83, %p84
      %p86 = scmp.ne.s32.totalorder %s74, %s75
      %p87 = scmp.eq.s32.totalorder %s18, 1
      %p88 = por %p86, %p87
      %p90 = scmp.ne.s32.totalorder %s75, %s89
      %p91 = scmp.eq.s32.totalorder %s18, 0
      %p92 = por %p90, %p91
      %s94 = sadd.s32 %s93, 1
      %p97 = scmp.eq.s32.totalorder %s12, 1
      %p98 = scmp.ne.s32.totalorder %s93, %s95
      %p99 = scmp.eq.s32.totalorder %s12, 0
      %p100 = por %p98, %p99
      %p101 = scmp.ne.s32.totalorder %s93, %s95
      %p102 = scmp.eq.s32.totalorder %s17, 1
      %p103 = por %p101, %p102
      %p104 = scmp.ne.s32.totalorder %s95, %s96
      %p105 = scmp.eq.s32.totalorder %s17, 0
      %p106 = por %p104, %p105
      %p107 = scmp.ne.s32.totalorder %s95, %s96
      %p108 = scmp.eq.s32.totalorder %s18, 1
      %p109 = por %p107, %p108
      %p111 = scmp.ne.s32.totalorder %s96, %s110
      %p112 = scmp.eq.s32.totalorder %s18, 0
      %p113 = por %p111, %p112
      %s115 = sadd.s32 %s114, 1
      %p118 = scmp.eq.s32.totalorder %s12, 1
      %p119 = scmp.ne.s32.totalorder %s114, %s116
      %p120 = scmp.eq.s32.totalorder %s12, 0
      %p121 = por %p119, %p120
      %p122 = scmp.ne.s32.totalorder %s114, %s116
      %p123 = scmp.eq.s32.totalorder %s17, 1
      %p124 = por %p122, %p123
      %p125 = scmp.ne.s32.totalorder %s116, %s117
      %p126 = scmp.eq.s32.totalorder %s17, 0
      %p127 = por %p125, %p126
      %p128 = scmp.ne.s32.totalorder %s116, %s117
      %p129 = scmp.eq.s32.totalorder %s18, 1
      %p130 = por %p128, %p129
      %p132 = scmp.ne.s32.totalorder %s117, %s131
      %p133 = scmp.eq.s32.totalorder %s18, 0
      %p134 = por %p132, %p133
      %s135 = ssub.s32 %s12, %s19
      %p136 = scmp.eq.s32.totalorder %s135, 0
      %s138 = sadd.s32 %s137, 1
      %s139 = scalar_select %p136, %s137, %s138
      %p142 = pneg %p136
      %p143 = scmp.eq.s32.totalorder %s12, 1
      %p144 = por %p142, %p143
      %p145 = scmp.ne.s32.totalorder %s137, %s140
      %p146 = scmp.eq.s32.totalorder %s12, 0
      %p147 = por %p145, %p146
      %p148 = scmp.ne.s32.totalorder %s137, %s140
      %p149 = scmp.eq.s32.totalorder %s17, 1
      %p150 = por %p148, %p149
      %p151 = scmp.ne.s32.totalorder %s140, %s141
      %p152 = scmp.eq.s32.totalorder %s17, 0
      %p153 = por %p151, %p152
      %p154 = scmp.ne.s32.totalorder %s140, %s141
      %p155 = scmp.eq.s32.totalorder %s18, 1
      %p156 = por %p154, %p155
      %p158 = scmp.ne.s32.totalorder %s141, %s157
      %p159 = scmp.eq.s32.totalorder %s18, 0
      %p160 = por %p158, %p159
      %p161 = scmp.le.s32.totalorder 1, %s12
      %p162 = scmp.lt.s32.totalorder %s12, 3
      %p163 = pnand %p161, %p162
      %p164 = pneg %p163
      // Predicated region
      $region9: #{model_forward.1} parent=5 // pred_check
        _
      $region10: #{model_forward.1} parent=5 // pred_check_branch
        %166 = sbr.rel (%p163) target = $region12
      $region11: #{model_forward.1} parent=5 // pred_region
        %s167 = ssub.s32 %s12, 1
        // Predicated region
        $region13: #{model_forward.1} parent=11 // pred_check
          %p168 = pneg %p85
        $region14: #{model_forward.1} parent=11 // pred_check_branch
          %170 = sbr.rel (%p168) target = $region16
        $region15: #{model_forward.1} parent=11 // pred_region
          %s172 = ssub.s32 12288, 12288
          %173 = vsyncadd [#allocation3], %s172
          %s174 = sshll.u32 [#allocation2], 4
          %s175 = int_to_ptr.vmem [resolvable:$true] %s174
          %180 = dma.hbm_to_vmem [thread:$0]  %s2, 12288, %s175, [#allocation3], 128, 128, 8
        $region16: #{model_forward.1} parent=11 // pred_fallthru
          _
        // Predicated region
        $region17: #{model_forward.1} parent=11 // pred_check
          %p181 = pneg %p106
        $region18: #{model_forward.1} parent=11 // pred_check_branch
          %183 = sbr.rel (%p181) target = $region20
        $region19: #{model_forward.1} parent=11 // pred_region
          _
        $region20: #{model_forward.1} parent=11 // pred_fallthru
          _
        // Predicated region
        $region21: #{model_forward.1} parent=11 // pred_check
          %p184 = pneg %p127
        $region22: #{model_forward.1} parent=11 // pred_check_branch
          %186 = sbr.rel (%p184) target = $region24
        $region23: #{model_forward.1} parent=11 // pred_region
          _
        $region24: #{model_forward.1} parent=11 // pred_fallthru
          _
      $region12: #{model_forward.1} parent=5 // pred_fallthru
        _
      %p187 = scmp.lt.s32.totalorder %s12, 2
      // Predicated region
      $region25: #{model_forward.1} parent=5 // pred_check
        %p188 = pneg %p187
      $region26: #{model_forward.1} parent=5 // pred_check_branch
        %190 = sbr.rel (%p188) target = $region28
      $region27: #{model_forward.1} parent=5 // pred_region
        // Predicated region
        $region29: #{model_forward.1} parent=27 // pred_check
          %p191 = pneg %p32
        $region30: #{model_forward.1} parent=27 // pred_check_branch
          %193 = sbr.rel (%p191) target = $region32
        $region31: #{model_forward.1} parent=27 // pred_region
          %p194 = scmp.lt.s32.totalorder %s12, 1
          %s195 = scalar_select %p194, %s12, 1
          %s196 = smul.addr %s195, 2
          %s197 = smul.addr %s196, 8
          %s198 = scalar_lea.vmem %s0, %s197
        $region32: #{model_forward.1} parent=27 // pred_fallthru
          _
        // Predicated region
        $region33: #{model_forward.1} parent=27 // pred_check
          %p199 = pneg %p58
        $region34: #{model_forward.1} parent=27 // pred_check_branch
          %201 = sbr.rel (%p199) target = $region36
        $region35: #{model_forward.1} parent=27 // pred_region
          %p202 = scmp.lt.s32.totalorder %s12, 1
          %s203 = scalar_select %p202, %s12, 1
          %s204 = smul.addr %s203, 2
          %s205 = smul.addr %s204, 8
          %s206 = scalar_lea.vmem %s1, %s205
        $region36: #{model_forward.1} parent=27 // pred_fallthru
          _
      $region28: #{model_forward.1} parent=5 // pred_fallthru
        _
      %p207 = scmp.le.s32.totalorder 1, %s12
      %p208 = scmp.lt.s32.totalorder %s12, 3
      %p209 = pnand %p207, %p208
      %p210 = pneg %p209
      // Predicated region
      $region37: #{model_forward.1} parent=5 // pred_check
        _
      $region38: #{model_forward.1} parent=5 // pred_check_branch
        %212 = sbr.rel (%p209) target = $region40
      $region39: #{model_forward.1} parent=5 // pred_region
        %s213 = ssub.s32 %s12, 1
        // Predicated region
        $region41: #{model_forward.1} parent=39 // pred_check
          %p214 = pneg %p85
        $region42: #{model_forward.1} parent=39 // pred_check_branch
          %216 = sbr.rel (%p214) target = $region44
        $region43: #{model_forward.1} parent=39 // pred_region
          %217 = dma.done [#allocation3], 12288
        $region44: #{model_forward.1} parent=39 // pred_fallthru
          _
        %p218 = scmp.lt.s32.totalorder %s17, 1
        %s219 = scalar_select %p218, %s17, 1
        %s220 = smul.addr %s219, 2
        %s221 = smul.addr %s220, 8
        %s222 = scalar_lea.vmem %s0, %s221
        %p223 = pneg %p38
        %p224 = pneg %p35
        %p225 = scmp.lt.s32.totalorder %s17, 1
        %s226 = scalar_select %p225, %s17, 1
        %s227 = smul.addr %s226, 2
        %s228 = smul.addr %s227, 8
        %s229 = scalar_lea.vmem %s1, %s228
        %p230 = pneg %p64
        %p231 = pneg %p61
        %p232 = pneg %p85
        %p233 = pneg %p82
        %p234 = pneg %p106
        %p235 = pneg %p103
        %p236 = pneg %p127
        %p237 = pneg %p124
        %p238 = pneg %p153
        %p239 = pneg %p150
        %p240 = scmp.lt.s32.totalorder %s17, 1
        %s241 = scalar_select %p240, %s17, 1
        %s242 = scalar_lea.vmem %s5, %s241
        %p243 = scmp.lt.s32.totalorder %s17, 1
        %s244 = scalar_select %p243, %s17, 1
        %s245 = smul.addr %s244, 2
        %s246 = smul.addr %s245, 8
        %s247 = scalar_lea.vmem %s0, %s246
        %p248 = scmp.lt.s32.totalorder %s17, 1
        %s249 = scalar_select %p248, %s17, 1
        %s250 = smul.addr %s249, 2
        %s251 = smul.addr %s250, 8
        %s252 = scalar_lea.vmem %s1, %s251
        %p253 = scmp.lt.s32.totalorder %s17, 1
        %s254 = scalar_select %p253, %s17, 1
        %s255 = scalar_lea.vmem %s5, %s254
        %v256 = vld [vmem:[%s247] sm:$0xff]
        %v257 = vld [vmem:[%s247 + $0x8] sm:$0xff]
        %v258 = vld [vmem:[%s252] sm:$0xff]
        %v259 = vld [vmem:[%s252 + $0x8] sm:$0xff]
        %vm260 = vcmask 31744
        %v261 = vsel %vm260, %v256, 0.0
        %v262 = vsel %vm260, %v257, 0.0
        %v263 = vadd.f32 %v261, %v262
        %v264 = vrot.slane %v263, 4
        %v265 = vadd.f32 %v263, %v264
        %v266 = vrot.slane %v265, 2
        %v267 = vadd.f32 %v265, %v266
        %v268 = vrot.slane %v267, 1
        %v269 = vadd.f32 %v267, %v268
        %v270 = vrcp.pop 16.0
        %v271 = vmul.f32 %v269, %v270
        %v272 = vsub.f32 %v256, %v271
        %v273 = vsub.f32 %v257, %v271
        %v274 = vmul.f32 %v272, %v272
        %v275 = vmul.f32 %v273, %v273
        %v276 = vsel %vm260, %v274, 0.0
        %v277 = vsel %vm260, %v275, 0.0
        %v278 = vadd.f32 %v276, %v277
        %v279 = vrot.slane %v278, 4
        %v280 = vadd.f32 %v278, %v279
        %v281 = vrot.slane %v280, 2
        %v282 = vadd.f32 %v280, %v281
        %v283 = vrot.slane %v282, 1
        %v284 = vadd.f32 %v282, %v283
        %v285 = vmul.f32 %v284, %v270
        %v286 = vadd.f32 %v285, 1e-05
        %v287 = vrsqrt.pop %v286
        %v288 = vmul.f32 %v286, %v287
        %vm289 = vcmp.eq.f32.partialorder %v286, inf
        %v290 = vsel %vm289, %v286, %v288
        %vm291 = vcmp.eq.f32.partialorder %v286, 0.0
        %v292 = vand.u32 %v286, 2147483648
        %v293 = vsel %vm291, %v292, %v290
        %v294 = vrcp.pop %v293
        %v295 = vmul.f32 %v272, %v294
        %v296 = vmul.f32 %v273, %v294
        %v298 = vrot.slane %v296, 7
        %vm301 = vcmask 1040384
        %v302 = vrot.slane %v295, 7
        %v303 = vsel %vm301, %v302, %v298
        %v306 = vsel %vm301, %v298, %v302
        %vm307 = vcmask 1046528
        %v308 = vrot.slane %v295, 1
        %v309 = vrot.slane %v296, 1
        %v310 = vsel %vm307, %v308, %v309
        %v313 = vsel %vm307, %v309, %v308
        %314 = vrot.lane.b32.xlu0 %v295, 4
        %v315 = vpop.permute.xlu0 %314
        %316 = vrot.lane.b32.xlu0 %v296, 4
        %v317 = vpop.permute.xlu0 %316
        %321 = vrot.lane.b32.xlu0 %v310, 8
        %v322 = vpop.permute.xlu0 %321
        %323 = vrot.lane.b32.xlu0 %v313, 8
        %v324 = vpop.permute.xlu0 %323
        %329 = vrot.lane.b32.xlu0 %v258, 12
        %v330 = vpop.permute.xlu0 %329
        %331 = vrot.lane.b32.xlu0 %v259, 12
        %v332 = vpop.permute.xlu0 %331
        %v335 = vsel %vm260, %v306, %v315
        %v336 = vsel %vm260, %v303, %v317
        %vm337 = vcmask 64512
        %v338 = vsel %vm337, %v335, %v322
        %v339 = vsel %vm337, %v336, %v324
        %vm340 = vcmask 97280
        %v341 = vsel %vm340, %v338, %v330
        %v342 = vsel %vm340, %v339, %v332
        %v343 = vld [vmem:[#allocation2] sm:$0xff]
        %v344 = vld [vmem:[#allocation2 + $0x8] sm:$0xff]
        %v345 = vld [vmem:[#allocation2 + $0x10] sm:$0xff]
        %v346 = vld [vmem:[#allocation2 + $0x18] sm:$0xff]
        %vm347 = vcmask 130048
        %v349 = vsel %vm347, %v341, 0
        %v352 = vsel %vm347, %v342, 0
        %354 = vmatprep.subr.mxu0 0.0
        %355 = vmatpush1.msra.mxu0 %v343
        %356 = vmatprep.subr.mxu0 0.0
        %357 = vmatpush1.msra.mxu0 %v344
        %358 = vmatprep.subr.mxu0 0.0
        %359 = vmatpush1.msra.mxu0 0.0
        %360 = vmatprep.subr.mxu0 0.0
        %361 = vmatpush1.msra.mxu0 0.0
        %362 = vmatprep.subr.mxu0 0.0
        %363 = vmatpush1.msra.mxu0 0.0
        %364 = vmatprep.subr.mxu0 0.0
        %365 = vmatpush1.msra.mxu0 0.0
        %366 = vmatprep.subr.mxu0 0.0
        %367 = vmatpush1.msra.mxu0 0.0
        %368 = vmatprep.subr.mxu0 0.0
        %369 = vmatpush1.msra.mxu0 0.0
        %370 = vmatprep.subr.mxu0 0.0
        %371 = vmatpush1.msra.mxu0 0.0
        %372 = vmatprep.subr.mxu0 0.0
        %373 = vmatpush1.msra.mxu0 0.0
        %374 = vmatprep.subr.mxu0 0.0
        %375 = vmatpush1.msra.mxu0 0.0
        %376 = vmatprep.subr.mxu0 0.0
        %377 = vmatpush1.msra.mxu0 0.0
        %378 = vmatprep.subr.mxu0 0.0
        %379 = vmatpush1.msra.mxu0 0.0
        %380 = vmatprep.subr.mxu0 0.0
        %381 = vmatpush1.msra.mxu0 0.0
        %382 = vmatprep.subr.mxu0 0.0
        %383 = vmatpush1.msra.mxu0 0.0
        %384 = vmatprep.subr.mxu0 0.0
        %385 = vmatpush1.msra.mxu0 0.0
        %386 = vmatprep.subr.mxu0 0.0
        %387 = vmatpush1.msra.mxu0 0.0
        %388 = vmatprep.subr.mxu0 0.0
        %389 = vmatpush1.msra.mxu0 0.0
        %390 = vmatprep.subr.mxu0 0.0
        %391 = vmatpush1.msra.mxu0 0.0
        %392 = vmatprep.subr.mxu0 0.0
        %393 = vmatpush1.msra.mxu0 0.0
        %394 = vmatprep.subr.mxu0 0.0
        %395 = vmatpush1.msra.mxu0 0.0
        %396 = vmatprep.subr.mxu0 0.0
        %397 = vmatpush1.msra.mxu0 0.0
        %398 = vmatprep.subr.mxu0 0.0
        %399 = vmatpush1.msra.mxu0 0.0
        %400 = vmatprep.subr.mxu0 0.0
        %401 = vmatpush1.msra.mxu0 0.0
        %402 = vmatprep.subr.mxu0 0.0
        %403 = vmatpush1.msra.mxu0 0.0
        %404 = vmatprep.subr.mxu0 0.0
        %405 = vmatpush1.msra.mxu0 0.0
        %406 = vmatprep.subr.mxu0 0.0
        %407 = vmatpush1.msra.mxu0 0.0
        %408 = vmatprep.subr.mxu0 0.0
        %409 = vmatpush1.msra.mxu0 0.0
        %410 = vmatprep.subr.mxu0 0.0
        %411 = vmatpush1.msra.mxu0 0.0
        %412 = vmatprep.subr.mxu0 0.0
        %413 = vmatpush1.msra.mxu0 0.0
        %414 = vmatprep.subr.mxu0 0.0
        %415 = vmatpush1.msra.mxu0 0.0
        %416 = vmatprep.subr.mxu0 0.0
        %417 = vmatpush1.msra.mxu0 0.0
        %418 = vmatprep.mubr.f32.mxu0 0.0
        %419 = vmatmul.mubr.f32.gmra.mrb[0].mxu0 %v349
        %v420 = vpop.f32.mrb[0].mxu0
        %v421 = vadd.f32 %v345, %v420
        %v422 = vpop.f32.mrb[0].mxu0
        %423 = vmatprep.mubr.f32.mxu0 0.0
        %424 = vmatmul.mubr.f32.gmra.mrb[0].mxu0 %v352
        %v425 = vpop.f32.mrb[0].mxu0
        %v426 = vadd.f32 %v346, %v425
        %v427 = vpop.f32.mrb[0].mxu0
        %428 = vdwg.mxu0
        %v429 = vld [vmem:[%s3] sm:$0xff]
        %v430 = vld [vmem:[%s3 + $0x8] sm:$0xff]
        %v431 = vld [vmem:[%s3 + $0x10] sm:$0xff]
        %v432 = vld [vmem:[%s3 + $0x18] sm:$0xff]
        %v433 = vld [vmem:[%s3 + $0x20] sm:$0xff]
        %v434 = vld [vmem:[%s3 + $0x28] sm:$0xff]
        %v435 = vld [vmem:[%s3 + $0x30] sm:$0xff]
        %v436 = vld [vmem:[%s3 + $0x38] sm:$0xff]
        %v437 = vld [vmem:[%s3 + $0x40] sm:$0xff]
        %v438 = vld [vmem:[%s3 + $0x48] sm:$0xff]
        %v439 = vld [vmem:[%s3 + $0x50] sm:$0xff]
        %v440 = vld [vmem:[%s3 + $0x58] sm:$0xff]
        %v441 = vld [vmem:[%s3 + $0x60] sm:$0xff]
        %v442 = vld [vmem:[%s3 + $0x68] sm:$0xff]
        %v443 = vld [vmem:[%s3 + $0x70] sm:$0xff]
        %v444 = vld [vmem:[%s3 + $0x78] sm:$0xff]
        %v445 = vld [vmem:[%s3 + $0x80] sm:$0x1]
        %v446 = vlaneseq
        %v447 = vshrl.u32 %v446, 7
        %v448 = vsub.s32 0, %v447
        %v449 = vrot.slane %v445, %v448
        %450 = vmatprep.subr.mxu0 0.0
        %451 = vmatpush1.msra.mxu0 %v429
        %452 = vmatprep.subr.mxu0 0.0
        %453 = vmatpush1.msra.mxu0 %v430
        %454 = vmatprep.subr.mxu0 0.0
        %455 = vmatpush1.msra.mxu0 %v431
        %456 = vmatprep.subr.mxu0 0.0
        %457 = vmatpush1.msra.mxu0 %v432
        %458 = vmatprep.subr.mxu0 0.0
        %459 = vmatpush1.msra.mxu0 %v433
        %460 = vmatprep.subr.mxu0 0.0
        %461 = vmatpush1.msra.mxu0 %v434
        %462 = vmatprep.subr.mxu0 0.0
        %463 = vmatpush1.msra.mxu0 %v435
        %464 = vmatprep.subr.mxu0 0.0
        %465 = vmatpush1.msra.mxu0 %v436
        %466 = vmatprep.subr.mxu0 0.0
        %467 = vmatpush1.msra.mxu0 %v437
        %468 = vmatprep.subr.mxu0 0.0
        %469 = vmatpush1.msra.mxu0 %v438
        %470 = vmatprep.subr.mxu0 0.0
        %471 = vmatpush1.msra.mxu0 %v439
        %472 = vmatprep.subr.mxu0 0.0
        %473 = vmatpush1.msra.mxu0 %v440
        %474 = vmatprep.subr.mxu0 0.0
        %475 = vmatpush1.msra.mxu0 %v441
        %476 = vmatprep.subr.mxu0 0.0
        %477 = vmatpush1.msra.mxu0 %v442
        %478 = vmatprep.subr.mxu0 0.0
        %479 = vmatpush1.msra.mxu0 %v443
        %480 = vmatprep.subr.mxu0 0.0
        %481 = vmatpush1.msra.mxu0 %v444
        %482 = vmatprep.subr.mxu0 0.0
        %483 = vmatpush1.msra.mxu0 0.0
        %484 = vmatprep.subr.mxu0 0.0
        %485 = vmatpush1.msra.mxu0 0.0
        %486 = vmatprep.subr.mxu0 0.0
        %487 = vmatpush1.msra.mxu0 0.0
        %488 = vmatprep.subr.mxu0 0.0
        %489 = vmatpush1.msra.mxu0 0.0
        %490 = vmatprep.subr.mxu0 0.0
        %491 = vmatpush1.msra.mxu0 0.0
        %492 = vmatprep.subr.mxu0 0.0
        %493 = vmatpush1.msra.mxu0 0.0
        %494 = vmatprep.subr.mxu0 0.0
        %495 = vmatpush1.msra.mxu0 0.0
        %496 = vmatprep.subr.mxu0 0.0
        %497 = vmatpush1.msra.mxu0 0.0
        %498 = vmatprep.subr.mxu0 0.0
        %499 = vmatpush1.msra.mxu0 0.0
        %500 = vmatprep.subr.mxu0 0.0
        %501 = vmatpush1.msra.mxu0 0.0
        %502 = vmatprep.subr.mxu0 0.0
        %503 = vmatpush1.msra.mxu0 0.0
        %504 = vmatprep.subr.mxu0 0.0
        %505 = vmatpush1.msra.mxu0 0.0
        %506 = vmatprep.subr.mxu0 0.0
        %507 = vmatpush1.msra.mxu0 0.0
        %508 = vmatprep.subr.mxu0 0.0
        %509 = vmatpush1.msra.mxu0 0.0
        %510 = vmatprep.subr.mxu0 0.0
        %511 = vmatpush1.msra.mxu0 0.0
        %512 = vmatprep.subr.mxu0 0.0
        %513 = vmatpush1.msra.mxu0 0.0
        %514 = vmatprep.mubr.f32.mxu0 0.0
        %515 = vmatmul.mubr.f32.gmra.mrb[0].mxu0 %v421
        %v516 = vpop.f32.mrb[0].mxu0
        %v517 = vadd.f32 %v449, %v516
        %v518 = vpop.f32.mrb[0].mxu0
        %519 = vmatprep.mubr.f32.mxu0 0.0
        %520 = vmatmul.mubr.f32.gmra.mrb[0].mxu0 %v426
        %v521 = vpop.f32.mrb[0].mxu0
        %v522 = vadd.f32 %v449, %v521
        %v523 = vpop.f32.mrb[0].mxu0
        %524 = vdwg.mxu0
        %v525 = vld [vmem:[%s3 + $0xd0] sm:$0xff]
        %v526 = vld [vmem:[%s3 + $0xd8] sm:$0xff]
        %v528 = vsel %vm347, %v525, 0
        %v531 = vsel %vm347, %v526, 0
        %533 = vmatprep.subr.mxu0 0.0
        %534 = vmatpush1.msra.mxu0 %v517
        %535 = vmatprep.subr.mxu0 0.0
        %536 = vmatpush1.msra.mxu0 %v522
        %537 = vmatprep.subr.mxu0 0.0
        %538 = vmatpush1.msra.mxu0 0.0
        %539 = vmatprep.subr.mxu0 0.0
        %540 = vmatpush1.msra.mxu0 0.0
        %541 = vmatprep.subr.mxu0 0.0
        %542 = vmatpush1.msra.mxu0 0.0
        %543 = vmatprep.subr.mxu0 0.0
        %544 = vmatpush1.msra.mxu0 0.0
        %545 = vmatprep.subr.mxu0 0.0
        %546 = vmatpush1.msra.mxu0 0.0
        %547 = vmatprep.subr.mxu0 0.0
        %548 = vmatpush1.msra.mxu0 0.0
        %549 = vmatprep.subr.mxu0 0.0
        %550 = vmatpush1.msra.mxu0 0.0
        %551 = vmatprep.subr.mxu0 0.0
        %552 = vmatpush1.msra.mxu0 0.0
        %553 = vmatprep.subr.mxu0 0.0
        %554 = vmatpush1.msra.mxu0 0.0
        %555 = vmatprep.subr.mxu0 0.0
        %556 = vmatpush1.msra.mxu0 0.0
        %557 = vmatprep.subr.mxu0 0.0
        %558 = vmatpush1.msra.mxu0 0.0
        %559 = vmatprep.subr.mxu0 0.0
        %560 = vmatpush1.msra.mxu0 0.0
        %561 = vmatprep.subr.mxu0 0.0
        %562 = vmatpush1.msra.mxu0 0.0
        %563 = vmatprep.subr.mxu0 0.0
        %564 = vmatpush1.msra.mxu0 0.0
        %565 = vmatprep.subr.mxu0 0.0
        %566 = vmatpush1.msra.mxu0 0.0
        %567 = vmatprep.subr.mxu0 0.0
        %568 = vmatpush1.msra.mxu0 0.0
        %569 = vmatprep.subr.mxu0 0.0
        %570 = vmatpush1.msra.mxu0 0.0
        %571 = vmatprep.subr.mxu0 0.0
        %572 = vmatpush1.msra.mxu0 0.0
        %573 = vmatprep.subr.mxu0 0.0
        %574 = vmatpush1.msra.mxu0 0.0
        %575 = vmatprep.subr.mxu0 0.0
        %576 = vmatpush1.msra.mxu0 0.0
        %577 = vmatprep.subr.mxu0 0.0
        %578 = vmatpush1.msra.mxu0 0.0
        %579 = vmatprep.subr.mxu0 0.0
        %580 = vmatpush1.msra.mxu0 0.0
        %581 = vmatprep.subr.mxu0 0.0
        %582 = vmatpush1.msra.mxu0 0.0
        %583 = vmatprep.subr.mxu0 0.0
        %584 = vmatpush1.msra.mxu0 0.0
        %585 = vmatprep.subr.mxu0 0.0
        %586 = vmatpush1.msra.mxu0 0.0
        %587 = vmatprep.subr.mxu0 0.0
        %588 = vmatpush1.msra.mxu0 0.0
        %589 = vmatprep.subr.mxu0 0.0
        %590 = vmatpush1.msra.mxu0 0.0
        %591 = vmatprep.subr.mxu0 0.0
        %592 = vmatpush1.msra.mxu0 0.0
        %593 = vmatprep.subr.mxu0 0.0
        %594 = vmatpush1.msra.mxu0 0.0
        %595 = vmatprep.subr.mxu0 0.0
        %596 = vmatpush1.msra.mxu0 0.0
        %597 = vmatprep.mubr.f32.mxu0 0.0
        %598 = vmatmul.mubr.f32.gmra.mrb[0].mxu0 %v528
        %v599 = vpop.f32.mrb[0].mxu0
        %v600 = vadd.f32 0.0, %v599
        %v601 = vpop.f32.mrb[0].mxu0
        %602 = vmatprep.mubr.f32.mxu0 0.0
        %603 = vmatmul.mubr.f32.gmra.mrb[0].mxu0 %v531
        %v604 = vpop.f32.mrb[0].mxu0
        %v605 = vadd.f32 0.0, %v604
        %v606 = vpop.f32.mrb[0].mxu0
        %607 = vdwg.mxu0
        %609 = vrot.lane.b32.xlu0 %v605, 32
        %v610 = vpop.permute.xlu0 %609
        %vm612 = vcmask 261120
        %v613 = vsel %vm612, %v600, %v610
        %v614 = vld [vmem:[%s3 + $0x88] sm:$0xff]
        %v615 = vld [vmem:[%s3 + $0x90] sm:$0xff]
        %v616 = vld [vmem:[%s3 + $0x98] sm:$0xff]
        %v617 = vld [vmem:[%s3 + $0xa0] sm:$0xff]
        %v618 = vld [vmem:[%s3 + $0xa8] sm:$0xff]
        %v619 = vld [vmem:[%s3 + $0xb0] sm:$0xff]
        %v620 = vld [vmem:[%s3 + $0xb8] sm:$0xff]
        %v621 = vld [vmem:[%s3 + $0xc0] sm:$0xff]
        %v622 = vld [vmem:[%s3 + $0xc8] sm:$0x1]
        %v623 = vlaneseq
        %v624 = vshrl.u32 %v623, 7
        %v625 = vsub.s32 0, %v624
        %v626 = vrot.slane %v622, %v625
        %vm627 = vcmask 523264
        %v629 = vsel %vm627, %v613, 0
        %631 = vmatprep.subr.mxu0 0.0
        %632 = vmatpush1.msra.mxu0 %v614
        %633 = vmatprep.subr.mxu0 0.0
        %634 = vmatpush1.msra.mxu0 %v615
        %635 = vmatprep.subr.mxu0 0.0
        %636 = vmatpush1.msra.mxu0 %v616
        %637 = vmatprep.subr.mxu0 0.0
        %638 = vmatpush1.msra.mxu0 %v617
        %639 = vmatprep.subr.mxu0 0.0
        %640 = vmatpush1.msra.mxu0 %v618
        %641 = vmatprep.subr.mxu0 0.0
        %642 = vmatpush1.msra.mxu0 %v619
        %643 = vmatprep.subr.mxu0 0.0
        %644 = vmatpush1.msra.mxu0 %v620
        %645 = vmatprep.subr.mxu0 0.0
        %646 = vmatpush1.msra.mxu0 %v621
        %647 = vmatprep.subr.mxu0 0.0
        %648 = vmatpush1.msra.mxu0 0.0
        %649 = vmatprep.subr.mxu0 0.0
        %650 = vmatpush1.msra.mxu0 0.0
        %651 = vmatprep.subr.mxu0 0.0
        %652 = vmatpush1.msra.mxu0 0.0
        %653 = vmatprep.subr.mxu0 0.0
        %654 = vmatpush1.msra.mxu0 0.0
        %655 = vmatprep.subr.mxu0 0.0
        %656 = vmatpush1.msra.mxu0 0.0
        %657 = vmatprep.subr.mxu0 0.0
        %658 = vmatpush1.msra.mxu0 0.0
        %659 = vmatprep.subr.mxu0 0.0
        %660 = vmatpush1.msra.mxu0 0.0
        %661 = vmatprep.subr.mxu0 0.0
        %662 = vmatpush1.msra.mxu0 0.0
        %663 = vmatprep.subr.mxu0 0.0
        %664 = vmatpush1.msra.mxu0 0.0
        %665 = vmatprep.subr.mxu0 0.0
        %666 = vmatpush1.msra.mxu0 0.0
        %667 = vmatprep.subr.mxu0 0.0
        %668 = vmatpush1.msra.mxu0 0.0
        %669 = vmatprep.subr.mxu0 0.0
        %670 = vmatpush1.msra.mxu0 0.0
        %671 = vmatprep.subr.mxu0 0.0
        %672 = vmatpush1.msra.mxu0 0.0
        %673 = vmatprep.subr.mxu0 0.0
        %674 = vmatpush1.msra.mxu0 0.0
        %675 = vmatprep.subr.mxu0 0.0
        %676 = vmatpush1.msra.mxu0 0.0
        %677 = vmatprep.subr.mxu0 0.0
        %678 = vmatpush1.msra.mxu0 0.0
        %679 = vmatprep.subr.mxu0 0.0
        %680 = vmatpush1.msra.mxu0 0.0
        %681 = vmatprep.subr.mxu0 0.0
        %682 = vmatpush1.msra.mxu0 0.0
        %683 = vmatprep.subr.mxu0 0.0
        %684 = vmatpush1.msra.mxu0 0.0
        %685 = vmatprep.subr.mxu0 0.0
        %686 = vmatpush1.msra.mxu0 0.0
        %687 = vmatprep.subr.mxu0 0.0
        %688 = vmatpush1.msra.mxu0 0.0
        %689 = vmatprep.subr.mxu0 0.0
        %690 = vmatpush1.msra.mxu0 0.0
        %691 = vmatprep.subr.mxu0 0.0
        %692 = vmatpush1.msra.mxu0 0.0
        %693 = vmatprep.subr.mxu0 0.0
        %694 = vmatpush1.msra.mxu0 0.0
        %695 = vmatprep.mubr.f32.mxu0 0.0
        %696 = vmatmul.mubr.f32.gmra.mrb[0].mxu0 %v629
        %v697 = vpop.f32.mrb[0].mxu0
        %v698 = vadd.f32 %v626, %v697
        %v699 = vpop.f32.mrb[0].mxu0
        %700 = vdwg.mxu0
        %vm701 = vcmp.gt.f32.partialorder %v698, 0.0
        %v702 = vmin.f32 %v698, 0.0
        %v703 = vmul.f32 %v702, 1.442695
        %v704 = vpow.pop %v703
        %v705 = vsub.f32 %v704, 1.0
        %v706 = vsel %vm701, %v698, %v705
        %v707 = vld [vmem:[%s3 + $0x128] sm:$0xff]
        %v709 = vsel %vm337, %v707, 0
        %711 = vmatprep.subr.mxu0 0.0
        %712 = vmatpush1.msra.mxu0 %v706
        %713 = vmatprep.subr.mxu0 0.0
        %714 = vmatpush1.msra.mxu0 0.0
        %715 = vmatprep.subr.mxu0 0.0
        %716 = vmatpush1.msra.mxu0 0.0
        %717 = vmatprep.subr.mxu0 0.0
        %718 = vmatpush1.msra.mxu0 0.0
        %719 = vmatprep.subr.mxu0 0.0
        %720 = vmatpush1.msra.mxu0 0.0
        %721 = vmatprep.subr.mxu0 0.0
        %722 = vmatpush1.msra.mxu0 0.0
        %723 = vmatprep.subr.mxu0 0.0
        %724 = vmatpush1.msra.mxu0 0.0
        %725 = vmatprep.subr.mxu0 0.0
        %726 = vmatpush1.msra.mxu0 0.0
        %727 = vmatprep.subr.mxu0 0.0
        %728 = vmatpush1.msra.mxu0 0.0
        %729 = vmatprep.subr.mxu0 0.0
        %730 = vmatpush1.msra.mxu0 0.0
        %731 = vmatprep.subr.mxu0 0.0
        %732 = vmatpush1.msra.mxu0 0.0
        %733 = vmatprep.subr.mxu0 0.0
        %734 = vmatpush1.msra.mxu0 0.0
        %735 = vmatprep.subr.mxu0 0.0
        %736 = vmatpush1.msra.mxu0 0.0
        %737 = vmatprep.subr.mxu0 0.0
        %738 = vmatpush1.msra.mxu0 0.0
        %739 = vmatprep.subr.mxu0 0.0
        %740 = vmatpush1.msra.mxu0 0.0
        %741 = vmatprep.subr.mxu0 0.0
        %742 = vmatpush1.msra.mxu0 0.0
        %743 = vmatprep.subr.mxu0 0.0
        %744 = vmatpush1.msra.mxu0 0.0
        %745 = vmatprep.subr.mxu0 0.0
        %746 = vmatpush1.msra.mxu0 0.0
        %747 = vmatprep.subr.mxu0 0.0
        %748 = vmatpush1.msra.mxu0 0.0
        %749 = vmatprep.subr.mxu0 0.0
        %750 = vmatpush1.msra.mxu0 0.0
        %751 = vmatprep.subr.mxu0 0.0
        %752 = vmatpush1.msra.mxu0 0.0
        %753 = vmatprep.subr.mxu0 0.0
        %754 = vmatpush1.msra.mxu0 0.0
        %755 = vmatprep.subr.mxu0 0.0
        %756 = vmatpush1.msra.mxu0 0.0
        %757 = vmatprep.subr.mxu0 0.0
        %758 = vmatpush1.msra.mxu0 0.0
        %759 = vmatprep.subr.mxu0 0.0
        %760 = vmatpush1.msra.mxu0 0.0
        %761 = vmatprep.subr.mxu0 0.0
        %762 = vmatpush1.msra.mxu0 0.0
        %763 = vmatprep.subr.mxu0 0.0
        %764 = vmatpush1.msra.mxu0 0.0
        %765 = vmatprep.subr.mxu0 0.0
        %766 = vmatpush1.msra.mxu0 0.0
        %767 = vmatprep.subr.mxu0 0.0
        %768 = vmatpush1.msra.mxu0 0.0
        %769 = vmatprep.subr.mxu0 0.0
        %770 = vmatpush1.msra.mxu0 0.0
        %771 = vmatprep.subr.mxu0 0.0
        %772 = vmatpush1.msra.mxu0 0.0
        %773 = vmatprep.subr.mxu0 0.0
        %774 = vmatpush1.msra.mxu0 0.0
        %775 = vmatprep.mubr.f32.mxu0 0.0
        %776 = vmatmul.mubr.f32.gmra.mrb[0].mxu0 %v709
        %v777 = vpop.f32.mrb[0].mxu0
        %v778 = vadd.f32 0.0, %v777
        %v779 = vpop.f32.mrb[0].mxu0
        %780 = vdwg.mxu0
        %v782 = vrot.slane %v778, 4
        %783 = vrot.lane.b32.xlu0 %v782, 32
        %v784 = vpop.permute.xlu0 %783
        %v786 = vsel %vm612, %v778, %v784
        %v787 = vld [vmem:[%s3 + $0xe0] sm:$0xff]
        %v788 = vld [vmem:[%s3 + $0xe8] sm:$0xff]
        %v789 = vld [vmem:[%s3 + $0xf0] sm:$0xff]
        %v790 = vld [vmem:[%s3 + $0xf8] sm:$0xff]
        %v791 = vld [vmem:[%s3 + $0x100] sm:$0xff]
        %v792 = vld [vmem:[%s3 + $0x108] sm:$0xff]
        %v793 = vld [vmem:[%s3 + $0x110] sm:$0xff]
        %v794 = vld [vmem:[%s3 + $0x118] sm:$0xff]
        %v795 = vld [vmem:[%s3 + $0x120] sm:$0x1]
        %v796 = vlaneseq
        %v797 = vshrl.u32 %v796, 7
        %v798 = vsub.s32 0, %v797
        %v799 = vrot.slane %v795, %v798
        %v801 = vsel %vm627, %v786, 0
        %803 = vmatprep.subr.mxu0 0.0
        %804 = vmatpush1.msra.mxu0 %v787
        %805 = vmatprep.subr.mxu0 0.0
        %806 = vmatpush1.msra.mxu0 %v788
        %807 = vmatprep.subr.mxu0 0.0
        %808 = vmatpush1.msra.mxu0 %v789
        %809 = vmatprep.subr.mxu0 0.0
        %810 = vmatpush1.msra.mxu0 %v790
        %811 = vmatprep.subr.mxu0 0.0
        %812 = vmatpush1.msra.mxu0 %v791
        %813 = vmatprep.subr.mxu0 0.0
        %814 = vmatpush1.msra.mxu0 %v792
        %815 = vmatprep.subr.mxu0 0.0
        %816 = vmatpush1.msra.mxu0 %v793
        %817 = vmatprep.subr.mxu0 0.0
        %818 = vmatpush1.msra.mxu0 %v794
        %819 = vmatprep.subr.mxu0 0.0
        %820 = vmatpush1.msra.mxu0 0.0
        %821 = vmatprep.subr.mxu0 0.0
        %822 = vmatpush1.msra.mxu0 0.0
        %823 = vmatprep.subr.mxu0 0.0
        %824 = vmatpush1.msra.mxu0 0.0
        %825 = vmatprep.subr.mxu0 0.0
        %826 = vmatpush1.msra.mxu0 0.0
        %827 = vmatprep.subr.mxu0 0.0
        %828 = vmatpush1.msra.mxu0 0.0
        %829 = vmatprep.subr.mxu0 0.0
        %830 = vmatpush1.msra.mxu0 0.0
        %831 = vmatprep.subr.mxu0 0.0
        %832 = vmatpush1.msra.mxu0 0.0
        %833 = vmatprep.subr.mxu0 0.0
        %834 = vmatpush1.msra.mxu0 0.0
        %835 = vmatprep.subr.mxu0 0.0
        %836 = vmatpush1.msra.mxu0 0.0
        %837 = vmatprep.subr.mxu0 0.0
        %838 = vmatpush1.msra.mxu0 0.0
        %839 = vmatprep.subr.mxu0 0.0
        %840 = vmatpush1.msra.mxu0 0.0
        %841 = vmatprep.subr.mxu0 0.0
        %842 = vmatpush1.msra.mxu0 0.0
        %843 = vmatprep.subr.mxu0 0.0
        %844 = vmatpush1.msra.mxu0 0.0
        %845 = vmatprep.subr.mxu0 0.0
        %846 = vmatpush1.msra.mxu0 0.0
        %847 = vmatprep.subr.mxu0 0.0
        %848 = vmatpush1.msra.mxu0 0.0
        %849 = vmatprep.subr.mxu0 0.0
        %850 = vmatpush1.msra.mxu0 0.0
        %851 = vmatprep.subr.mxu0 0.0
        %852 = vmatpush1.msra.mxu0 0.0
        %853 = vmatprep.subr.mxu0 0.0
        %854 = vmatpush1.msra.mxu0 0.0
        %855 = vmatprep.subr.mxu0 0.0
        %856 = vmatpush1.msra.mxu0 0.0
        %857 = vmatprep.subr.mxu0 0.0
        %858 = vmatpush1.msra.mxu0 0.0
        %859 = vmatprep.subr.mxu0 0.0
        %860 = vmatpush1.msra.mxu0 0.0
        %861 = vmatprep.subr.mxu0 0.0
        %862 = vmatpush1.msra.mxu0 0.0
        %863 = vmatprep.subr.mxu0 0.0
        %864 = vmatpush1.msra.mxu0 0.0
        %865 = vmatprep.subr.mxu0 0.0
        %866 = vmatpush1.msra.mxu0 0.0
        %867 = vmatprep.mubr.f32.mxu0 0.0
        %868 = vmatmul.mubr.f32.gmra.mrb[0].mxu0 %v801
        %v869 = vpop.f32.mrb[0].mxu0
        %v870 = vadd.f32 %v799, %v869
        %v871 = vpop.f32.mrb[0].mxu0
        %872 = vdwg.mxu0
        %vm873 = vcmp.gt.f32.partialorder %v870, 0.0
        %v874 = vmin.f32 %v870, 0.0
        %v875 = vmul.f32 %v874, 1.442695
        %v876 = vpow.pop %v875
        %v877 = vsub.f32 %v876, 1.0
        %v878 = vsel %vm873, %v870, %v877
        %v879 = vld [vmem:[%s3 + $0x178] sm:$0xf]
        %v881 = vsel %vm260, %v879, 0
        %vm883 = vcmask 1043456
        %v885 = vsel %vm883, %v878, 0
        %887 = vmatprep.subr.mxu0 0.0
        %888 = vmatpush1.msra.mxu0 %v885
        %889 = vmatprep.subr.mxu0 0.0
        %890 = vmatpush1.msra.mxu0 0.0
        %891 = vmatprep.subr.mxu0 0.0
        %892 = vmatpush1.msra.mxu0 0.0
        %893 = vmatprep.subr.mxu0 0.0
        %894 = vmatpush1.msra.mxu0 0.0
        %895 = vmatprep.subr.mxu0 0.0
        %896 = vmatpush1.msra.mxu0 0.0
        %897 = vmatprep.subr.mxu0 0.0
        %898 = vmatpush1.msra.mxu0 0.0
        %899 = vmatprep.subr.mxu0 0.0
        %900 = vmatpush1.msra.mxu0 0.0
        %901 = vmatprep.subr.mxu0 0.0
        %902 = vmatpush1.msra.mxu0 0.0
        %903 = vmatprep.subr.mxu0 0.0
        %904 = vmatpush1.msra.mxu0 0.0
        %905 = vmatprep.subr.mxu0 0.0
        %906 = vmatpush1.msra.mxu0 0.0
        %907 = vmatprep.subr.mxu0 0.0
        %908 = vmatpush1.msra.mxu0 0.0
        %909 = vmatprep.subr.mxu0 0.0
        %910 = vmatpush1.msra.mxu0 0.0
        %911 = vmatprep.subr.mxu0 0.0
        %912 = vmatpush1.msra.mxu0 0.0
        %913 = vmatprep.subr.mxu0 0.0
        %914 = vmatpush1.msra.mxu0 0.0
        %915 = vmatprep.subr.mxu0 0.0
        %916 = vmatpush1.msra.mxu0 0.0
        %917 = vmatprep.subr.mxu0 0.0
        %918 = vmatpush1.msra.mxu0 0.0
        %919 = vmatprep.subr.mxu0 0.0
        %920 = vmatpush1.msra.mxu0 0.0
        %921 = vmatprep.subr.mxu0 0.0
        %922 = vmatpush1.msra.mxu0 0.0
        %923 = vmatprep.subr.mxu0 0.0
        %924 = vmatpush1.msra.mxu0 0.0
        %925 = vmatprep.subr.mxu0 0.0
        %926 = vmatpush1.msra.mxu0 0.0
        %927 = vmatprep.subr.mxu0 0.0
        %928 = vmatpush1.msra.mxu0 0.0
        %929 = vmatprep.subr.mxu0 0.0
        %930 = vmatpush1.msra.mxu0 0.0
        %931 = vmatprep.subr.mxu0 0.0
        %932 = vmatpush1.msra.mxu0 0.0
        %933 = vmatprep.subr.mxu0 0.0
        %934 = vmatpush1.msra.mxu0 0.0
        %935 = vmatprep.subr.mxu0 0.0
        %936 = vmatpush1.msra.mxu0 0.0
        %937 = vmatprep.subr.mxu0 0.0
        %938 = vmatpush1.msra.mxu0 0.0
        %939 = vmatprep.subr.mxu0 0.0
        %940 = vmatpush1.msra.mxu0 0.0
        %941 = vmatprep.subr.mxu0 0.0
        %942 = vmatpush1.msra.mxu0 0.0
        %943 = vmatprep.subr.mxu0 0.0
        %944 = vmatpush1.msra.mxu0 0.0
        %945 = vmatprep.subr.mxu0 0.0
        %946 = vmatpush1.msra.mxu0 0.0
        %947 = vmatprep.subr.mxu0 0.0
        %948 = vmatpush1.msra.mxu0 0.0
        %949 = vmatprep.subr.mxu0 0.0
        %950 = vmatpush1.msra.mxu0 0.0
        %951 = vmatprep.mubr.f32.mxu0 0.0
        %952 = vmatmul.mubr.f32.gmra.mrb[0].mxu0 %v881
        %v953 = vpop.f32.mrb[0].mxu0
        %v954 = vadd.f32 0.0, %v953
        %v955 = vpop.f32.mrb[0].mxu0
        %956 = vdwg.mxu0
        %v958 = vrot.slane %v954, 2
        %959 = vrot.lane.b32.xlu0 %v958, 32
        %v960 = vpop.permute.xlu0 %959
        %v962 = vsel %vm612, %v954, %v960
        %v963 = vld [vmem:[%s3 + $0x130] sm:$0xff]
        %v964 = vld [vmem:[%s3 + $0x138] sm:$0xff]
        %v965 = vld [vmem:[%s3 + $0x140] sm:$0xff]
        %v966 = vld [vmem:[%s3 + $0x148] sm:$0xff]
        %v967 = vld [vmem:[%s3 + $0x150] sm:$0xff]
        %v968 = vld [vmem:[%s3 + $0x158] sm:$0xff]
        %v969 = vld [vmem:[%s3 + $0x160] sm:$0xff]
        %v970 = vld [vmem:[%s3 + $0x168] sm:$0xff]
        %v971 = vld [vmem:[%s3 + $0x170] sm:$0x1]
        %v972 = vlaneseq
        %v973 = vshrl.u32 %v972, 7
        %v974 = vsub.s32 0, %v973
        %v975 = vrot.slane %v971, %v974
        %v977 = vsel %vm627, %v962, 0
        %979 = vmatprep.subr.mxu0 0.0
        %980 = vmatpush1.msra.mxu0 %v963
        %981 = vmatprep.subr.mxu0 0.0
        %982 = vmatpush1.msra.mxu0 %v964
        %983 = vmatprep.subr.mxu0 0.0
        %984 = vmatpush1.msra.mxu0 %v965
        %985 = vmatprep.subr.mxu0 0.0
        %986 = vmatpush1.msra.mxu0 %v966
        %987 = vmatprep.subr.mxu0 0.0
        %988 = vmatpush1.msra.mxu0 %v967
        %989 = vmatprep.subr.mxu0 0.0
        %990 = vmatpush1.msra.mxu0 %v968
        %991 = vmatprep.subr.mxu0 0.0
        %992 = vmatpush1.msra.mxu0 %v969
        %993 = vmatprep.subr.mxu0 0.0
        %994 = vmatpush1.msra.mxu0 %v970
        %995 = vmatprep.subr.mxu0 0.0
        %996 = vmatpush1.msra.mxu0 0.0
        %997 = vmatprep.subr.mxu0 0.0
        %998 = vmatpush1.msra.mxu0 0.0
        %999 = vmatprep.subr.mxu0 0.0
        %1000 = vmatpush1.msra.mxu0 0.0
        %1001 = vmatprep.subr.mxu0 0.0
        %1002 = vmatpush1.msra.mxu0 0.0
        %1003 = vmatprep.subr.mxu0 0.0
        %1004 = vmatpush1.msra.mxu0 0.0
        %1005 = vmatprep.subr.mxu0 0.0
        %1006 = vmatpush1.msra.mxu0 0.0
        %1007 = vmatprep.subr.mxu0 0.0
        %1008 = vmatpush1.msra.mxu0 0.0
        %1009 = vmatprep.subr.mxu0 0.0
        %1010 = vmatpush1.msra.mxu0 0.0
        %1011 = vmatprep.subr.mxu0 0.0
        %1012 = vmatpush1.msra.mxu0 0.0
        %1013 = vmatprep.subr.mxu0 0.0
        %1014 = vmatpush1.msra.mxu0 0.0
        %1015 = vmatprep.subr.mxu0 0.0
        %1016 = vmatpush1.msra.mxu0 0.0
        %1017 = vmatprep.subr.mxu0 0.0
        %1018 = vmatpush1.msra.mxu0 0.0
        %1019 = vmatprep.subr.mxu0 0.0
        %1020 = vmatpush1.msra.mxu0 0.0
        %1021 = vmatprep.subr.mxu0 0.0
        %1022 = vmatpush1.msra.mxu0 0.0
        %1023 = vmatprep.subr.mxu0 0.0
        %1024 = vmatpush1.msra.mxu0 0.0
        %1025 = vmatprep.subr.mxu0 0.0
        %1026 = vmatpush1.msra.mxu0 0.0
        %1027 = vmatprep.subr.mxu0 0.0
        %1028 = vmatpush1.msra.mxu0 0.0
        %1029 = vmatprep.subr.mxu0 0.0
        %1030 = vmatpush1.msra.mxu0 0.0
        %1031 = vmatprep.subr.mxu0 0.0
        %1032 = vmatpush1.msra.mxu0 0.0
        %1033 = vmatprep.subr.mxu0 0.0
        %1034 = vmatpush1.msra.mxu0 0.0
        %1035 = vmatprep.subr.mxu0 0.0
        %1036 = vmatpush1.msra.mxu0 0.0
        %1037 = vmatprep.subr.mxu0 0.0
        %1038 = vmatpush1.msra.mxu0 0.0
        %1039 = vmatprep.subr.mxu0 0.0
        %1040 = vmatpush1.msra.mxu0 0.0
        %1041 = vmatprep.subr.mxu0 0.0
        %1042 = vmatpush1.msra.mxu0 0.0
        %1043 = vmatprep.mubr.f32.mxu0 0.0
        %1044 = vmatmul.mubr.f32.gmra.mrb[0].mxu0 %v977
        %v1045 = vpop.f32.mrb[0].mxu0
        %v1046 = vadd.f32 %v975, %v1045
        %v1047 = vpop.f32.mrb[0].mxu0
        %1048 = vdwg.mxu0
        %vm1049 = vcmp.gt.f32.partialorder %v1046, 0.0
        %v1050 = vmin.f32 %v1046, 0.0
        %v1051 = vmul.f32 %v1050, 1.442695
        %v1052 = vpow.pop %v1051
        %v1053 = vsub.f32 %v1052, 1.0
        %v1054 = vsel %vm1049, %v1046, %v1053
        %v1056 = vrot.slane %v1054, 4
        %v1058 = vsel %vm883, %v878, %v1056
        %v1059 = vld [vmem:[#allocation2 + $0x20] sm:$0xff]
        %v1060 = vld [vmem:[#allocation2 + $0x28] sm:$0xff]
        %v1061 = vld [vmem:[#allocation2 + $0x30] sm:$0xff]
        %v1062 = vld [vmem:[#allocation2 + $0x38] sm:$0xff]
        %v1063 = vld [vmem:[#allocation2 + $0x40] sm:$0x1]
        %v1064 = vlaneseq
        %v1065 = vshrl.u32 %v1064, 7
        %v1066 = vsub.s32 0, %v1065
        %v1067 = vrot.slane %v1063, %v1066
        %v1069 = vsel %vm612, %v706, 0
        %v1072 = vsel %vm612, %v1058, 0
        %1074 = vmatprep.subr.mxu0 0.0
        %1075 = vmatpush1.msra.mxu0 %v1059
        %1076 = vmatprep.subr.mxu0 0.0
        %1077 = vmatpush1.msra.mxu0 %v1060
        %1078 = vmatprep.subr.mxu0 0.0
        %1079 = vmatpush1.msra.mxu0 %v1061
        %1080 = vmatprep.subr.mxu0 0.0
        %1081 = vmatpush1.msra.mxu0 %v1062
        %1082 = vmatprep.subr.mxu0 0.0
        %1083 = vmatpush1.msra.mxu0 0.0
        %1084 = vmatprep.subr.mxu0 0.0
        %1085 = vmatpush1.msra.mxu0 0.0
        %1086 = vmatprep.subr.mxu0 0.0
        %1087 = vmatpush1.msra.mxu0 0.0
        %1088 = vmatprep.subr.mxu0 0.0
        %1089 = vmatpush1.msra.mxu0 0.0
        %1090 = vmatprep.subr.mxu0 0.0
        %1091 = vmatpush1.msra.mxu0 0.0
        %1092 = vmatprep.subr.mxu0 0.0
        %1093 = vmatpush1.msra.mxu0 0.0
        %1094 = vmatprep.subr.mxu0 0.0
        %1095 = vmatpush1.msra.mxu0 0.0
        %1096 = vmatprep.subr.mxu0 0.0
        %1097 = vmatpush1.msra.mxu0 0.0
        %1098 = vmatprep.subr.mxu0 0.0
        %1099 = vmatpush1.msra.mxu0 0.0
        %1100 = vmatprep.subr.mxu0 0.0
        %1101 = vmatpush1.msra.mxu0 0.0
        %1102 = vmatprep.subr.mxu0 0.0
        %1103 = vmatpush1.msra.mxu0 0.0
        %1104 = vmatprep.subr.mxu0 0.0
        %1105 = vmatpush1.msra.mxu0 0.0
        %1106 = vmatprep.subr.mxu0 0.0
        %1107 = vmatpush1.msra.mxu0 0.0
        %1108 = vmatprep.subr.mxu0 0.0
        %1109 = vmatpush1.msra.mxu0 0.0
        %1110 = vmatprep.subr.mxu0 0.0
        %1111 = vmatpush1.msra.mxu0 0.0
        %1112 = vmatprep.subr.mxu0 0.0
        %1113 = vmatpush1.msra.mxu0 0.0
        %1114 = vmatprep.subr.mxu0 0.0
        %1115 = vmatpush1.msra.mxu0 0.0
        %1116 = vmatprep.subr.mxu0 0.0
        %1117 = vmatpush1.msra.mxu0 0.0
        %1118 = vmatprep.subr.mxu0 0.0
        %1119 = vmatpush1.msra.mxu0 0.0
        %1120 = vmatprep.subr.mxu0 0.0
        %1121 = vmatpush1.msra.mxu0 0.0
        %1122 = vmatprep.subr.mxu0 0.0
        %1123 = vmatpush1.msra.mxu0 0.0
        %1124 = vmatprep.subr.mxu0 0.0
        %1125 = vmatpush1.msra.mxu0 0.0
        %1126 = vmatprep.subr.mxu0 0.0
        %1127 = vmatpush1.msra.mxu0 0.0
        %1128 = vmatprep.subr.mxu0 0.0
        %1129 = vmatpush1.msra.mxu0 0.0
        %1130 = vmatprep.subr.mxu0 0.0
        %1131 = vmatpush1.msra.mxu0 0.0
        %1132 = vmatprep.subr.mxu0 0.0
        %1133 = vmatpush1.msra.mxu0 0.0
        %1134 = vmatprep.subr.mxu0 0.0
        %1135 = vmatpush1.msra.mxu0 0.0
        %1136 = vmatprep.subr.mxu0 0.0
        %1137 = vmatpush1.msra.mxu0 0.0
        %1138 = vmatprep.mubr.f32.mxu0 0.0
        %1139 = vmatmul.mubr.f32.gmra.mrb[0].mxu0 %v1069
        %v1140 = vpop.f32.mrb[0].mxu0
        %v1141 = vadd.f32 %v1067, %v1140
        %v1142 = vpop.f32.mrb[0].mxu0
        %1143 = vmatprep.mubr.f32.mxu0 0.0
        %1144 = vmatmul.mubr.f32.gmra.mrb[0].mxu0 %v1072
        %v1145 = vpop.f32.mrb[0].mxu0
        %v1146 = vadd.f32 %v1067, %v1145
        %v1147 = vpop.f32.mrb[0].mxu0
        %1148 = vdwg.mxu0
        %1149 = vadd.xlane.f32.xlu0 %v421
        %v1150 = vpop.xlane.xlu0 %1149
        %1151 = vadd.xlane.f32.xlu0 %v426
        %v1152 = vpop.xlane.xlu0 %1151
        %1153 = vadd.xlane.f32.xlu0 %v1141
        %v1154 = vpop.xlane.xlu0 %1153
        %vm1155 = vcmask 1045504
        %v1156 = vsel %vm1155, %v1146, 0.0
        %1157 = vadd.xlane.f32.xlu0 %v1156
        %v1158 = vpop.xlane.xlu0 %1157
        %v1159 = vrcp.pop 128.0
        %v1160 = vmul.f32 %v1150, %v1159
        %v1161 = vmul.f32 %v1152, %v1159
        %v1162 = vmul.f32 %v1154, %v1159
        %v1163 = vmul.f32 %v1158, %v1159
        %v1164 = vsub.f32 %v421, %v1160
        %v1165 = vsub.f32 %v426, %v1161
        %v1166 = vsub.f32 %v1141, %v1162
        %v1167 = vsub.f32 %v1146, %v1163
        %v1168 = vmul.f32 %v1164, %v1164
        %v1169 = vmul.f32 %v1165, %v1165
        %v1170 = vmul.f32 %v1166, %v1166
        %v1171 = vmul.f32 %v1167, %v1167
        %1172 = vadd.xlane.f32.xlu0 %v1168
        %v1173 = vpop.xlane.xlu0 %1172
        %1174 = vadd.xlane.f32.xlu0 %v1169
        %v1175 = vpop.xlane.xlu0 %1174
        %1176 = vadd.xlane.f32.xlu0 %v1170
        %v1177 = vpop.xlane.xlu0 %1176
        %v1178 = vsel %vm1155, %v1171, 0.0
        %1179 = vadd.xlane.f32.xlu0 %v1178
        %v1180 = vpop.xlane.xlu0 %1179
        %v1181 = vmul.f32 %v1173, %v1159
        %v1182 = vmul.f32 %v1175, %v1159
        %v1183 = vmul.f32 %v1177, %v1159
        %v1184 = vmul.f32 %v1180, %v1159
        %v1185 = vadd.f32 %v1181, 1e-05
        %v1186 = vadd.f32 %v1182, 1e-05
        %v1187 = vadd.f32 %v1183, 1e-05
        %v1188 = vadd.f32 %v1184, 1e-05
        %v1189 = vrsqrt.pop %v1185
        %v1190 = vrsqrt.pop %v1186
        %v1191 = vrsqrt.pop %v1187
        %v1192 = vrsqrt.pop %v1188
        %v1193 = vmul.f32 %v1164, %v1189
        %v1194 = vmul.f32 %v1165, %v1190
        %v1195 = vmul.f32 %v1166, %v1191
        %v1196 = vmul.f32 %v1167, %v1192
        %v1197 = vld [vmem:[#allocation2 + $0x48] sm:$0x1]
        %v1198 = vlaneseq
        %v1199 = vshrl.u32 %v1198, 7
        %v1200 = vsub.s32 0, %v1199
        %v1201 = vrot.slane %v1197, %v1200
        %v1202 = vmul.f32 %v1193, %v1201
        %v1203 = vmul.f32 %v1194, %v1201
        %v1204 = vmul.f32 %v1195, %v1201
        %v1205 = vmul.f32 %v1196, %v1201
        %v1206 = vld [vmem:[#allocation2 + $0x50] sm:$0x1]
        %v1207 = vlaneseq
        %v1208 = vshrl.u32 %v1207, 7
        %v1209 = vsub.s32 0, %v1208
        %v1210 = vrot.slane %v1206, %v1209
        %v1211 = vadd.f32 %v1202, %v1210
        %v1212 = vadd.f32 %v1203, %v1210
        %v1213 = vadd.f32 %v1204, %v1210
        %v1214 = vadd.f32 %v1205, %v1210
        %v1215 = vld [vmem:[#allocation2 + $0x58] sm:$0xff]
        %v1216 = vld [vmem:[#allocation2 + $0x60] sm:$0xff]
        %v1217 = vld [vmem:[#allocation2 + $0x68] sm:$0xff]
        %v1218 = vld [vmem:[#allocation2 + $0x70] sm:$0xff]
        %v1219 = vld [vmem:[#allocation2 + $0x78] sm:$0xff]
        %v1220 = vld [vmem:[#allocation2 + $0x80] sm:$0xff]
        %v1221 = vld [vmem:[#allocation2 + $0x88] sm:$0xff]
        %v1222 = vld [vmem:[#allocation2 + $0x90] sm:$0xff]
        %v1223 = vld [vmem:[#allocation2 + $0x98] sm:$0xff]
        %v1224 = vld [vmem:[#allocation2 + $0xa0] sm:$0xff]
        %v1225 = vld [vmem:[#allocation2 + $0xa8] sm:$0xff]
        %v1226 = vld [vmem:[#allocation2 + $0xb0] sm:$0xff]
        %v1227 = vld [vmem:[#allocation2 + $0xb8] sm:$0xff]
        %v1228 = vld [vmem:[#allocation2 + $0xc0] sm:$0xff]
        %v1229 = vld [vmem:[#allocation2 + $0xc8] sm:$0xff]
        %v1230 = vld [vmem:[#allocation2 + $0xd0] sm:$0xff]
        %1231 = vmatprep.subr.mxu0 0.0
        %1232 = vmatpush1.msra.mxu0 %v1215
        %1233 = vmatprep.subr.mxu0 0.0
        %1234 = vmatpush1.msra.mxu0 %v1216
        %1235 = vmatprep.subr.mxu0 0.0
        %1236 = vmatpush1.msra.mxu0 %v1217
        %1237 = vmatprep.subr.mxu0 0.0
        %1238 = vmatpush1.msra.mxu0 %v1218
        %1239 = vmatprep.subr.mxu0 0.0
        %1240 = vmatpush1.msra.mxu0 %v1219
        %1241 = vmatprep.subr.mxu0 0.0
        %1242 = vmatpush1.msra.mxu0 %v1220
        %1243 = vmatprep.subr.mxu0 0.0
        %1244 = vmatpush1.msra.mxu0 %v1221
        %1245 = vmatprep.subr.mxu0 0.0
        %1246 = vmatpush1.msra.mxu0 %v1222
        %1247 = vmatprep.subr.mxu0 0.0
        %1248 = vmatpush1.msra.mxu0 %v1223
        %1249 = vmatprep.subr.mxu0 0.0
        %1250 = vmatpush1.msra.mxu0 %v1224
        %1251 = vmatprep.subr.mxu0 0.0
        %1252 = vmatpush1.msra.mxu0 %v1225
        %1253 = vmatprep.subr.mxu0 0.0
        %1254 = vmatpush1.msra.mxu0 %v1226
        %1255 = vmatprep.subr.mxu0 0.0
        %1256 = vmatpush1.msra.mxu0 %v1227
        %1257 = vmatprep.subr.mxu0 0.0
        %1258 = vmatpush1.msra.mxu0 %v1228
        %1259 = vmatprep.subr.mxu0 0.0
        %1260 = vmatpush1.msra.mxu0 %v1229
        %1261 = vmatprep.subr.mxu0 0.0
        %1262 = vmatpush1.msra.mxu0 %v1230
        %1263 = vmatprep.subr.mxu0 0.0
        %1264 = vmatpush1.msra.mxu0 0.0
        %1265 = vmatprep.subr.mxu0 0.0
        %1266 = vmatpush1.msra.mxu0 0.0
        %1267 = vmatprep.subr.mxu0 0.0
        %1268 = vmatpush1.msra.mxu0 0.0
        %1269 = vmatprep.subr.mxu0 0.0
        %1270 = vmatpush1.msra.mxu0 0.0
        %1271 = vmatprep.subr.mxu0 0.0
        %1272 = vmatpush1.msra.mxu0 0.0
        %1273 = vmatprep.subr.mxu0 0.0
        %1274 = vmatpush1.msra.mxu0 0.0
        %1275 = vmatprep.subr.mxu0 0.0
        %1276 = vmatpush1.msra.mxu0 0.0
        %1277 = vmatprep.subr.mxu0 0.0
        %1278 = vmatpush1.msra.mxu0 0.0
        %1279 = vmatprep.subr.mxu0 0.0
        %1280 = vmatpush1.msra.mxu0 0.0
        %1281 = vmatprep.subr.mxu0 0.0
        %1282 = vmatpush1.msra.mxu0 0.0
        %1283 = vmatprep.subr.mxu0 0.0
        %1284 = vmatpush1.msra.mxu0 0.0
        %1285 = vmatprep.subr.mxu0 0.0
        %1286 = vmatpush1.msra.mxu0 0.0
        %1287 = vmatprep.subr.mxu0 0.0
        %1288 = vmatpush1.msra.mxu0 0.0
        %1289 = vmatprep.subr.mxu0 0.0
        %1290 = vmatpush1.msra.mxu0 0.0
        %1291 = vmatprep.subr.mxu0 0.0
        %1292 = vmatpush1.msra.mxu0 0.0
        %1293 = vmatprep.subr.mxu0 0.0
        %1294 = vmatpush1.msra.mxu0 0.0
        %1295 = vmatprep.mubr.f32.mxu0 0.0
        %1296 = vmatmul.mubr.f32.gmra.mrb[0].mxu0 %v1211
        %v1297 = vpop.f32.mrb[0].mxu0
        %v1298 = vadd.f32 0.0, %v1297
        %v1299 = vpop.f32.mrb[0].mxu0
        %1300 = vmatprep.mubr.f32.mxu0 0.0
        %1301 = vmatmul.mubr.f32.gmra.mrb[0].mxu0 %v1212
        %v1302 = vpop.f32.mrb[0].mxu0
        %v1303 = vadd.f32 0.0, %v1302
        %v1304 = vpop.f32.mrb[0].mxu0
        %1305 = vmatprep.mubr.f32.mxu0 0.0
        %1306 = vmatmul.mubr.f32.gmra.mrb[0].mxu0 %v1213
        %v1307 = vpop.f32.mrb[0].mxu0
        %v1308 = vadd.f32 0.0, %v1307
        %v1309 = vpop.f32.mrb[0].mxu0
        %1310 = vmatprep.mubr.f32.mxu0 0.0
        %1311 = vmatmul.mubr.f32.gmra.mrb[0].mxu0 %v1214
        %v1312 = vpop.f32.mrb[0].mxu0
        %v1313 = vadd.f32 0.0, %v1312
        %v1314 = vpop.f32.mrb[0].mxu0
        %1315 = vdwg.mxu0
        %v1316 = vld [vmem:[%s4 + $0x90] sm:$0xff]
        %v1317 = vld [vmem:[%s4 + $0x98] sm:$0x3f]
        %vm1318 = vcmask 244736
        %v1320 = vsel %vm1318, %v1316, 0
        %v1323 = vsel %vm1318, %v1317, 0
        %v1326 = vsel %vm1155, %v1313, 0
        %1328 = vmatprep.subr.mxu0 0.0
        %1329 = vmatpush1.msra.mxu0 %v1298
        %1330 = vmatprep.subr.mxu0 0.0
        %1331 = vmatpush1.msra.mxu0 %v1303
        %1332 = vmatprep.subr.mxu0 0.0
        %1333 = vmatpush1.msra.mxu0 %v1308
        %1334 = vmatprep.subr.mxu0 0.0
        %1335 = vmatpush1.msra.mxu0 %v1326
        %1336 = vmatprep.subr.mxu0 0.0
        %1337 = vmatpush1.msra.mxu0 0.0
        %1338 = vmatprep.subr.mxu0 0.0
        %1339 = vmatpush1.msra.mxu0 0.0
        %1340 = vmatprep.subr.mxu0 0.0
        %1341 = vmatpush1.msra.mxu0 0.0
        %1342 = vmatprep.subr.mxu0 0.0
        %1343 = vmatpush1.msra.mxu0 0.0
        %1344 = vmatprep.subr.mxu0 0.0
        %1345 = vmatpush1.msra.mxu0 0.0
        %1346 = vmatprep.subr.mxu0 0.0
        %1347 = vmatpush1.msra.mxu0 0.0
        %1348 = vmatprep.subr.mxu0 0.0
        %1349 = vmatpush1.msra.mxu0 0.0
        %1350 = vmatprep.subr.mxu0 0.0
        %1351 = vmatpush1.msra.mxu0 0.0
        %1352 = vmatprep.subr.mxu0 0.0
        %1353 = vmatpush1.msra.mxu0 0.0
        %1354 = vmatprep.subr.mxu0 0.0
        %1355 = vmatpush1.msra.mxu0 0.0
        %1356 = vmatprep.subr.mxu0 0.0
        %1357 = vmatpush1.msra.mxu0 0.0
        %1358 = vmatprep.subr.mxu0 0.0
        %1359 = vmatpush1.msra.mxu0 0.0
        %1360 = vmatprep.subr.mxu0 0.0
        %1361 = vmatpush1.msra.mxu0 0.0
        %1362 = vmatprep.subr.mxu0 0.0
        %1363 = vmatpush1.msra.mxu0 0.0
        %1364 = vmatprep.subr.mxu0 0.0
        %1365 = vmatpush1.msra.mxu0 0.0
        %1366 = vmatprep.subr.mxu0 0.0
        %1367 = vmatpush1.msra.mxu0 0.0
        %1368 = vmatprep.subr.mxu0 0.0
        %1369 = vmatpush1.msra.mxu0 0.0
        %1370 = vmatprep.subr.mxu0 0.0
        %1371 = vmatpush1.msra.mxu0 0.0
        %1372 = vmatprep.subr.mxu0 0.0
        %1373 = vmatpush1.msra.mxu0 0.0
        %1374 = vmatprep.subr.mxu0 0.0
        %1375 = vmatpush1.msra.mxu0 0.0
        %1376 = vmatprep.subr.mxu0 0.0
        %1377 = vmatpush1.msra.mxu0 0.0
        %1378 = vmatprep.subr.mxu0 0.0
        %1379 = vmatpush1.msra.mxu0 0.0
        %1380 = vmatprep.subr.mxu0 0.0
        %1381 = vmatpush1.msra.mxu0 0.0
        %1382 = vmatprep.subr.mxu0 0.0
        %1383 = vmatpush1.msra.mxu0 0.0
        %1384 = vmatprep.subr.mxu0 0.0
        %1385 = vmatpush1.msra.mxu0 0.0
        %1386 = vmatprep.subr.mxu0 0.0
        %1387 = vmatpush1.msra.mxu0 0.0
        %1388 = vmatprep.subr.mxu0 0.0
        %1389 = vmatpush1.msra.mxu0 0.0
        %1390 = vmatprep.subr.mxu0 0.0
        %1391 = vmatpush1.msra.mxu0 0.0
        %1392 = vmatprep.mubr.f32.mxu0 0.0
        %1393 = vmatmul.mubr.f32.gmra.mrb[0].mxu0 %v1320
        %v1394 = vpop.f32.mrb[0].mxu0
        %v1395 = vadd.f32 0.0, %v1394
        %v1396 = vpop.f32.mrb[0].mxu0
        %1397 = vmatprep.mubr.f32.mxu0 0.0
        %1398 = vmatmul.mubr.f32.gmra.mrb[0].mxu0 %v1323
        %v1399 = vpop.f32.mrb[0].mxu0
        %v1400 = vadd.f32 0.0, %v1399
        %v1401 = vpop.f32.mrb[0].mxu0
        %1402 = vdwg.mxu0
        %1403 = vadd.xlane.f32.xlu0 %v1395
        %v1404 = vpop.xlane.xlu0 %1403
        %v1405 = vsel %vm1155, %v1400, 0.0
        %1406 = vadd.xlane.f32.xlu0 %v1405
        %v1407 = vpop.xlane.xlu0 %1406
        %v1408 = vld [vmem:[%s4 + $0xb0] sm:$0xff]
        %v1409 = vld [vmem:[%s4 + $0xb8] sm:$0x3f]
        %v1410 = vld [vmem:[%s4 + $0xa0] sm:$0xff]
        %v1411 = vld [vmem:[%s4 + $0xa8] sm:$0x3f]
        %v1412 = vmul.f32 %v1408, %v1404
        %v1413 = vmul.f32 %v1409, %v1407
        %vm1414 = vcmask 113664
        %v1416 = vsel %vm1414, %v1410, 0
        %v1419 = vsel %vm1414, %v1411, 0
        %v1422 = vsel %vm1155, %v1413, 0
        %1424 = vmatprep.subr.mxu0 0.0
        %1425 = vmatpush1.msra.mxu0 %v1412
        %1426 = vmatprep.subr.mxu0 0.0
        %1427 = vmatpush1.msra.mxu0 %v1422
        %1428 = vmatprep.subr.mxu0 0.0
        %1429 = vmatpush1.msra.mxu0 0.0
        %1430 = vmatprep.subr.mxu0 0.0
        %1431 = vmatpush1.msra.mxu0 0.0
        %1432 = vmatprep.subr.mxu0 0.0
        %1433 = vmatpush1.msra.mxu0 0.0
        %1434 = vmatprep.subr.mxu0 0.0
        %1435 = vmatpush1.msra.mxu0 0.0
        %1436 = vmatprep.subr.mxu0 0.0
        %1437 = vmatpush1.msra.mxu0 0.0
        %1438 = vmatprep.subr.mxu0 0.0
        %1439 = vmatpush1.msra.mxu0 0.0
        %1440 = vmatprep.subr.mxu0 0.0
        %1441 = vmatpush1.msra.mxu0 0.0
        %1442 = vmatprep.subr.mxu0 0.0
        %1443 = vmatpush1.msra.mxu0 0.0
        %1444 = vmatprep.subr.mxu0 0.0
        %1445 = vmatpush1.msra.mxu0 0.0
        %1446 = vmatprep.subr.mxu0 0.0
        %1447 = vmatpush1.msra.mxu0 0.0
        %1448 = vmatprep.subr.mxu0 0.0
        %1449 = vmatpush1.msra.mxu0 0.0
        %1450 = vmatprep.subr.mxu0 0.0
        %1451 = vmatpush1.msra.mxu0 0.0
        %1452 = vmatprep.subr.mxu0 0.0
        %1453 = vmatpush1.msra.mxu0 0.0
        %1454 = vmatprep.subr.mxu0 0.0
        %1455 = vmatpush1.msra.mxu0 0.0
        %1456 = vmatprep.subr.mxu0 0.0
        %1457 = vmatpush1.msra.mxu0 0.0
        %1458 = vmatprep.subr.mxu0 0.0
        %1459 = vmatpush1.msra.mxu0 0.0
        %1460 = vmatprep.subr.mxu0 0.0
        %1461 = vmatpush1.msra.mxu0 0.0
        %1462 = vmatprep.subr.mxu0 0.0
        %1463 = vmatpush1.msra.mxu0 0.0
        %1464 = vmatprep.subr.mxu0 0.0
        %1465 = vmatpush1.msra.mxu0 0.0
        %1466 = vmatprep.subr.mxu0 0.0
        %1467 = vmatpush1.msra.mxu0 0.0
        %1468 = vmatprep.subr.mxu0 0.0
        %1469 = vmatpush1.msra.mxu0 0.0
        %1470 = vmatprep.subr.mxu0 0.0
        %1471 = vmatpush1.msra.mxu0 0.0
        %1472 = vmatprep.subr.mxu0 0.0
        %1473 = vmatpush1.msra.mxu0 0.0
        %1474 = vmatprep.subr.mxu0 0.0
        %1475 = vmatpush1.msra.mxu0 0.0
        %1476 = vmatprep.subr.mxu0 0.0
        %1477 = vmatpush1.msra.mxu0 0.0
        %1478 = vmatprep.subr.mxu0 0.0
        %1479 = vmatpush1.msra.mxu0 0.0
        %1480 = vmatprep.subr.mxu0 0.0
        %1481 = vmatpush1.msra.mxu0 0.0
        %1482 = vmatprep.subr.mxu0 0.0
        %1483 = vmatpush1.msra.mxu0 0.0
        %1484 = vmatprep.subr.mxu0 0.0
        %1485 = vmatpush1.msra.mxu0 0.0
        %1486 = vmatprep.subr.mxu0 0.0
        %1487 = vmatpush1.msra.mxu0 0.0
        %1488 = vmatprep.mubr.f32.mxu0 0.0
        %1489 = vmatmul.mubr.f32.gmra.mrb[0].mxu0 %v1416
        %v1490 = vpop.f32.mrb[0].mxu0
        %v1491 = vadd.f32 0.0, %v1490
        %v1492 = vpop.f32.mrb[0].mxu0
        %1493 = vmatprep.mubr.f32.mxu0 0.0
        %1494 = vmatmul.mubr.f32.gmra.mrb[0].mxu0 %v1419
        %v1495 = vpop.f32.mrb[0].mxu0
        %v1496 = vadd.f32 0.0, %v1495
        %v1497 = vpop.f32.mrb[0].mxu0
        %1498 = vdwg.mxu0
        %v1499 = vsel %vm1414, %v1491, -inf
        %1500 = vmax.xlane.f32.xlu0 %v1499
        %v1501 = vpop.xlane.xlu0 %1500
        %vm1502 = vcmask 111616
        %v1503 = vsel %vm1502, %v1496, -inf
        %1504 = vmax.xlane.f32.xlu0 %v1503
        %v1505 = vpop.xlane.xlu0 %1504
        %v1506 = vsub.f32 %v1491, %v1501
        %v1507 = vsub.f32 %v1496, %v1505
        %v1508 = vmul.f32 %v1506, 1.442695
        %v1509 = vpow.pop %v1508
        %v1510 = vmul.f32 %v1507, 1.442695
        %v1511 = vpow.pop %v1510
        %v1512 = vsel %vm1414, %v1509, 0.0
        %1513 = vadd.xlane.f32.xlu0 %v1512
        %v1514 = vpop.xlane.xlu0 %1513
        %v1515 = vsel %vm1502, %v1511, 0.0
        %1516 = vadd.xlane.f32.xlu0 %v1515
        %v1517 = vpop.xlane.xlu0 %1516
        %v1518 = vrcp.pop %v1514
        %v1519 = vmul.f32 %v1509, %v1518
        %v1520 = vrcp.pop %v1517
        %v1521 = vmul.f32 %v1511, %v1520
        %v1522 = vmul.f32 %v1519, %v1408
        %v1523 = vmul.f32 %v1521, %v1409
        %v1524 = vsel %vm1414, %v1522, 0.0
        %1525 = vadd.xlane.f32.xlu0 %v1524
        %v1526 = vpop.xlane.xlu0 %1525
        %v1527 = vsel %vm1502, %v1523, 0.0
        %1528 = vadd.xlane.f32.xlu0 %v1527
        %v1529 = vpop.xlane.xlu0 %1528
        %v1530 = vmul.f32 %v1526, %v1404
        %v1531 = vmul.f32 %v1529, %v1407
        %v1532 = vld [vmem:[#allocation2 + $0xd8] sm:$0x1]
        %v1533 = vlaneseq
        %v1534 = vshrl.u32 %v1533, 7
        %v1535 = vsub.s32 0, %v1534
        %v1536 = vrot.slane %v1532, %v1535
        %v1537 = vmul.f32 %v1530, %v1536
        %v1538 = vmul.f32 %v1531, %v1536
        %v1539 = vld [vmem:[#allocation2 + $0xe0] sm:$0x1]
        %v1540 = vlaneseq
        %v1541 = vshrl.u32 %v1540, 7
        %v1542 = vsub.s32 0, %v1541
        %v1543 = vrot.slane %v1539, %v1542
        %v1544 = vadd.f32 %v1537, %v1543
        %v1545 = vadd.f32 %v1538, %v1543
        %v1546 = vld [vmem:[%s4] sm:$0xff]
        %v1547 = vld [vmem:[%s4 + $0x8] sm:$0xff]
        %v1548 = vld [vmem:[%s4 + $0x10] sm:$0xff]
        %v1549 = vld [vmem:[%s4 + $0x18] sm:$0xff]
        %v1550 = vld [vmem:[%s4 + $0x20] sm:$0xff]
        %v1551 = vld [vmem:[%s4 + $0x28] sm:$0x3]
        %v1553 = vsel %vm1318, %v1546, 0
        %v1556 = vsel %vm1318, %v1547, 0
        %v1559 = vsel %vm1318, %v1548, 0
        %v1562 = vsel %vm1318, %v1549, 0
        %v1565 = vsel %vm1318, %v1550, 0
        %v1568 = vsel %vm1318, %v1551, 0
        %1570 = vmatprep.subr.mxu0 0.0
        %1571 = vmatpush1.msra.mxu0 %v1298
        %1572 = vmatprep.subr.mxu0 0.0
        %1573 = vmatpush1.msra.mxu0 %v1303
        %1574 = vmatprep.subr.mxu0 0.0
        %1575 = vmatpush1.msra.mxu0 %v1308
        %1576 = vmatprep.subr.mxu0 0.0
        %1577 = vmatpush1.msra.mxu0 %v1326
        %1578 = vmatprep.subr.mxu0 0.0
        %1579 = vmatpush1.msra.mxu0 0.0
        %1580 = vmatprep.subr.mxu0 0.0
        %1581 = vmatpush1.msra.mxu0 0.0
        %1582 = vmatprep.subr.mxu0 0.0
        %1583 = vmatpush1.msra.mxu0 0.0
        %1584 = vmatprep.subr.mxu0 0.0
        %1585 = vmatpush1.msra.mxu0 0.0
        %1586 = vmatprep.subr.mxu0 0.0
        %1587 = vmatpush1.msra.mxu0 0.0
        %1588 = vmatprep.subr.mxu0 0.0
        %1589 = vmatpush1.msra.mxu0 0.0
        %1590 = vmatprep.subr.mxu0 0.0
        %1591 = vmatpush1.msra.mxu0 0.0
        %1592 = vmatprep.subr.mxu0 0.0
        %1593 = vmatpush1.msra.mxu0 0.0
        %1594 = vmatprep.subr.mxu0 0.0
        %1595 = vmatpush1.msra.mxu0 0.0
        %1596 = vmatprep.subr.mxu0 0.0
        %1597 = vmatpush1.msra.mxu0 0.0
        %1598 = vmatprep.subr.mxu0 0.0
        %1599 = vmatpush1.msra.mxu0 0.0
        %1600 = vmatprep.subr.mxu0 0.0
        %1601 = vmatpush1.msra.mxu0 0.0
        %1602 = vmatprep.subr.mxu0 0.0
        %1603 = vmatpush1.msra.mxu0 0.0
        %1604 = vmatprep.subr.mxu0 0.0
        %1605 = vmatpush1.msra.mxu0 0.0
        %1606 = vmatprep.subr.mxu0 0.0
        %1607 = vmatpush1.msra.mxu0 0.0
        %1608 = vmatprep.subr.mxu0 0.0
        %1609 = vmatpush1.msra.mxu0 0.0
        %1610 = vmatprep.subr.mxu0 0.0
        %1611 = vmatpush1.msra.mxu0 0.0
        %1612 = vmatprep.subr.mxu0 0.0
        %1613 = vmatpush1.msra.mxu0 0.0
        %1614 = vmatprep.subr.mxu0 0.0
        %1615 = vmatpush1.msra.mxu0 0.0
        %1616 = vmatprep.subr.mxu0 0.0
        %1617 = vmatpush1.msra.mxu0 0.0
        %1618 = vmatprep.subr.mxu0 0.0
        %1619 = vmatpush1.msra.mxu0 0.0
        %1620 = vmatprep.subr.mxu0 0.0
        %1621 = vmatpush1.msra.mxu0 0.0
        %1622 = vmatprep.subr.mxu0 0.0
        %1623 = vmatpush1.msra.mxu0 0.0
        %1624 = vmatprep.subr.mxu0 0.0
        %1625 = vmatpush1.msra.mxu0 0.0
        %1626 = vmatprep.subr.mxu0 0.0
        %1627 = vmatpush1.msra.mxu0 0.0
        %1628 = vmatprep.subr.mxu0 0.0
        %1629 = vmatpush1.msra.mxu0 0.0
        %1630 = vmatprep.subr.mxu0 0.0
        %1631 = vmatpush1.msra.mxu0 0.0
        %1632 = vmatprep.subr.mxu0 0.0
        %1633 = vmatpush1.msra.mxu0 0.0
        %1634 = vmatprep.mubr.f32.mxu0 0.0
        %1635 = vmatmul.mubr.f32.gmra.mrb[0].mxu0 %v1553
        %v1636 = vpop.f32.mrb[0].mxu0
        %v1637 = vadd.f32 0.0, %v1636
        %v1638 = vpop.f32.mrb[0].mxu0
        %1639 = vmatprep.mubr.f32.mxu0 0.0
        %1640 = vmatmul.mubr.f32.gmra.mrb[0].mxu0 %v1556
        %v1641 = vpop.f32.mrb[0].mxu0
        %v1642 = vadd.f32 0.0, %v1641
        %v1643 = vpop.f32.mrb[0].mxu0
        %1644 = vmatprep.mubr.f32.mxu0 0.0
        %1645 = vmatmul.mubr.f32.gmra.mrb[0].mxu0 %v1559
        %v1646 = vpop.f32.mrb[0].mxu0
        %v1647 = vadd.f32 0.0, %v1646
        %v1648 = vpop.f32.mrb[0].mxu0
        %1649 = vmatprep.mubr.f32.mxu0 0.0
        %1650 = vmatmul.mubr.f32.gmra.mrb[0].mxu0 %v1562
        %v1651 = vpop.f32.mrb[0].mxu0
        %v1652 = vadd.f32 0.0, %v1651
        %v1653 = vpop.f32.mrb[0].mxu0
        %1654 = vmatprep.mubr.f32.mxu0 0.0
        %1655 = vmatmul.mubr.f32.gmra.mrb[0].mxu0 %v1565
        %v1656 = vpop.f32.mrb[0].mxu0
        %v1657 = vadd.f32 0.0, %v1656
        %v1658 = vpop.f32.mrb[0].mxu0
        %1659 = vmatprep.mubr.f32.mxu0 0.0
        %1660 = vmatmul.mubr.f32.gmra.mrb[0].mxu0 %v1568
        %v1661 = vpop.f32.mrb[0].mxu0
        %v1662 = vadd.f32 0.0, %v1661
        %v1663 = vpop.f32.mrb[0].mxu0
        %1664 = vdwg.mxu0
        %v1665 = vld [vmem:[%s4 + $0x50] sm:$0xff]
        %v1666 = vld [vmem:[%s4 + $0x58] sm:$0xff]
        %v1667 = vld [vmem:[%s4 + $0x60] sm:$0xff]
        %v1668 = vld [vmem:[%s4 + $0x68] sm:$0xff]
        %v1669 = vld [vmem:[%s4 + $0x70] sm:$0xff]
        %v1670 = vld [vmem:[%s4 + $0x78] sm:$0x3]
        %v1672 = vsel %vm1414, %v1665, 0
        %v1675 = vsel %vm1414, %v1666, 0
        %v1678 = vsel %vm1414, %v1667, 0
        %v1681 = vsel %vm1414, %v1668, 0
        %v1684 = vsel %vm1414, %v1669, 0
        %v1687 = vsel %vm1414, %v1670, 0
        %v1690 = vsel %vm1155, %v1545, 0
        %1692 = vmatprep.subr.mxu0 0.0
        %1693 = vmatpush1.msra.mxu0 %v1544
        %1694 = vmatprep.subr.mxu0 0.0
        %1695 = vmatpush1.msra.mxu0 %v1690
        %1696 = vmatprep.subr.mxu0 0.0
        %1697 = vmatpush1.msra.mxu0 0.0
        %1698 = vmatprep.subr.mxu0 0.0
        %1699 = vmatpush1.msra.mxu0 0.0
        %1700 = vmatprep.subr.mxu0 0.0
        %1701 = vmatpush1.msra.mxu0 0.0
        %1702 = vmatprep.subr.mxu0 0.0
        %1703 = vmatpush1.msra.mxu0 0.0
        %1704 = vmatprep.subr.mxu0 0.0
        %1705 = vmatpush1.msra.mxu0 0.0
        %1706 = vmatprep.subr.mxu0 0.0
        %1707 = vmatpush1.msra.mxu0 0.0
        %1708 = vmatprep.subr.mxu0 0.0
        %1709 = vmatpush1.msra.mxu0 0.0
        %1710 = vmatprep.subr.mxu0 0.0
        %1711 = vmatpush1.msra.mxu0 0.0
        %1712 = vmatprep.subr.mxu0 0.0
        %1713 = vmatpush1.msra.mxu0 0.0
        %1714 = vmatprep.subr.mxu0 0.0
        %1715 = vmatpush1.msra.mxu0 0.0
        %1716 = vmatprep.subr.mxu0 0.0
        %1717 = vmatpush1.msra.mxu0 0.0
        %1718 = vmatprep.subr.mxu0 0.0
        %1719 = vmatpush1.msra.mxu0 0.0
        %1720 = vmatprep.subr.mxu0 0.0
        %1721 = vmatpush1.msra.mxu0 0.0
        %1722 = vmatprep.subr.mxu0 0.0
        %1723 = vmatpush1.msra.mxu0 0.0
        %1724 = vmatprep.subr.mxu0 0.0
        %1725 = vmatpush1.msra.mxu0 0.0
        %1726 = vmatprep.subr.mxu0 0.0
        %1727 = vmatpush1.msra.mxu0 0.0
        %1728 = vmatprep.subr.mxu0 0.0
        %1729 = vmatpush1.msra.mxu0 0.0
        %1730 = vmatprep.subr.mxu0 0.0
        %1731 = vmatpush1.msra.mxu0 0.0
        %1732 = vmatprep.subr.mxu0 0.0
        %1733 = vmatpush1.msra.mxu0 0.0
        %1734 = vmatprep.subr.mxu0 0.0
        %1735 = vmatpush1.msra.mxu0 0.0
        %1736 = vmatprep.subr.mxu0 0.0
        %1737 = vmatpush1.msra.mxu0 0.0
        %1738 = vmatprep.subr.mxu0 0.0
        %1739 = vmatpush1.msra.mxu0 0.0
        %1740 = vmatprep.subr.mxu0 0.0
        %1741 = vmatpush1.msra.mxu0 0.0
        %1742 = vmatprep.subr.mxu0 0.0
        %1743 = vmatpush1.msra.mxu0 0.0
        %1744 = vmatprep.subr.mxu0 0.0
        %1745 = vmatpush1.msra.mxu0 0.0
        %1746 = vmatprep.subr.mxu0 0.0
        %1747 = vmatpush1.msra.mxu0 0.0
        %1748 = vmatprep.subr.mxu0 0.0
        %1749 = vmatpush1.msra.mxu0 0.0
        %1750 = vmatprep.subr.mxu0 0.0
        %1751 = vmatpush1.msra.mxu0 0.0
        %1752 = vmatprep.subr.mxu0 0.0
        %1753 = vmatpush1.msra.mxu0 0.0
        %1754 = vmatprep.subr.mxu0 0.0
        %1755 = vmatpush1.msra.mxu0 0.0
        %1756 = vmatprep.mubr.f32.mxu0 0.0
        %1757 = vmatmul.mubr.f32.gmra.mrb[0].mxu0 %v1672
        %v1758 = vpop.f32.mrb[0].mxu0
        %v1759 = vadd.f32 0.0, %v1758
        %v1760 = vpop.f32.mrb[0].mxu0
        %1761 = vmatprep.mubr.f32.mxu0 0.0
        %1762 = vmatmul.mubr.f32.gmra.mrb[0].mxu0 %v1675
        %v1763 = vpop.f32.mrb[0].mxu0
        %v1764 = vadd.f32 0.0, %v1763
        %v1765 = vpop.f32.mrb[0].mxu0
        %1766 = vmatprep.mubr.f32.mxu0 0.0
        %1767 = vmatmul.mubr.f32.gmra.mrb[0].mxu0 %v1678
        %v1768 = vpop.f32.mrb[0].mxu0
        %v1769 = vadd.f32 0.0, %v1768
        %v1770 = vpop.f32.mrb[0].mxu0
        %1771 = vmatprep.mubr.f32.mxu0 0.0
        %1772 = vmatmul.mubr.f32.gmra.mrb[0].mxu0 %v1681
        %v1773 = vpop.f32.mrb[0].mxu0
        %v1774 = vadd.f32 0.0, %v1773
        %v1775 = vpop.f32.mrb[0].mxu0
        %1776 = vmatprep.mubr.f32.mxu0 0.0
        %1777 = vmatmul.mubr.f32.gmra.mrb[0].mxu0 %v1684
        %v1778 = vpop.f32.mrb[0].mxu0
        %v1779 = vadd.f32 0.0, %v1778
        %v1780 = vpop.f32.mrb[0].mxu0
        %1781 = vmatprep.mubr.f32.mxu0 0.0
        %1782 = vmatmul.mubr.f32.gmra.mrb[0].mxu0 %v1687
        %v1783 = vpop.f32.mrb[0].mxu0
        %v1784 = vadd.f32 0.0, %v1783
        %v1785 = vpop.f32.mrb[0].mxu0
        %1786 = vdwg.mxu0
        %v1787 = vld [vmem:[#allocation2 + $0xe8] sm:$0x1]
        %v1788 = vlaneseq
        %v1789 = vshrl.u32 %v1788, 7
        %v1790 = vsub.s32 0, %v1789
        %v1791 = vrot.slane %v1787, %v1790
        %v1792 = vmul.f32 %v1637, %v1791
        %v1793 = vmul.f32 %v1642, %v1791
        %v1794 = vmul.f32 %v1647, %v1791
        %v1795 = vmul.f32 %v1652, %v1791
        %v1796 = vmul.f32 %v1657, %v1791
        %v1797 = vmul.f32 %v1662, %v1791
        %v1798 = vld [vmem:[#allocation2 + $0xf0] sm:$0x1]
        %v1799 = vlaneseq
        %v1800 = vshrl.u32 %v1799, 7
        %v1801 = vsub.s32 0, %v1800
        %v1802 = vrot.slane %v1798, %v1801
        %v1803 = vmul.f32 %v1759, %v1802
        %v1804 = vmul.f32 %v1764, %v1802
        %v1805 = vmul.f32 %v1769, %v1802
        %v1806 = vmul.f32 %v1774, %v1802
        %v1807 = vmul.f32 %v1779, %v1802
        %v1808 = vmul.f32 %v1784, %v1802
        %v1809 = vadd.f32 %v1792, %v1803
        %v1810 = vadd.f32 %v1793, %v1804
        %v1811 = vadd.f32 %v1794, %v1805
        %v1812 = vadd.f32 %v1795, %v1806
        %v1813 = vadd.f32 %v1796, %v1807
        %v1814 = vadd.f32 %v1797, %v1808
        %v1815 = vld [vmem:[%s4 + $0xc0] sm:$0xff]
        %v1816 = vld [vmem:[%s4 + $0xc8] sm:$0xff]
        %v1817 = vld [vmem:[%s4 + $0xd0] sm:$0xff]
        %v1818 = vld [vmem:[%s4 + $0xd8] sm:$0xff]
        %v1819 = vld [vmem:[%s4 + $0xe0] sm:$0xff]
        %v1820 = vld [vmem:[%s4 + $0xe8] sm:$0xff]
        %v1821 = vld [vmem:[%s4 + $0xf0] sm:$0xff]
        %v1822 = vld [vmem:[%s4 + $0xf8] sm:$0xff]
        %v1823 = vld [vmem:[%s4 + $0x100] sm:$0xff]
        %v1824 = vld [vmem:[%s4 + $0x108] sm:$0xff]
        %v1825 = vld [vmem:[%s4 + $0x110] sm:$0xff]
        %v1826 = vld [vmem:[%s4 + $0x118] sm:$0xff]
        %v1827 = vld [vmem:[%s4 + $0x120] sm:$0xff]
        %v1828 = vld [vmem:[%s4 + $0x128] sm:$0xff]
        %v1829 = vld [vmem:[%s4 + $0x130] sm:$0xff]
        %v1830 = vld [vmem:[%s4 + $0x138] sm:$0xff]
        %1831 = vmatprep.subr.mxu0 0.0
        %1832 = vmatpush1.msra.mxu0 %v1815
        %1833 = vmatprep.subr.mxu0 0.0
        %1834 = vmatpush1.msra.mxu0 %v1816
        %1835 = vmatprep.subr.mxu0 0.0
        %1836 = vmatpush1.msra.mxu0 %v1817
        %1837 = vmatprep.subr.mxu0 0.0
        %1838 = vmatpush1.msra.mxu0 %v1818
        %1839 = vmatprep.subr.mxu0 0.0
        %1840 = vmatpush1.msra.mxu0 %v1819
        %1841 = vmatprep.subr.mxu0 0.0
        %1842 = vmatpush1.msra.mxu0 %v1820
        %1843 = vmatprep.subr.mxu0 0.0
        %1844 = vmatpush1.msra.mxu0 %v1821
        %1845 = vmatprep.subr.mxu0 0.0
        %1846 = vmatpush1.msra.mxu0 %v1822
        %1847 = vmatprep.subr.mxu0 0.0
        %1848 = vmatpush1.msra.mxu0 %v1823
        %1849 = vmatprep.subr.mxu0 0.0
        %1850 = vmatpush1.msra.mxu0 %v1824
        %1851 = vmatprep.subr.mxu0 0.0
        %1852 = vmatpush1.msra.mxu0 %v1825
        %1853 = vmatprep.subr.mxu0 0.0
        %1854 = vmatpush1.msra.mxu0 %v1826
        %1855 = vmatprep.subr.mxu0 0.0
        %1856 = vmatpush1.msra.mxu0 %v1827
        %1857 = vmatprep.subr.mxu0 0.0
        %1858 = vmatpush1.msra.mxu0 %v1828
        %1859 = vmatprep.subr.mxu0 0.0
        %1860 = vmatpush1.msra.mxu0 %v1829
        %1861 = vmatprep.subr.mxu0 0.0
        %1862 = vmatpush1.msra.mxu0 %v1830
        %1863 = vmatprep.subr.mxu0 0.0
        %1864 = vmatpush1.msra.mxu0 0.0
        %1865 = vmatprep.subr.mxu0 0.0
        %1866 = vmatpush1.msra.mxu0 0.0
        %1867 = vmatprep.subr.mxu0 0.0
        %1868 = vmatpush1.msra.mxu0 0.0
        %1869 = vmatprep.subr.mxu0 0.0
        %1870 = vmatpush1.msra.mxu0 0.0
        %1871 = vmatprep.subr.mxu0 0.0
        %1872 = vmatpush1.msra.mxu0 0.0
        %1873 = vmatprep.subr.mxu0 0.0
        %1874 = vmatpush1.msra.mxu0 0.0
        %1875 = vmatprep.subr.mxu0 0.0
        %1876 = vmatpush1.msra.mxu0 0.0
        %1877 = vmatprep.subr.mxu0 0.0
        %1878 = vmatpush1.msra.mxu0 0.0
        %1879 = vmatprep.subr.mxu0 0.0
        %1880 = vmatpush1.msra.mxu0 0.0
        %1881 = vmatprep.subr.mxu0 0.0
        %1882 = vmatpush1.msra.mxu0 0.0
        %1883 = vmatprep.subr.mxu0 0.0
        %1884 = vmatpush1.msra.mxu0 0.0
        %1885 = vmatprep.subr.mxu0 0.0
        %1886 = vmatpush1.msra.mxu0 0.0
        %1887 = vmatprep.subr.mxu0 0.0
        %1888 = vmatpush1.msra.mxu0 0.0
        %1889 = vmatprep.subr.mxu0 0.0
        %1890 = vmatpush1.msra.mxu0 0.0
        %1891 = vmatprep.subr.mxu0 0.0
        %1892 = vmatpush1.msra.mxu0 0.0
        %1893 = vmatprep.subr.mxu0 0.0
        %1894 = vmatpush1.msra.mxu0 0.0
        %1895 = vmatprep.mubr.f32.mxu0 0.0
        %1896 = vmatmul.mubr.f32.gmra.mrb[0].mxu0 %v1809
        %v1897 = vpop.f32.mrb[0].mxu0
        %v1898 = vadd.f32 0.0, %v1897
        %v1899 = vpop.f32.mrb[0].mxu0
        %1900 = vmatprep.mubr.f32.mxu0 0.0
        %1901 = vmatmul.mubr.f32.gmra.mrb[0].mxu0 %v1810
        %v1902 = vpop.f32.mrb[0].mxu0
        %v1903 = vadd.f32 0.0, %v1902
        %v1904 = vpop.f32.mrb[0].mxu0
        %1905 = vmatprep.mubr.f32.mxu0 0.0
        %1906 = vmatmul.mubr.f32.gmra.mrb[0].mxu0 %v1811
        %v1907 = vpop.f32.mrb[0].mxu0
        %v1908 = vadd.f32 0.0, %v1907
        %v1909 = vpop.f32.mrb[0].mxu0
        %1910 = vmatprep.mubr.f32.mxu0 0.0
        %1911 = vmatmul.mubr.f32.gmra.mrb[0].mxu0 %v1812
        %v1912 = vpop.f32.mrb[0].mxu0
        %v1913 = vadd.f32 0.0, %v1912
        %v1914 = vpop.f32.mrb[0].mxu0
        %1915 = vmatprep.mubr.f32.mxu0 0.0
        %1916 = vmatmul.mubr.f32.gmra.mrb[0].mxu0 %v1813
        %v1917 = vpop.f32.mrb[0].mxu0
        %v1918 = vadd.f32 0.0, %v1917
        %v1919 = vpop.f32.mrb[0].mxu0
        %1920 = vmatprep.mubr.f32.mxu0 0.0
        %1921 = vmatmul.mubr.f32.gmra.mrb[0].mxu0 %v1814
        %v1922 = vpop.f32.mrb[0].mxu0
        %v1923 = vadd.f32 0.0, %v1922
        %v1924 = vpop.f32.mrb[0].mxu0
        %1925 = vdwg.mxu0
        %vm1926 = vcmp.gt.f32.partialorder %v1898, 0.0
        %vm1927 = vcmp.gt.f32.partialorder %v1903, 0.0
        %vm1928 = vcmp.gt.f32.partialorder %v1908, 0.0
        %vm1929 = vcmp.gt.f32.partialorder %v1913, 0.0
        %vm1930 = vcmp.gt.f32.partialorder %v1918, 0.0
        %vm1931 = vcmp.gt.f32.partialorder %v1923, 0.0
        %v1932 = vmul.f32 %v1898, 0.2
        %v1933 = vmul.f32 %v1903, 0.2
        %v1934 = vmul.f32 %v1908, 0.2
        %v1935 = vmul.f32 %v1913, 0.2
        %v1936 = vmul.f32 %v1918, 0.2
        %v1937 = vmul.f32 %v1923, 0.2
        %v1938 = vsel %vm1926, %v1898, %v1932
        %v1939 = vsel %vm1927, %v1903, %v1933
        %v1940 = vsel %vm1928, %v1908, %v1934
        %v1941 = vsel %vm1929, %v1913, %v1935
        %v1942 = vsel %vm1930, %v1918, %v1936
        %v1943 = vsel %vm1931, %v1923, %v1937
        %v1944 = vsel %vm260, %v1938, -inf
        %1945 = vmax.xlane.f32.xlu0 %v1944
        %v1946 = vpop.xlane.xlu0 %1945
        %v1947 = vsel %vm260, %v1939, -inf
        %1948 = vmax.xlane.f32.xlu0 %v1947
        %v1949 = vpop.xlane.xlu0 %1948
        %v1950 = vsel %vm260, %v1940, -inf
        %1951 = vmax.xlane.f32.xlu0 %v1950
        %v1952 = vpop.xlane.xlu0 %1951
        %v1953 = vsel %vm260, %v1941, -inf
        %1954 = vmax.xlane.f32.xlu0 %v1953
        %v1955 = vpop.xlane.xlu0 %1954
        %v1956 = vsel %vm260, %v1942, -inf
        %1957 = vmax.xlane.f32.xlu0 %v1956
        %v1958 = vpop.xlane.xlu0 %1957
        %vm1959 = vcmask 25600
        %v1960 = vsel %vm1959, %v1943, -inf
        %1961 = vmax.xlane.f32.xlu0 %v1960
        %v1962 = vpop.xlane.xlu0 %1961
        %v1963 = vmax.f32 %v1946, %v1958
        %vm1964 = vcmask 1041408
        %v1965 = vsel %vm1964, %v1962, -inf
        %v1966 = vmax.f32 %v1949, %v1965
        %v1967 = vmax.f32 %v1963, %v1966
        %v1968 = vmax.f32 %v1952, %v1955
        %v1969 = vmax.f32 %v1967, %v1968
        %v1970 = vrot.slane %v1969, 4
        %v1971 = vmax.f32 %v1969, %v1970
        %v1972 = vrot.slane %v1971, 2
        %v1973 = vmax.f32 %v1971, %v1972
        %v1974 = vrot.slane %v1973, 1
        %v1975 = vmax.f32 %v1973, %v1974
        %v1976 = vsub.f32 %v1938, %v1975
        %v1977 = vsub.f32 %v1939, %v1975
        %v1978 = vsub.f32 %v1940, %v1975
        %v1979 = vsub.f32 %v1941, %v1975
        %v1980 = vsub.f32 %v1942, %v1975
        %v1981 = vsub.f32 %v1943, %v1975
        %v1982 = vmul.f32 %v1976, 1.442695
        %v1983 = vpow.pop %v1982
        %v1984 = vmul.f32 %v1977, 1.442695
        %v1985 = vpow.pop %v1984
        %v1986 = vmul.f32 %v1978, 1.442695
        %v1987 = vpow.pop %v1986
        %v1988 = vmul.f32 %v1979, 1.442695
        %v1989 = vpow.pop %v1988
        %v1990 = vmul.f32 %v1980, 1.442695
        %v1991 = vpow.pop %v1990
        %v1992 = vmul.f32 %v1981, 1.442695
        %v1993 = vpow.pop %v1992
        %v1994 = vld [vmem:[%s4 + $0x30] sm:$0xff]
        %v1995 = vld [vmem:[%s4 + $0x38] sm:$0xff]
        %v1996 = vld [vmem:[%s4 + $0x40] sm:$0xff]
        %v1997 = vld [vmem:[%s4 + $0x48] sm:$0x3f]
        %vm1998 = vcmask 343040
        %v2000 = vsel %vm1998, %v1994, 0
        %v2003 = vsel %vm1998, %v1995, 0
        %v2006 = vsel %vm1998, %v1996, 0
        %v2009 = vsel %vm1998, %v1997, 0
        %v2012 = vsel %vm1964, %v1993, 0
        %2014 = vmatprep.subr.mxu0 0.0
        %2015 = vmatpush1.msra.mxu0 %v1983
        %2016 = vmatprep.subr.mxu0 0.0
        %2017 = vmatpush1.msra.mxu0 %v1985
        %2018 = vmatprep.subr.mxu0 0.0
        %2019 = vmatpush1.msra.mxu0 %v1987
        %2020 = vmatprep.subr.mxu0 0.0
        %2021 = vmatpush1.msra.mxu0 %v1989
        %2022 = vmatprep.subr.mxu0 0.0
        %2023 = vmatpush1.msra.mxu0 %v1991
        %2024 = vmatprep.subr.mxu0 0.0
        %2025 = vmatpush1.msra.mxu0 %v2012
        %2026 = vmatprep.subr.mxu0 0.0
        %2027 = vmatpush1.msra.mxu0 0.0
        %2028 = vmatprep.subr.mxu0 0.0
        %2029 = vmatpush1.msra.mxu0 0.0
        %2030 = vmatprep.subr.mxu0 0.0
        %2031 = vmatpush1.msra.mxu0 0.0
        %2032 = vmatprep.subr.mxu0 0.0
        %2033 = vmatpush1.msra.mxu0 0.0
        %2034 = vmatprep.subr.mxu0 0.0
        %2035 = vmatpush1.msra.mxu0 0.0
        %2036 = vmatprep.subr.mxu0 0.0
        %2037 = vmatpush1.msra.mxu0 0.0
        %2038 = vmatprep.subr.mxu0 0.0
        %2039 = vmatpush1.msra.mxu0 0.0
        %2040 = vmatprep.subr.mxu0 0.0
        %2041 = vmatpush1.msra.mxu0 0.0
        %2042 = vmatprep.subr.mxu0 0.0
        %2043 = vmatpush1.msra.mxu0 0.0
        %2044 = vmatprep.subr.mxu0 0.0
        %2045 = vmatpush1.msra.mxu0 0.0
        %2046 = vmatprep.subr.mxu0 0.0
        %2047 = vmatpush1.msra.mxu0 0.0
        %2048 = vmatprep.subr.mxu0 0.0
        %2049 = vmatpush1.msra.mxu0 0.0
        %2050 = vmatprep.subr.mxu0 0.0
        %2051 = vmatpush1.msra.mxu0 0.0
        %2052 = vmatprep.subr.mxu0 0.0
        %2053 = vmatpush1.msra.mxu0 0.0
        %2054 = vmatprep.subr.mxu0 0.0
        %2055 = vmatpush1.msra.mxu0 0.0
        %2056 = vmatprep.subr.mxu0 0.0
        %2057 = vmatpush1.msra.mxu0 0.0
        %2058 = vmatprep.subr.mxu0 0.0
        %2059 = vmatpush1.msra.mxu0 0.0
        %2060 = vmatprep.subr.mxu0 0.0
        %2061 = vmatpush1.msra.mxu0 0.0
        %2062 = vmatprep.subr.mxu0 0.0
        %2063 = vmatpush1.msra.mxu0 0.0
        %2064 = vmatprep.subr.mxu0 0.0
        %2065 = vmatpush1.msra.mxu0 0.0
        %2066 = vmatprep.subr.mxu0 0.0
        %2067 = vmatpush1.msra.mxu0 0.0
        %2068 = vmatprep.subr.mxu0 0.0
        %2069 = vmatpush1.msra.mxu0 0.0
        %2070 = vmatprep.subr.mxu0 0.0
        %2071 = vmatpush1.msra.mxu0 0.0
        %2072 = vmatprep.subr.mxu0 0.0
        %2073 = vmatpush1.msra.mxu0 0.0
        %2074 = vmatprep.subr.mxu0 0.0
        %2075 = vmatpush1.msra.mxu0 0.0
        %2076 = vmatprep.subr.mxu0 0.0
        %2077 = vmatpush1.msra.mxu0 0.0
        %2078 = vmatprep.mubr.f32.mxu0 0.0
        %2079 = vmatmul.mubr.f32.gmra.mrb[0].mxu0 %v2000
        %v2080 = vpop.f32.mrb[0].mxu0
        %v2081 = vadd.f32 0.0, %v2080
        %v2082 = vpop.f32.mrb[0].mxu0
        %2083 = vmatprep.mubr.f32.mxu0 0.0
        %2084 = vmatmul.mubr.f32.gmra.mrb[0].mxu0 %v2003
        %v2085 = vpop.f32.mrb[0].mxu0
        %v2086 = vadd.f32 0.0, %v2085
        %v2087 = vpop.f32.mrb[0].mxu0
        %2088 = vmatprep.mubr.f32.mxu0 0.0
        %2089 = vmatmul.mubr.f32.gmra.mrb[0].mxu0 %v2006
        %v2090 = vpop.f32.mrb[0].mxu0
        %v2091 = vadd.f32 0.0, %v2090
        %v2092 = vpop.f32.mrb[0].mxu0
        %2093 = vmatprep.mubr.f32.mxu0 0.0
        %2094 = vmatmul.mubr.f32.gmra.mrb[0].mxu0 %v2009
        %v2095 = vpop.f32.mrb[0].mxu0
        %v2096 = vadd.f32 0.0, %v2095
        %v2097 = vpop.f32.mrb[0].mxu0
        %2098 = vdwg.mxu0
        %v2100 = vsel %vm1155, %v2096, 0
        %2102 = vmatprep.subr.mxu0 0.0
        %2103 = vmatpush1.msra.mxu0 %v2081
        %2104 = vmatprep.subr.mxu0 0.0
        %2105 = vmatpush1.msra.mxu0 %v2086
        %2106 = vmatprep.subr.mxu0 0.0
        %2107 = vmatpush1.msra.mxu0 %v2091
        %2108 = vmatprep.subr.mxu0 0.0
        %2109 = vmatpush1.msra.mxu0 %v2100
        %2110 = vmatprep.subr.mxu0 0.0
        %2111 = vmatpush1.msra.mxu0 0.0
        %2112 = vmatprep.subr.mxu0 0.0
        %2113 = vmatpush1.msra.mxu0 0.0
        %2114 = vmatprep.subr.mxu0 0.0
        %2115 = vmatpush1.msra.mxu0 0.0
        %2116 = vmatprep.subr.mxu0 0.0
        %2117 = vmatpush1.msra.mxu0 0.0
        %2118 = vmatprep.subr.mxu0 0.0
        %2119 = vmatpush1.msra.mxu0 0.0
        %2120 = vmatprep.subr.mxu0 0.0
        %2121 = vmatpush1.msra.mxu0 0.0
        %2122 = vmatprep.subr.mxu0 0.0
        %2123 = vmatpush1.msra.mxu0 0.0
        %2124 = vmatprep.subr.mxu0 0.0
        %2125 = vmatpush1.msra.mxu0 0.0
        %2126 = vmatprep.subr.mxu0 0.0
        %2127 = vmatpush1.msra.mxu0 0.0
        %2128 = vmatprep.subr.mxu0 0.0
        %2129 = vmatpush1.msra.mxu0 0.0
        %2130 = vmatprep.subr.mxu0 0.0
        %2131 = vmatpush1.msra.mxu0 0.0
        %2132 = vmatprep.subr.mxu0 0.0
        %2133 = vmatpush1.msra.mxu0 0.0
        %2134 = vmatprep.subr.mxu0 0.0
        %2135 = vmatpush1.msra.mxu0 0.0
        %2136 = vmatprep.subr.mxu0 0.0
        %2137 = vmatpush1.msra.mxu0 0.0
        %2138 = vmatprep.subr.mxu0 0.0
        %2139 = vmatpush1.msra.mxu0 0.0
        %2140 = vmatprep.subr.mxu0 0.0
        %2141 = vmatpush1.msra.mxu0 0.0
        %2142 = vmatprep.subr.mxu0 0.0
        %2143 = vmatpush1.msra.mxu0 0.0
        %2144 = vmatprep.subr.mxu0 0.0
        %2145 = vmatpush1.msra.mxu0 0.0
        %2146 = vmatprep.subr.mxu0 0.0
        %2147 = vmatpush1.msra.mxu0 0.0
        %2148 = vmatprep.subr.mxu0 0.0
        %2149 = vmatpush1.msra.mxu0 0.0
        %2150 = vmatprep.subr.mxu0 0.0
        %2151 = vmatpush1.msra.mxu0 0.0
        %2152 = vmatprep.subr.mxu0 0.0
        %2153 = vmatpush1.msra.mxu0 0.0
        %2154 = vmatprep.subr.mxu0 0.0
        %2155 = vmatpush1.msra.mxu0 0.0
        %2156 = vmatprep.subr.mxu0 0.0
        %2157 = vmatpush1.msra.mxu0 0.0
        %2158 = vmatprep.subr.mxu0 0.0
        %2159 = vmatpush1.msra.mxu0 0.0
        %2160 = vmatprep.subr.mxu0 0.0
        %2161 = vmatpush1.msra.mxu0 0.0
        %2162 = vmatprep.subr.mxu0 0.0
        %2163 = vmatpush1.msra.mxu0 0.0
        %2164 = vmatprep.subr.mxu0 0.0
        %2165 = vmatpush1.msra.mxu0 0.0
        %2166 = vmatprep.mubr.f32.mxu0 0.0
        %2167 = vmatmul.mubr.f32.gmra.mrb[0].mxu0 %v1553
        %v2168 = vpop.f32.mrb[0].mxu0
        %v2169 = vadd.f32 1e-16, %v2168
        %v2170 = vpop.f32.mrb[0].mxu0
        %2171 = vmatprep.mubr.f32.mxu0 0.0
        %2172 = vmatmul.mubr.f32.gmra.mrb[0].mxu0 %v1556
        %v2173 = vpop.f32.mrb[0].mxu0
        %v2174 = vadd.f32 1e-16, %v2173
        %v2175 = vpop.f32.mrb[0].mxu0
        %2176 = vmatprep.mubr.f32.mxu0 0.0
        %2177 = vmatmul.mubr.f32.gmra.mrb[0].mxu0 %v1559
        %v2178 = vpop.f32.mrb[0].mxu0
        %v2179 = vadd.f32 1e-16, %v2178
        %v2180 = vpop.f32.mrb[0].mxu0
        %2181 = vmatprep.mubr.f32.mxu0 0.0
        %2182 = vmatmul.mubr.f32.gmra.mrb[0].mxu0 %v1562
        %v2183 = vpop.f32.mrb[0].mxu0
        %v2184 = vadd.f32 1e-16, %v2183
        %v2185 = vpop.f32.mrb[0].mxu0
        %2186 = vmatprep.mubr.f32.mxu0 0.0
        %2187 = vmatmul.mubr.f32.gmra.mrb[0].mxu0 %v1565
        %v2188 = vpop.f32.mrb[0].mxu0
        %v2189 = vadd.f32 1e-16, %v2188
        %v2190 = vpop.f32.mrb[0].mxu0
        %2191 = vmatprep.mubr.f32.mxu0 0.0
        %2192 = vmatmul.mubr.f32.gmra.mrb[0].mxu0 %v1568
        %v2193 = vpop.f32.mrb[0].mxu0
        %v2194 = vadd.f32 1e-16, %v2193
        %v2195 = vpop.f32.mrb[0].mxu0
        %2196 = vdwg.mxu0
        %v2197 = vrcp.pop %v2169
        %v2198 = vmul.f32 %v1983, %v2197
        %v2199 = vrcp.pop %v2174
        %v2200 = vmul.f32 %v1985, %v2199
        %v2201 = vrcp.pop %v2179
        %v2202 = vmul.f32 %v1987, %v2201
        %v2203 = vrcp.pop %v2184
        %v2204 = vmul.f32 %v1989, %v2203
        %v2205 = vrcp.pop %v2189
        %v2206 = vmul.f32 %v1991, %v2205
        %v2207 = vrcp.pop %v2194
        %v2208 = vmul.f32 %v1993, %v2207
        %v2209 = vld [vmem:[#allocation2 + $0xf8] sm:$0xf]
        %v2211 = vsel %vm260, %v2198, 0
        %v2214 = vsel %vm260, %v2200, 0
        %v2217 = vsel %vm260, %v2202, 0
        %v2220 = vsel %vm260, %v2204, 0
        %v2223 = vsel %vm260, %v2206, 0
        %v2226 = vsel %vm260, %v2208, 0
        %v2229 = vsel %vm883, %v2209, 0
        %2231 = vmatprep.subr.mxu0 0.0
        %2232 = vmatpush1.msra.mxu0 %v2229
        %2233 = vmatprep.subr.mxu0 0.0
        %2234 = vmatpush1.msra.mxu0 0.0
        %2235 = vmatprep.subr.mxu0 0.0
        %2236 = vmatpush1.msra.mxu0 0.0
        %2237 = vmatprep.subr.mxu0 0.0
        %2238 = vmatpush1.msra.mxu0 0.0
        %2239 = vmatprep.subr.mxu0 0.0
        %2240 = vmatpush1.msra.mxu0 0.0
        %2241 = vmatprep.subr.mxu0 0.0
        %2242 = vmatpush1.msra.mxu0 0.0
        %2243 = vmatprep.subr.mxu0 0.0
        %2244 = vmatpush1.msra.mxu0 0.0
        %2245 = vmatprep.subr.mxu0 0.0
        %2246 = vmatpush1.msra.mxu0 0.0
        %2247 = vmatprep.subr.mxu0 0.0
        %2248 = vmatpush1.msra.mxu0 0.0
        %2249 = vmatprep.subr.mxu0 0.0
        %2250 = vmatpush1.msra.mxu0 0.0
        %2251 = vmatprep.subr.mxu0 0.0
        %2252 = vmatpush1.msra.mxu0 0.0
        %2253 = vmatprep.subr.mxu0 0.0
        %2254 = vmatpush1.msra.mxu0 0.0
        %2255 = vmatprep.subr.mxu0 0.0
        %2256 = vmatpush1.msra.mxu0 0.0
        %2257 = vmatprep.subr.mxu0 0.0
        %2258 = vmatpush1.msra.mxu0 0.0
        %2259 = vmatprep.subr.mxu0 0.0
        %2260 = vmatpush1.msra.mxu0 0.0
        %2261 = vmatprep.subr.mxu0 0.0
        %2262 = vmatpush1.msra.mxu0 0.0
        %2263 = vmatprep.subr.mxu0 0.0
        %2264 = vmatpush1.msra.mxu0 0.0
        %2265 = vmatprep.subr.mxu0 0.0
        %2266 = vmatpush1.msra.mxu0 0.0
        %2267 = vmatprep.subr.mxu0 0.0
        %2268 = vmatpush1.msra.mxu0 0.0
        %2269 = vmatprep.subr.mxu0 0.0
        %2270 = vmatpush1.msra.mxu0 0.0
        %2271 = vmatprep.subr.mxu0 0.0
        %2272 = vmatpush1.msra.mxu0 0.0
        %2273 = vmatprep.subr.mxu0 0.0
        %2274 = vmatpush1.msra.mxu0 0.0
        %2275 = vmatprep.subr.mxu0 0.0
        %2276 = vmatpush1.msra.mxu0 0.0
        %2277 = vmatprep.subr.mxu0 0.0
        %2278 = vmatpush1.msra.mxu0 0.0
        %2279 = vmatprep.subr.mxu0 0.0
        %2280 = vmatpush1.msra.mxu0 0.0
        %2281 = vmatprep.subr.mxu0 0.0
        %2282 = vmatpush1.msra.mxu0 0.0
        %2283 = vmatprep.subr.mxu0 0.0
        %2284 = vmatpush1.msra.mxu0 0.0
        %2285 = vmatprep.subr.mxu0 0.0
        %2286 = vmatpush1.msra.mxu0 0.0
        %2287 = vmatprep.subr.mxu0 0.0
        %2288 = vmatpush1.msra.mxu0 0.0
        %2289 = vmatprep.subr.mxu0 0.0
        %2290 = vmatpush1.msra.mxu0 0.0
        %2291 = vmatprep.subr.mxu0 0.0
        %2292 = vmatpush1.msra.mxu0 0.0
        %2293 = vmatprep.subr.mxu0 0.0
        %2294 = vmatpush1.msra.mxu0 0.0
        %2295 = vmatprep.mubr.f32.mxu0 0.0
        %2296 = vmatmul.mubr.f32.gmra.mrb[0].mxu0 %v2211
        %v2297 = vpop.f32.mrb[0].mxu0
        %v2298 = vadd.f32 0.0, %v2297
        %v2299 = vpop.f32.mrb[0].mxu0
        %2300 = vmatprep.mubr.f32.mxu0 0.0
        %2301 = vmatmul.mubr.f32.gmra.mrb[0].mxu0 %v2214
        %v2302 = vpop.f32.mrb[0].mxu0
        %v2303 = vadd.f32 0.0, %v2302
        %v2304 = vpop.f32.mrb[0].mxu0
        %2305 = vmatprep.mubr.f32.mxu0 0.0
        %2306 = vmatmul.mubr.f32.gmra.mrb[0].mxu0 %v2217
        %v2307 = vpop.f32.mrb[0].mxu0
        %v2308 = vadd.f32 0.0, %v2307
        %v2309 = vpop.f32.mrb[0].mxu0
        %2310 = vmatprep.mubr.f32.mxu0 0.0
        %2311 = vmatmul.mubr.f32.gmra.mrb[0].mxu0 %v2220
        %v2312 = vpop.f32.mrb[0].mxu0
        %v2313 = vadd.f32 0.0, %v2312
        %v2314 = vpop.f32.mrb[0].mxu0
        %2315 = vmatprep.mubr.f32.mxu0 0.0
        %2316 = vmatmul.mubr.f32.gmra.mrb[0].mxu0 %v2223
        %v2317 = vpop.f32.mrb[0].mxu0
        %v2318 = vadd.f32 0.0, %v2317
        %v2319 = vpop.f32.mrb[0].mxu0
        %2320 = vmatprep.mubr.f32.mxu0 0.0
        %2321 = vmatmul.mubr.f32.gmra.mrb[0].mxu0 %v2226
        %v2322 = vpop.f32.mrb[0].mxu0
        %v2323 = vadd.f32 0.0, %v2322
        %v2324 = vpop.f32.mrb[0].mxu0
        %2325 = vdwg.mxu0
        %v2326 = vld [vmem:[%s4 + $0x140] sm:$0xff]
        %v2327 = vld [vmem:[%s4 + $0x148] sm:$0xff]
        %v2328 = vld [vmem:[%s4 + $0x150] sm:$0xff]
        %v2329 = vld [vmem:[%s4 + $0x158] sm:$0xff]
        %v2330 = vld [vmem:[%s4 + $0x160] sm:$0xff]
        %v2331 = vld [vmem:[%s4 + $0x168] sm:$0x3]
        %2333 = vset.pattern.permute.xlu0 0
        %2334 = vperm.xlu0 %2333, %v2326
        %v2335 = vpop.permute.xlu0 %2334
        %2338 = vset.pattern.permute.xlu0 0
        %2339 = vperm.xlu0 %2338, %v2327
        %v2340 = vpop.permute.xlu0 %2339
        %2343 = vset.pattern.permute.xlu0 0
        %2344 = vperm.xlu0 %2343, %v2328
        %v2345 = vpop.permute.xlu0 %2344
        %2348 = vset.pattern.permute.xlu0 0
        %2349 = vperm.xlu0 %2348, %v2329
        %v2350 = vpop.permute.xlu0 %2349
        %2353 = vset.pattern.permute.xlu0 0
        %2354 = vperm.xlu0 %2353, %v2330
        %v2355 = vpop.permute.xlu0 %2354
        %2358 = vset.pattern.permute.xlu0 0
        %2359 = vperm.xlu0 %2358, %v2331
        %v2360 = vpop.permute.xlu0 %2359
        %v2362 = vmul.f32 %v2298, %v2335
        %v2363 = vmul.f32 %v2303, %v2340
        %v2364 = vmul.f32 %v2308, %v2345
        %v2365 = vmul.f32 %v2313, %v2350
        %v2366 = vmul.f32 %v2318, %v2355
        %v2367 = vmul.f32 %v2323, %v2360
        %v2368 = vmul.f32 %v2362, %v1637
        %v2369 = vmul.f32 %v2363, %v1642
        %v2370 = vmul.f32 %v2364, %v1647
        %v2371 = vmul.f32 %v2365, %v1652
        %v2372 = vmul.f32 %v2366, %v1657
        %v2373 = vmul.f32 %v2367, %v1662
        %v2374 = vld [vmem:[%s4 + $0x80] sm:$0xff]
        %v2375 = vld [vmem:[%s4 + $0x88] sm:$0x3f]
        %v2377 = vsel %vm1998, %v2374, 0
        %v2380 = vsel %vm1998, %v2375, 0
        %v2383 = vsel %vm1964, %v2373, 0
        %2385 = vmatprep.subr.mxu0 0.0
        %2386 = vmatpush1.msra.mxu0 %v2368
        %2387 = vmatprep.subr.mxu0 0.0
        %2388 = vmatpush1.msra.mxu0 %v2369
        %2389 = vmatprep.subr.mxu0 0.0
        %2390 = vmatpush1.msra.mxu0 %v2370
        %2391 = vmatprep.subr.mxu0 0.0
        %2392 = vmatpush1.msra.mxu0 %v2371
        %2393 = vmatprep.subr.mxu0 0.0
        %2394 = vmatpush1.msra.mxu0 %v2372
        %2395 = vmatprep.subr.mxu0 0.0
        %2396 = vmatpush1.msra.mxu0 %v2383
        %2397 = vmatprep.subr.mxu0 0.0
        %2398 = vmatpush1.msra.mxu0 0.0
        %2399 = vmatprep.subr.mxu0 0.0
        %2400 = vmatpush1.msra.mxu0 0.0
        %2401 = vmatprep.subr.mxu0 0.0
        %2402 = vmatpush1.msra.mxu0 0.0
        %2403 = vmatprep.subr.mxu0 0.0
        %2404 = vmatpush1.msra.mxu0 0.0
        %2405 = vmatprep.subr.mxu0 0.0
        %2406 = vmatpush1.msra.mxu0 0.0
        %2407 = vmatprep.subr.mxu0 0.0
        %2408 = vmatpush1.msra.mxu0 0.0
        %2409 = vmatprep.subr.mxu0 0.0
        %2410 = vmatpush1.msra.mxu0 0.0
        %2411 = vmatprep.subr.mxu0 0.0
        %2412 = vmatpush1.msra.mxu0 0.0
        %2413 = vmatprep.subr.mxu0 0.0
        %2414 = vmatpush1.msra.mxu0 0.0
        %2415 = vmatprep.subr.mxu0 0.0
        %2416 = vmatpush1.msra.mxu0 0.0
        %2417 = vmatprep.subr.mxu0 0.0
        %2418 = vmatpush1.msra.mxu0 0.0
        %2419 = vmatprep.subr.mxu0 0.0
        %2420 = vmatpush1.msra.mxu0 0.0
        %2421 = vmatprep.subr.mxu0 0.0
        %2422 = vmatpush1.msra.mxu0 0.0
        %2423 = vmatprep.subr.mxu0 0.0
        %2424 = vmatpush1.msra.mxu0 0.0
        %2425 = vmatprep.subr.mxu0 0.0
        %2426 = vmatpush1.msra.mxu0 0.0
        %2427 = vmatprep.subr.mxu0 0.0
        %2428 = vmatpush1.msra.mxu0 0.0
        %2429 = vmatprep.subr.mxu0 0.0
        %2430 = vmatpush1.msra.mxu0 0.0
        %2431 = vmatprep.subr.mxu0 0.0
        %2432 = vmatpush1.msra.mxu0 0.0
        %2433 = vmatprep.subr.mxu0 0.0
        %2434 = vmatpush1.msra.mxu0 0.0
        %2435 = vmatprep.subr.mxu0 0.0
        %2436 = vmatpush1.msra.mxu0 0.0
        %2437 = vmatprep.subr.mxu0 0.0
        %2438 = vmatpush1.msra.mxu0 0.0
        %2439 = vmatprep.subr.mxu0 0.0
        %2440 = vmatpush1.msra.mxu0 0.0
        %2441 = vmatprep.subr.mxu0 0.0
        %2442 = vmatpush1.msra.mxu0 0.0
        %2443 = vmatprep.subr.mxu0 0.0
        %2444 = vmatpush1.msra.mxu0 0.0
        %2445 = vmatprep.subr.mxu0 0.0
        %2446 = vmatpush1.msra.mxu0 0.0
        %2447 = vmatprep.subr.mxu0 0.0
        %2448 = vmatpush1.msra.mxu0 0.0
        %2449 = vmatprep.mubr.f32.mxu0 0.0
        %2450 = vmatmul.mubr.f32.gmra.mrb[0].mxu0 %v2377
        %v2451 = vpop.f32.mrb[0].mxu0
        %v2452 = vadd.f32 0.0, %v2451
        %v2453 = vpop.f32.mrb[0].mxu0
        %2454 = vmatprep.mubr.f32.mxu0 0.0
        %2455 = vmatmul.mubr.f32.gmra.mrb[0].mxu0 %v2380
        %v2456 = vpop.f32.mrb[0].mxu0
        %v2457 = vadd.f32 0.0, %v2456
        %v2458 = vpop.f32.mrb[0].mxu0
        %2459 = vdwg.mxu0
        %v2460 = vld [vmem:[%s4 + $0x170] sm:$0xff]
        %v2461 = vld [vmem:[%s4 + $0x178] sm:$0xff]
        %v2462 = vld [vmem:[%s4 + $0x180] sm:$0xff]
        %v2463 = vld [vmem:[%s4 + $0x188] sm:$0xff]
        %v2464 = vld [vmem:[%s4 + $0x190] sm:$0xff]
        %v2465 = vld [vmem:[%s4 + $0x198] sm:$0x3]
        %2467 = vset.pattern.permute.xlu0 0
        %2468 = vperm.xlu0 %2467, %v2460
        %v2469 = vpop.permute.xlu0 %2468
        %2472 = vset.pattern.permute.xlu0 0
        %2473 = vperm.xlu0 %2472, %v2461
        %v2474 = vpop.permute.xlu0 %2473
        %2477 = vset.pattern.permute.xlu0 0
        %2478 = vperm.xlu0 %2477, %v2462
        %v2479 = vpop.permute.xlu0 %2478
        %2482 = vset.pattern.permute.xlu0 0
        %2483 = vperm.xlu0 %2482, %v2463
        %v2484 = vpop.permute.xlu0 %2483
        %2487 = vset.pattern.permute.xlu0 0
        %2488 = vperm.xlu0 %2487, %v2464
        %v2489 = vpop.permute.xlu0 %2488
        %2492 = vset.pattern.permute.xlu0 0
        %2493 = vperm.xlu0 %2492, %v2465
        %v2494 = vpop.permute.xlu0 %2493
        %v2496 = vmul.f32 %v2298, %v2469
        %v2497 = vmul.f32 %v2303, %v2474
        %v2498 = vmul.f32 %v2308, %v2479
        %v2499 = vmul.f32 %v2313, %v2484
        %v2500 = vmul.f32 %v2318, %v2489
        %v2501 = vmul.f32 %v2323, %v2494
        %v2503 = vsel %vm1155, %v2457, 0
        %2505 = vmatprep.subr.mxu0 0.0
        %2506 = vmatpush1.msra.mxu0 %v2452
        %2507 = vmatprep.subr.mxu0 0.0
        %2508 = vmatpush1.msra.mxu0 %v2503
        %2509 = vmatprep.subr.mxu0 0.0
        %2510 = vmatpush1.msra.mxu0 0.0
        %2511 = vmatprep.subr.mxu0 0.0
        %2512 = vmatpush1.msra.mxu0 0.0
        %2513 = vmatprep.subr.mxu0 0.0
        %2514 = vmatpush1.msra.mxu0 0.0
        %2515 = vmatprep.subr.mxu0 0.0
        %2516 = vmatpush1.msra.mxu0 0.0
        %2517 = vmatprep.subr.mxu0 0.0
        %2518 = vmatpush1.msra.mxu0 0.0
        %2519 = vmatprep.subr.mxu0 0.0
        %2520 = vmatpush1.msra.mxu0 0.0
        %2521 = vmatprep.subr.mxu0 0.0
        %2522 = vmatpush1.msra.mxu0 0.0
        %2523 = vmatprep.subr.mxu0 0.0
        %2524 = vmatpush1.msra.mxu0 0.0
        %2525 = vmatprep.subr.mxu0 0.0
        %2526 = vmatpush1.msra.mxu0 0.0
        %2527 = vmatprep.subr.mxu0 0.0
        %2528 = vmatpush1.msra.mxu0 0.0
        %2529 = vmatprep.subr.mxu0 0.0
        %2530 = vmatpush1.msra.mxu0 0.0
        %2531 = vmatprep.subr.mxu0 0.0
        %2532 = vmatpush1.msra.mxu0 0.0
        %2533 = vmatprep.subr.mxu0 0.0
        %2534 = vmatpush1.msra.mxu0 0.0
        %2535 = vmatprep.subr.mxu0 0.0
        %2536 = vmatpush1.msra.mxu0 0.0
        %2537 = vmatprep.subr.mxu0 0.0
        %2538 = vmatpush1.msra.mxu0 0.0
        %2539 = vmatprep.subr.mxu0 0.0
        %2540 = vmatpush1.msra.mxu0 0.0
        %2541 = vmatprep.subr.mxu0 0.0
        %2542 = vmatpush1.msra.mxu0 0.0
        %2543 = vmatprep.subr.mxu0 0.0
        %2544 = vmatpush1.msra.mxu0 0.0
        %2545 = vmatprep.subr.mxu0 0.0
        %2546 = vmatpush1.msra.mxu0 0.0
        %2547 = vmatprep.subr.mxu0 0.0
        %2548 = vmatpush1.msra.mxu0 0.0
        %2549 = vmatprep.subr.mxu0 0.0
        %2550 = vmatpush1.msra.mxu0 0.0
        %2551 = vmatprep.subr.mxu0 0.0
        %2552 = vmatpush1.msra.mxu0 0.0
        %2553 = vmatprep.subr.mxu0 0.0
        %2554 = vmatpush1.msra.mxu0 0.0
        %2555 = vmatprep.subr.mxu0 0.0
        %2556 = vmatpush1.msra.mxu0 0.0
        %2557 = vmatprep.subr.mxu0 0.0
        %2558 = vmatpush1.msra.mxu0 0.0
        %2559 = vmatprep.subr.mxu0 0.0
        %2560 = vmatpush1.msra.mxu0 0.0
        %2561 = vmatprep.subr.mxu0 0.0
        %2562 = vmatpush1.msra.mxu0 0.0
        %2563 = vmatprep.subr.mxu0 0.0
        %2564 = vmatpush1.msra.mxu0 0.0
        %2565 = vmatprep.subr.mxu0 0.0
        %2566 = vmatpush1.msra.mxu0 0.0
        %2567 = vmatprep.subr.mxu0 0.0
        %2568 = vmatpush1.msra.mxu0 0.0
        %2569 = vmatprep.mubr.f32.mxu0 0.0
        %2570 = vmatmul.mubr.f32.gmra.mrb[0].mxu0 %v1672
        %v2571 = vpop.f32.mrb[0].mxu0
        %v2572 = vadd.f32 0.0, %v2571
        %v2573 = vpop.f32.mrb[0].mxu0
        %2574 = vmatprep.mubr.f32.mxu0 0.0
        %2575 = vmatmul.mubr.f32.gmra.mrb[0].mxu0 %v1675
        %v2576 = vpop.f32.mrb[0].mxu0
        %v2577 = vadd.f32 0.0, %v2576
        %v2578 = vpop.f32.mrb[0].mxu0
        %2579 = vmatprep.mubr.f32.mxu0 0.0
        %2580 = vmatmul.mubr.f32.gmra.mrb[0].mxu0 %v1678
        %v2581 = vpop.f32.mrb[0].mxu0
        %v2582 = vadd.f32 0.0, %v2581
        %v2583 = vpop.f32.mrb[0].mxu0
        %2584 = vmatprep.mubr.f32.mxu0 0.0
        %2585 = vmatmul.mubr.f32.gmra.mrb[0].mxu0 %v1681
        %v2586 = vpop.f32.mrb[0].mxu0
        %v2587 = vadd.f32 0.0, %v2586
        %v2588 = vpop.f32.mrb[0].mxu0
        %2589 = vmatprep.mubr.f32.mxu0 0.0
        %2590 = vmatmul.mubr.f32.gmra.mrb[0].mxu0 %v1684
        %v2591 = vpop.f32.mrb[0].mxu0
        %v2592 = vadd.f32 0.0, %v2591
        %v2593 = vpop.f32.mrb[0].mxu0
        %2594 = vmatprep.mubr.f32.mxu0 0.0
        %2595 = vmatmul.mubr.f32.gmra.mrb[0].mxu0 %v1687
        %v2596 = vpop.f32.mrb[0].mxu0
        %v2597 = vadd.f32 0.0, %v2596
        %v2598 = vpop.f32.mrb[0].mxu0
        %2599 = vdwg.mxu0
        %v2600 = vmul.f32 %v2496, %v2572
        %v2601 = vmul.f32 %v2497, %v2577
        %v2602 = vmul.f32 %v2498, %v2582
        %v2603 = vmul.f32 %v2499, %v2587
        %v2604 = vmul.f32 %v2500, %v2592
        %v2605 = vmul.f32 %v2501, %v2597
        %v2607 = vsel %vm1964, %v2605, 0
        %2609 = vmatprep.subr.mxu0 0.0
        %2610 = vmatpush1.msra.mxu0 %v2600
        %2611 = vmatprep.subr.mxu0 0.0
        %2612 = vmatpush1.msra.mxu0 %v2601
        %2613 = vmatprep.subr.mxu0 0.0
        %2614 = vmatpush1.msra.mxu0 %v2602
        %2615 = vmatprep.subr.mxu0 0.0
        %2616 = vmatpush1.msra.mxu0 %v2603
        %2617 = vmatprep.subr.mxu0 0.0
        %2618 = vmatpush1.msra.mxu0 %v2604
        %2619 = vmatprep.subr.mxu0 0.0
        %2620 = vmatpush1.msra.mxu0 %v2607
        %2621 = vmatprep.subr.mxu0 0.0
        %2622 = vmatpush1.msra.mxu0 0.0
        %2623 = vmatprep.subr.mxu0 0.0
        %2624 = vmatpush1.msra.mxu0 0.0
        %2625 = vmatprep.subr.mxu0 0.0
        %2626 = vmatpush1.msra.mxu0 0.0
        %2627 = vmatprep.subr.mxu0 0.0
        %2628 = vmatpush1.msra.mxu0 0.0
        %2629 = vmatprep.subr.mxu0 0.0
        %2630 = vmatpush1.msra.mxu0 0.0
        %2631 = vmatprep.subr.mxu0 0.0
        %2632 = vmatpush1.msra.mxu0 0.0
        %2633 = vmatprep.subr.mxu0 0.0
        %2634 = vmatpush1.msra.mxu0 0.0
        %2635 = vmatprep.subr.mxu0 0.0
        %2636 = vmatpush1.msra.mxu0 0.0
        %2637 = vmatprep.subr.mxu0 0.0
        %2638 = vmatpush1.msra.mxu0 0.0
        %2639 = vmatprep.subr.mxu0 0.0
        %2640 = vmatpush1.msra.mxu0 0.0
        %2641 = vmatprep.subr.mxu0 0.0
        %2642 = vmatpush1.msra.mxu0 0.0
        %2643 = vmatprep.subr.mxu0 0.0
        %2644 = vmatpush1.msra.mxu0 0.0
        %2645 = vmatprep.subr.mxu0 0.0
        %2646 = vmatpush1.msra.mxu0 0.0
        %2647 = vmatprep.subr.mxu0 0.0
        %2648 = vmatpush1.msra.mxu0 0.0
        %2649 = vmatprep.subr.mxu0 0.0
        %2650 = vmatpush1.msra.mxu0 0.0
        %2651 = vmatprep.subr.mxu0 0.0
        %2652 = vmatpush1.msra.mxu0 0.0
        %2653 = vmatprep.subr.mxu0 0.0
        %2654 = vmatpush1.msra.mxu0 0.0
        %2655 = vmatprep.subr.mxu0 0.0
        %2656 = vmatpush1.msra.mxu0 0.0
        %2657 = vmatprep.subr.mxu0 0.0
        %2658 = vmatpush1.msra.mxu0 0.0
        %2659 = vmatprep.subr.mxu0 0.0
        %2660 = vmatpush1.msra.mxu0 0.0
        %2661 = vmatprep.subr.mxu0 0.0
        %2662 = vmatpush1.msra.mxu0 0.0
        %2663 = vmatprep.subr.mxu0 0.0
        %2664 = vmatpush1.msra.mxu0 0.0
        %2665 = vmatprep.subr.mxu0 0.0
        %2666 = vmatpush1.msra.mxu0 0.0
        %2667 = vmatprep.subr.mxu0 0.0
        %2668 = vmatpush1.msra.mxu0 0.0
        %2669 = vmatprep.subr.mxu0 0.0
        %2670 = vmatpush1.msra.mxu0 0.0
        %2671 = vmatprep.subr.mxu0 0.0
        %2672 = vmatpush1.msra.mxu0 0.0
        %2673 = vmatprep.mubr.f32.mxu0 0.0
        %2674 = vmatmul.mubr.f32.gmra.mrb[0].mxu0 %v2000
        %v2675 = vpop.f32.mrb[0].mxu0
        %v2676 = vadd.f32 0.0, %v2675
        %v2677 = vpop.f32.mrb[0].mxu0
        %2678 = vmatprep.mubr.f32.mxu0 0.0
        %2679 = vmatmul.mubr.f32.gmra.mrb[0].mxu0 %v2003
        %v2680 = vpop.f32.mrb[0].mxu0
        %v2681 = vadd.f32 0.0, %v2680
        %v2682 = vpop.f32.mrb[0].mxu0
        %2683 = vmatprep.mubr.f32.mxu0 0.0
        %2684 = vmatmul.mubr.f32.gmra.mrb[0].mxu0 %v2006
        %v2685 = vpop.f32.mrb[0].mxu0
        %v2686 = vadd.f32 0.0, %v2685
        %v2687 = vpop.f32.mrb[0].mxu0
        %2688 = vmatprep.mubr.f32.mxu0 0.0
        %2689 = vmatmul.mubr.f32.gmra.mrb[0].mxu0 %v2009
        %v2690 = vpop.f32.mrb[0].mxu0
        %v2691 = vadd.f32 0.0, %v2690
        %v2692 = vpop.f32.mrb[0].mxu0
        %2693 = vdwg.mxu0
        %v2694 = vld [vmem:[%s4 + $0x1a0] sm:$0xf]
        %v2695 = vld [vmem:[%s4 + $0x1a8] sm:$0x1]
        %v2696 = vlaneseq
        %v2697 = vshrl.u32 %v2696, 7
        %v2698 = vsub.s32 0, %v2697
        %v2699 = vrot.slane %v2695, %v2698
        %v2701 = vsel %vm1318, %v2694, 0
        %v2704 = vsel %vm1155, %v2691, 0
        %2706 = vmatprep.subr.mxu0 0.0
        %2707 = vmatpush1.msra.mxu0 %v2676
        %2708 = vmatprep.subr.mxu0 0.0
        %2709 = vmatpush1.msra.mxu0 %v2681
        %2710 = vmatprep.subr.mxu0 0.0
        %2711 = vmatpush1.msra.mxu0 %v2686
        %2712 = vmatprep.subr.mxu0 0.0
        %2713 = vmatpush1.msra.mxu0 %v2704
        %2714 = vmatprep.subr.mxu0 0.0
        %2715 = vmatpush1.msra.mxu0 0.0
        %2716 = vmatprep.subr.mxu0 0.0
        %2717 = vmatpush1.msra.mxu0 0.0
        %2718 = vmatprep.subr.mxu0 0.0
        %2719 = vmatpush1.msra.mxu0 0.0
        %2720 = vmatprep.subr.mxu0 0.0
        %2721 = vmatpush1.msra.mxu0 0.0
        %2722 = vmatprep.subr.mxu0 0.0
        %2723 = vmatpush1.msra.mxu0 0.0
        %2724 = vmatprep.subr.mxu0 0.0
        %2725 = vmatpush1.msra.mxu0 0.0
        %2726 = vmatprep.subr.mxu0 0.0
        %2727 = vmatpush1.msra.mxu0 0.0
        %2728 = vmatprep.subr.mxu0 0.0
        %2729 = vmatpush1.msra.mxu0 0.0
        %2730 = vmatprep.subr.mxu0 0.0
        %2731 = vmatpush1.msra.mxu0 0.0
        %2732 = vmatprep.subr.mxu0 0.0
        %2733 = vmatpush1.msra.mxu0 0.0
        %2734 = vmatprep.subr.mxu0 0.0
        %2735 = vmatpush1.msra.mxu0 0.0
        %2736 = vmatprep.subr.mxu0 0.0
        %2737 = vmatpush1.msra.mxu0 0.0
        %2738 = vmatprep.subr.mxu0 0.0
        %2739 = vmatpush1.msra.mxu0 0.0
        %2740 = vmatprep.subr.mxu0 0.0
        %2741 = vmatpush1.msra.mxu0 0.0
        %2742 = vmatprep.subr.mxu0 0.0
        %2743 = vmatpush1.msra.mxu0 0.0
        %2744 = vmatprep.subr.mxu0 0.0
        %2745 = vmatpush1.msra.mxu0 0.0
        %2746 = vmatprep.subr.mxu0 0.0
        %2747 = vmatpush1.msra.mxu0 0.0
        %2748 = vmatprep.subr.mxu0 0.0
        %2749 = vmatpush1.msra.mxu0 0.0
        %2750 = vmatprep.subr.mxu0 0.0
        %2751 = vmatpush1.msra.mxu0 0.0
        %2752 = vmatprep.subr.mxu0 0.0
        %2753 = vmatpush1.msra.mxu0 0.0
        %2754 = vmatprep.subr.mxu0 0.0
        %2755 = vmatpush1.msra.mxu0 0.0
        %2756 = vmatprep.subr.mxu0 0.0
        %2757 = vmatpush1.msra.mxu0 0.0
        %2758 = vmatprep.subr.mxu0 0.0
        %2759 = vmatpush1.msra.mxu0 0.0
        %2760 = vmatprep.subr.mxu0 0.0
        %2761 = vmatpush1.msra.mxu0 0.0
        %2762 = vmatprep.subr.mxu0 0.0
        %2763 = vmatpush1.msra.mxu0 0.0
        %2764 = vmatprep.subr.mxu0 0.0
        %2765 = vmatpush1.msra.mxu0 0.0
        %2766 = vmatprep.subr.mxu0 0.0
        %2767 = vmatpush1.msra.mxu0 0.0
        %2768 = vmatprep.subr.mxu0 0.0
        %2769 = vmatpush1.msra.mxu0 0.0
        %2770 = vmatprep.mubr.f32.mxu0 0.0
        %2771 = vmatmul.mubr.f32.gmra.mrb[0].mxu0 %v2701
        %v2772 = vpop.f32.mrb[0].mxu0
        %v2773 = vadd.f32 %v2699, %v2772
        %v2774 = vpop.f32.mrb[0].mxu0
        %2775 = vdwg.mxu0
        %v2776 = vld [vmem:[#allocation2 + $0x100] sm:$0xff]
        %v2777 = vld [vmem:[#allocation2 + $0x108] sm:$0xff]
        %v2778 = vld [vmem:[#allocation2 + $0x110] sm:$0xff]
        %v2779 = vld [vmem:[#allocation2 + $0x118] sm:$0xff]
        %v2780 = vld [vmem:[#allocation2 + $0x120] sm:$0xff]
        %v2781 = vld [vmem:[#allocation2 + $0x128] sm:$0xff]
        %v2782 = vld [vmem:[#allocation2 + $0x130] sm:$0xff]
        %v2783 = vld [vmem:[#allocation2 + $0x138] sm:$0xff]
        %v2784 = vld [vmem:[#allocation2 + $0x140] sm:$0xff]
        %v2785 = vld [vmem:[#allocation2 + $0x148] sm:$0xff]
        %v2786 = vld [vmem:[#allocation2 + $0x150] sm:$0xff]
        %v2787 = vld [vmem:[#allocation2 + $0x158] sm:$0xff]
        %v2788 = vld [vmem:[#allocation2 + $0x160] sm:$0xff]
        %v2789 = vld [vmem:[#allocation2 + $0x168] sm:$0xff]
        %v2790 = vld [vmem:[#allocation2 + $0x170] sm:$0xff]
        %v2791 = vld [vmem:[#allocation2 + $0x178] sm:$0xff]
        %v2792 = vld [vmem:[#allocation2 + $0x180] sm:$0xff]
        %v2793 = vld [vmem:[#allocation2 + $0x188] sm:$0xff]
        %v2794 = vld [vmem:[#allocation2 + $0x190] sm:$0xff]
        %v2795 = vld [vmem:[#allocation2 + $0x198] sm:$0xff]
        %v2796 = vld [vmem:[#allocation2 + $0x1a0] sm:$0xff]
        %v2797 = vld [vmem:[#allocation2 + $0x1a8] sm:$0xff]
        %v2798 = vld [vmem:[#allocation2 + $0x1b0] sm:$0xff]
        %v2799 = vld [vmem:[#allocation2 + $0x1b8] sm:$0xff]
        %v2800 = vld [vmem:[#allocation2 + $0x1c0] sm:$0xff]
        %v2801 = vld [vmem:[#allocation2 + $0x1c8] sm:$0xff]
        %v2802 = vld [vmem:[#allocation2 + $0x1d0] sm:$0xff]
        %v2803 = vld [vmem:[#allocation2 + $0x1d8] sm:$0xff]
        %v2804 = vld [vmem:[#allocation2 + $0x1e0] sm:$0xff]
        %v2805 = vld [vmem:[#allocation2 + $0x1e8] sm:$0xff]
        %v2806 = vld [vmem:[#allocation2 + $0x1f0] sm:$0xff]
        %v2807 = vld [vmem:[#allocation2 + $0x1f8] sm:$0xff]
        %v2809 = vrot.slane %v2773, 1
        %2811 = vmatprep.subr.mxu0 0.0
        %2812 = vmatpush1.msra.mxu0 %v2792
        %2813 = vmatprep.subr.mxu0 0.0
        %2814 = vmatpush1.msra.mxu0 %v2793
        %2815 = vmatprep.subr.mxu0 0.0
        %2816 = vmatpush1.msra.mxu0 %v2794
        %2817 = vmatprep.subr.mxu0 0.0
        %2818 = vmatpush1.msra.mxu0 %v2795
        %2819 = vmatprep.subr.mxu0 0.0
        %2820 = vmatpush1.msra.mxu0 %v2796
        %2821 = vmatprep.subr.mxu0 0.0
        %2822 = vmatpush1.msra.mxu0 %v2797
        %2823 = vmatprep.subr.mxu0 0.0
        %2824 = vmatpush1.msra.mxu0 %v2798
        %2825 = vmatprep.subr.mxu0 0.0
        %2826 = vmatpush1.msra.mxu0 %v2799
        %2827 = vmatprep.subr.mxu0 0.0
        %2828 = vmatpush1.msra.mxu0 %v2800
        %2829 = vmatprep.subr.mxu0 0.0
        %2830 = vmatpush1.msra.mxu0 %v2801
        %2831 = vmatprep.subr.mxu0 0.0
        %2832 = vmatpush1.msra.mxu0 %v2802
        %2833 = vmatprep.subr.mxu0 0.0
        %2834 = vmatpush1.msra.mxu0 %v2803
        %2835 = vmatprep.subr.mxu0 0.0
        %2836 = vmatpush1.msra.mxu0 %v2804
        %2837 = vmatprep.subr.mxu0 0.0
        %2838 = vmatpush1.msra.mxu0 %v2805
        %2839 = vmatprep.subr.mxu0 0.0
        %2840 = vmatpush1.msra.mxu0 %v2806
        %2841 = vmatprep.subr.mxu0 0.0
        %2842 = vmatpush1.msra.mxu0 %v2807
        %2843 = vmatprep.subr.mxu0 0.0
        %2844 = vmatpush1.msra.mxu0 0.0
        %2845 = vmatprep.subr.mxu0 0.0
        %2846 = vmatpush1.msra.mxu0 0.0
        %2847 = vmatprep.subr.mxu0 0.0
        %2848 = vmatpush1.msra.mxu0 0.0
        %2849 = vmatprep.subr.mxu0 0.0
        %2850 = vmatpush1.msra.mxu0 0.0
        %2851 = vmatprep.subr.mxu0 0.0
        %2852 = vmatpush1.msra.mxu0 0.0
        %2853 = vmatprep.subr.mxu0 0.0
        %2854 = vmatpush1.msra.mxu0 0.0
        %2855 = vmatprep.subr.mxu0 0.0
        %2856 = vmatpush1.msra.mxu0 0.0
        %2857 = vmatprep.subr.mxu0 0.0
        %2858 = vmatpush1.msra.mxu0 0.0
        %2859 = vmatprep.subr.mxu0 0.0
        %2860 = vmatpush1.msra.mxu0 0.0
        %2861 = vmatprep.subr.mxu0 0.0
        %2862 = vmatpush1.msra.mxu0 0.0
        %2863 = vmatprep.subr.mxu0 0.0
        %2864 = vmatpush1.msra.mxu0 0.0
        %2865 = vmatprep.subr.mxu0 0.0
        %2866 = vmatpush1.msra.mxu0 0.0
        %2867 = vmatprep.subr.mxu0 0.0
        %2868 = vmatpush1.msra.mxu0 0.0
        %2869 = vmatprep.subr.mxu0 0.0
        %2870 = vmatpush1.msra.mxu0 0.0
        %2871 = vmatprep.subr.mxu0 0.0
        %2872 = vmatpush1.msra.mxu0 0.0
        %2873 = vmatprep.subr.mxu0 0.0
        %2874 = vmatpush1.msra.mxu0 0.0
        %2875 = vmatprep.mubr.f32.mxu0 0.0
        %2876 = vmatmul.mubr.f32.gmra.mrb[0].mxu0 %v2809
        %v2877 = vpop.f32.mrb[0].mxu0
        %v2878 = vadd.f32 0.0, %v2877
        %v2879 = vpop.f32.mrb[0].mxu0
        %2880 = vdwg.mxu0
        %2881 = vmatprep.subr.mxu0 0.0
        %2882 = vmatpush1.msra.mxu0 %v2776
        %2883 = vmatprep.subr.mxu0 0.0
        %2884 = vmatpush1.msra.mxu0 %v2777
        %2885 = vmatprep.subr.mxu0 0.0
        %2886 = vmatpush1.msra.mxu0 %v2778
        %2887 = vmatprep.subr.mxu0 0.0
        %2888 = vmatpush1.msra.mxu0 %v2779
        %2889 = vmatprep.subr.mxu0 0.0
        %2890 = vmatpush1.msra.mxu0 %v2780
        %2891 = vmatprep.subr.mxu0 0.0
        %2892 = vmatpush1.msra.mxu0 %v2781
        %2893 = vmatprep.subr.mxu0 0.0
        %2894 = vmatpush1.msra.mxu0 %v2782
        %2895 = vmatprep.subr.mxu0 0.0
        %2896 = vmatpush1.msra.mxu0 %v2783
        %2897 = vmatprep.subr.mxu0 0.0
        %2898 = vmatpush1.msra.mxu0 %v2784
        %2899 = vmatprep.subr.mxu0 0.0
        %2900 = vmatpush1.msra.mxu0 %v2785
        %2901 = vmatprep.subr.mxu0 0.0
        %2902 = vmatpush1.msra.mxu0 %v2786
        %2903 = vmatprep.subr.mxu0 0.0
        %2904 = vmatpush1.msra.mxu0 %v2787
        %2905 = vmatprep.subr.mxu0 0.0
        %2906 = vmatpush1.msra.mxu0 %v2788
        %2907 = vmatprep.subr.mxu0 0.0
        %2908 = vmatpush1.msra.mxu0 %v2789
        %2909 = vmatprep.subr.mxu0 0.0
        %2910 = vmatpush1.msra.mxu0 %v2790
        %2911 = vmatprep.subr.mxu0 0.0
        %2912 = vmatpush1.msra.mxu0 %v2791
        %2913 = vmatprep.subr.mxu0 0.0
        %2914 = vmatpush1.msra.mxu0 0.0
        %2915 = vmatprep.subr.mxu0 0.0
        %2916 = vmatpush1.msra.mxu0 0.0
        %2917 = vmatprep.subr.mxu0 0.0
        %2918 = vmatpush1.msra.mxu0 0.0
        %2919 = vmatprep.subr.mxu0 0.0
        %2920 = vmatpush1.msra.mxu0 0.0
        %2921 = vmatprep.subr.mxu0 0.0
        %2922 = vmatpush1.msra.mxu0 0.0
        %2923 = vmatprep.subr.mxu0 0.0
        %2924 = vmatpush1.msra.mxu0 0.0
        %2925 = vmatprep.subr.mxu0 0.0
        %2926 = vmatpush1.msra.mxu0 0.0
        %2927 = vmatprep.subr.mxu0 0.0
        %2928 = vmatpush1.msra.mxu0 0.0
        %2929 = vmatprep.subr.mxu0 0.0
        %2930 = vmatpush1.msra.mxu0 0.0
        %2931 = vmatprep.subr.mxu0 0.0
        %2932 = vmatpush1.msra.mxu0 0.0
        %2933 = vmatprep.subr.mxu0 0.0
        %2934 = vmatpush1.msra.mxu0 0.0
        %2935 = vmatprep.subr.mxu0 0.0
        %2936 = vmatpush1.msra.mxu0 0.0
        %2937 = vmatprep.subr.mxu0 0.0
        %2938 = vmatpush1.msra.mxu0 0.0
        %2939 = vmatprep.subr.mxu0 0.0
        %2940 = vmatpush1.msra.mxu0 0.0
        %2941 = vmatprep.subr.mxu0 0.0
        %2942 = vmatpush1.msra.mxu0 0.0
        %2943 = vmatprep.subr.mxu0 0.0
        %2944 = vmatpush1.msra.mxu0 0.0
        %2945 = vmatprep.mubr.f32.mxu0 0.0
        %2946 = vmatmul.mubr.f32.gmra.mrb[0].mxu0 %v2773
        %v2947 = vpop.f32.mrb[0].mxu0
        %v2948 = vadd.f32 %v2878, %v2947
        %v2949 = vpop.f32.mrb[0].mxu0
        %2950 = vdwg.mxu0
        %v2951 = vld [vmem:[#allocation2 + $0x200] sm:$0xff]
        %v2952 = vld [vmem:[#allocation2 + $0x208] sm:$0xff]
        %v2953 = vld [vmem:[#allocation2 + $0x210] sm:$0xff]
        %v2954 = vld [vmem:[#allocation2 + $0x218] sm:$0xff]
        %v2955 = vld [vmem:[#allocation2 + $0x220] sm:$0xff]
        %v2956 = vld [vmem:[#allocation2 + $0x228] sm:$0xff]
        %v2957 = vld [vmem:[#allocation2 + $0x230] sm:$0xff]
        %v2958 = vld [vmem:[#allocation2 + $0x238] sm:$0xff]
        %v2959 = vld [vmem:[#allocation2 + $0x240] sm:$0xff]
        %v2960 = vld [vmem:[#allocation2 + $0x248] sm:$0xff]
        %v2961 = vld [vmem:[#allocation2 + $0x250] sm:$0xff]
        %v2962 = vld [vmem:[#allocation2 + $0x258] sm:$0xff]
        %v2963 = vld [vmem:[#allocation2 + $0x260] sm:$0xff]
        %v2964 = vld [vmem:[#allocation2 + $0x268] sm:$0xff]
        %v2965 = vld [vmem:[#allocation2 + $0x270] sm:$0xff]
        %v2966 = vld [vmem:[#allocation2 + $0x278] sm:$0xff]
        %v2967 = vrot.slane %v2773, 2
        %2969 = vmatprep.subr.mxu0 0.0
        %2970 = vmatpush1.msra.mxu0 %v2951
        %2971 = vmatprep.subr.mxu0 0.0
        %2972 = vmatpush1.msra.mxu0 %v2952
        %2973 = vmatprep.subr.mxu0 0.0
        %2974 = vmatpush1.msra.mxu0 %v2953
        %2975 = vmatprep.subr.mxu0 0.0
        %2976 = vmatpush1.msra.mxu0 %v2954
        %2977 = vmatprep.subr.mxu0 0.0
        %2978 = vmatpush1.msra.mxu0 %v2955
        %2979 = vmatprep.subr.mxu0 0.0
        %2980 = vmatpush1.msra.mxu0 %v2956
        %2981 = vmatprep.subr.mxu0 0.0
        %2982 = vmatpush1.msra.mxu0 %v2957
        %2983 = vmatprep.subr.mxu0 0.0
        %2984 = vmatpush1.msra.mxu0 %v2958
        %2985 = vmatprep.subr.mxu0 0.0
        %2986 = vmatpush1.msra.mxu0 %v2959
        %2987 = vmatprep.subr.mxu0 0.0
        %2988 = vmatpush1.msra.mxu0 %v2960
        %2989 = vmatprep.subr.mxu0 0.0
        %2990 = vmatpush1.msra.mxu0 %v2961
        %2991 = vmatprep.subr.mxu0 0.0
        %2992 = vmatpush1.msra.mxu0 %v2962
        %2993 = vmatprep.subr.mxu0 0.0
        %2994 = vmatpush1.msra.mxu0 %v2963
        %2995 = vmatprep.subr.mxu0 0.0
        %2996 = vmatpush1.msra.mxu0 %v2964
        %2997 = vmatprep.subr.mxu0 0.0
        %2998 = vmatpush1.msra.mxu0 %v2965
        %2999 = vmatprep.subr.mxu0 0.0
        %3000 = vmatpush1.msra.mxu0 %v2966
        %3001 = vmatprep.subr.mxu0 0.0
        %3002 = vmatpush1.msra.mxu0 0.0
        %3003 = vmatprep.subr.mxu0 0.0
        %3004 = vmatpush1.msra.mxu0 0.0
        %3005 = vmatprep.subr.mxu0 0.0
        %3006 = vmatpush1.msra.mxu0 0.0
        %3007 = vmatprep.subr.mxu0 0.0
        %3008 = vmatpush1.msra.mxu0 0.0
        %3009 = vmatprep.subr.mxu0 0.0
        %3010 = vmatpush1.msra.mxu0 0.0
        %3011 = vmatprep.subr.mxu0 0.0
        %3012 = vmatpush1.msra.mxu0 0.0
        %3013 = vmatprep.subr.mxu0 0.0
        %3014 = vmatpush1.msra.mxu0 0.0
        %3015 = vmatprep.subr.mxu0 0.0
        %3016 = vmatpush1.msra.mxu0 0.0
        %3017 = vmatprep.subr.mxu0 0.0
        %3018 = vmatpush1.msra.mxu0 0.0
        %3019 = vmatprep.subr.mxu0 0.0
        %3020 = vmatpush1.msra.mxu0 0.0
        %3021 = vmatprep.subr.mxu0 0.0
        %3022 = vmatpush1.msra.mxu0 0.0
        %3023 = vmatprep.subr.mxu0 0.0
        %3024 = vmatpush1.msra.mxu0 0.0
        %3025 = vmatprep.subr.mxu0 0.0
        %3026 = vmatpush1.msra.mxu0 0.0
        %3027 = vmatprep.subr.mxu0 0.0
        %3028 = vmatpush1.msra.mxu0 0.0
        %3029 = vmatprep.subr.mxu0 0.0
        %3030 = vmatpush1.msra.mxu0 0.0
        %3031 = vmatprep.subr.mxu0 0.0
        %3032 = vmatpush1.msra.mxu0 0.0
        %3033 = vmatprep.mubr.f32.mxu0 0.0
        %3034 = vmatmul.mubr.f32.gmra.mrb[0].mxu0 %v2967
        %v3035 = vpop.f32.mrb[0].mxu0
        %v3036 = vadd.f32 0.0, %v3035
        %v3037 = vpop.f32.mrb[0].mxu0
        %3038 = vdwg.mxu0
        %v3039 = vadd.f32 %v2948, %v3036
        %v3040 = vld [vmem:[#allocation2 + $0x280] sm:$0xff]
        %v3041 = vld [vmem:[#allocation2 + $0x288] sm:$0xff]
        %v3042 = vld [vmem:[#allocation2 + $0x290] sm:$0xff]
        %v3043 = vld [vmem:[#allocation2 + $0x298] sm:$0xff]
        %v3044 = vld [vmem:[#allocation2 + $0x2a0] sm:$0xff]
        %v3045 = vld [vmem:[#allocation2 + $0x2a8] sm:$0xff]
        %v3046 = vld [vmem:[#allocation2 + $0x2b0] sm:$0xff]
        %v3047 = vld [vmem:[#allocation2 + $0x2b8] sm:$0xff]
        %v3048 = vld [vmem:[#allocation2 + $0x2c0] sm:$0xff]
        %v3049 = vld [vmem:[#allocation2 + $0x2c8] sm:$0xff]
        %v3050 = vld [vmem:[#allocation2 + $0x2d0] sm:$0xff]
        %v3051 = vld [vmem:[#allocation2 + $0x2d8] sm:$0xff]
        %v3052 = vld [vmem:[#allocation2 + $0x2e0] sm:$0xff]
        %v3053 = vld [vmem:[#allocation2 + $0x2e8] sm:$0xff]
        %v3054 = vld [vmem:[#allocation2 + $0x2f0] sm:$0xff]
        %v3055 = vld [vmem:[#allocation2 + $0x2f8] sm:$0xff]
        %v3056 = vrot.slane %v2773, 3
        %3058 = vmatprep.subr.mxu0 0.0
        %3059 = vmatpush1.msra.mxu0 %v3040
        %3060 = vmatprep.subr.mxu0 0.0
        %3061 = vmatpush1.msra.mxu0 %v3041
        %3062 = vmatprep.subr.mxu0 0.0
        %3063 = vmatpush1.msra.mxu0 %v3042
        %3064 = vmatprep.subr.mxu0 0.0
        %3065 = vmatpush1.msra.mxu0 %v3043
        %3066 = vmatprep.subr.mxu0 0.0
        %3067 = vmatpush1.msra.mxu0 %v3044
        %3068 = vmatprep.subr.mxu0 0.0
        %3069 = vmatpush1.msra.mxu0 %v3045
        %3070 = vmatprep.subr.mxu0 0.0
        %3071 = vmatpush1.msra.mxu0 %v3046
        %3072 = vmatprep.subr.mxu0 0.0
        %3073 = vmatpush1.msra.mxu0 %v3047
        %3074 = vmatprep.subr.mxu0 0.0
        %3075 = vmatpush1.msra.mxu0 %v3048
        %3076 = vmatprep.subr.mxu0 0.0
        %3077 = vmatpush1.msra.mxu0 %v3049
        %3078 = vmatprep.subr.mxu0 0.0
        %3079 = vmatpush1.msra.mxu0 %v3050
        %3080 = vmatprep.subr.mxu0 0.0
        %3081 = vmatpush1.msra.mxu0 %v3051
        %3082 = vmatprep.subr.mxu0 0.0
        %3083 = vmatpush1.msra.mxu0 %v3052
        %3084 = vmatprep.subr.mxu0 0.0
        %3085 = vmatpush1.msra.mxu0 %v3053
        %3086 = vmatprep.subr.mxu0 0.0
        %3087 = vmatpush1.msra.mxu0 %v3054
        %3088 = vmatprep.subr.mxu0 0.0
        %3089 = vmatpush1.msra.mxu0 %v3055
        %3090 = vmatprep.subr.mxu0 0.0
        %3091 = vmatpush1.msra.mxu0 0.0
        %3092 = vmatprep.subr.mxu0 0.0
        %3093 = vmatpush1.msra.mxu0 0.0
        %3094 = vmatprep.subr.mxu0 0.0
        %3095 = vmatpush1.msra.mxu0 0.0
        %3096 = vmatprep.subr.mxu0 0.0
        %3097 = vmatpush1.msra.mxu0 0.0
        %3098 = vmatprep.subr.mxu0 0.0
        %3099 = vmatpush1.msra.mxu0 0.0
        %3100 = vmatprep.subr.mxu0 0.0
        %3101 = vmatpush1.msra.mxu0 0.0
        %3102 = vmatprep.subr.mxu0 0.0
        %3103 = vmatpush1.msra.mxu0 0.0
        %3104 = vmatprep.subr.mxu0 0.0
        %3105 = vmatpush1.msra.mxu0 0.0
        %3106 = vmatprep.subr.mxu0 0.0
        %3107 = vmatpush1.msra.mxu0 0.0
        %3108 = vmatprep.subr.mxu0 0.0
        %3109 = vmatpush1.msra.mxu0 0.0
        %3110 = vmatprep.subr.mxu0 0.0
        %3111 = vmatpush1.msra.mxu0 0.0
        %3112 = vmatprep.subr.mxu0 0.0
        %3113 = vmatpush1.msra.mxu0 0.0
        %3114 = vmatprep.subr.mxu0 0.0
        %3115 = vmatpush1.msra.mxu0 0.0
        %3116 = vmatprep.subr.mxu0 0.0
        %3117 = vmatpush1.msra.mxu0 0.0
        %3118 = vmatprep.subr.mxu0 0.0
        %3119 = vmatpush1.msra.mxu0 0.0
        %3120 = vmatprep.subr.mxu0 0.0
        %3121 = vmatpush1.msra.mxu0 0.0
        %3122 = vmatprep.mubr.f32.mxu0 0.0
        %3123 = vmatmul.mubr.f32.gmra.mrb[0].mxu0 %v3056
        %v3124 = vpop.f32.mrb[0].mxu0
        %v3125 = vadd.f32 0.0, %v3124
        %v3126 = vpop.f32.mrb[0].mxu0
        %3127 = vdwg.mxu0
        %v3128 = vadd.f32 %v3039, %v3125
        %v3129 = vld [vmem:[%s4 + $0x1b0] sm:$0xf]
        %v3131 = vsel %vm260, %v293, 0
        %v3134 = vsel %vm883, %v3129, 0
        %3136 = vmatprep.subr.mxu0 0.0
        %3137 = vmatpush1.msra.mxu0 %v3134
        %3138 = vmatprep.subr.mxu0 0.0
        %3139 = vmatpush1.msra.mxu0 0.0
        %3140 = vmatprep.subr.mxu0 0.0
        %3141 = vmatpush1.msra.mxu0 0.0
        %3142 = vmatprep.subr.mxu0 0.0
        %3143 = vmatpush1.msra.mxu0 0.0
        %3144 = vmatprep.subr.mxu0 0.0
        %3145 = vmatpush1.msra.mxu0 0.0
        %3146 = vmatprep.subr.mxu0 0.0
        %3147 = vmatpush1.msra.mxu0 0.0
        %3148 = vmatprep.subr.mxu0 0.0
        %3149 = vmatpush1.msra.mxu0 0.0
        %3150 = vmatprep.subr.mxu0 0.0
        %3151 = vmatpush1.msra.mxu0 0.0
        %3152 = vmatprep.subr.mxu0 0.0
        %3153 = vmatpush1.msra.mxu0 0.0
        %3154 = vmatprep.subr.mxu0 0.0
        %3155 = vmatpush1.msra.mxu0 0.0
        %3156 = vmatprep.subr.mxu0 0.0
        %3157 = vmatpush1.msra.mxu0 0.0
        %3158 = vmatprep.subr.mxu0 0.0
        %3159 = vmatpush1.msra.mxu0 0.0
        %3160 = vmatprep.subr.mxu0 0.0
        %3161 = vmatpush1.msra.mxu0 0.0
        %3162 = vmatprep.subr.mxu0 0.0
        %3163 = vmatpush1.msra.mxu0 0.0
        %3164 = vmatprep.subr.mxu0 0.0
        %3165 = vmatpush1.msra.mxu0 0.0
        %3166 = vmatprep.subr.mxu0 0.0
        %3167 = vmatpush1.msra.mxu0 0.0
        %3168 = vmatprep.subr.mxu0 0.0
        %3169 = vmatpush1.msra.mxu0 0.0
        %3170 = vmatprep.subr.mxu0 0.0
        %3171 = vmatpush1.msra.mxu0 0.0
        %3172 = vmatprep.subr.mxu0 0.0
        %3173 = vmatpush1.msra.mxu0 0.0
        %3174 = vmatprep.subr.mxu0 0.0
        %3175 = vmatpush1.msra.mxu0 0.0
        %3176 = vmatprep.subr.mxu0 0.0
        %3177 = vmatpush1.msra.mxu0 0.0
        %3178 = vmatprep.subr.mxu0 0.0
        %3179 = vmatpush1.msra.mxu0 0.0
        %3180 = vmatprep.subr.mxu0 0.0
        %3181 = vmatpush1.msra.mxu0 0.0
        %3182 = vmatprep.subr.mxu0 0.0
        %3183 = vmatpush1.msra.mxu0 0.0
        %3184 = vmatprep.subr.mxu0 0.0
        %3185 = vmatpush1.msra.mxu0 0.0
        %3186 = vmatprep.subr.mxu0 0.0
        %3187 = vmatpush1.msra.mxu0 0.0
        %3188 = vmatprep.subr.mxu0 0.0
        %3189 = vmatpush1.msra.mxu0 0.0
        %3190 = vmatprep.subr.mxu0 0.0
        %3191 = vmatpush1.msra.mxu0 0.0
        %3192 = vmatprep.subr.mxu0 0.0
        %3193 = vmatpush1.msra.mxu0 0.0
        %3194 = vmatprep.subr.mxu0 0.0
        %3195 = vmatpush1.msra.mxu0 0.0
        %3196 = vmatprep.subr.mxu0 0.0
        %3197 = vmatpush1.msra.mxu0 0.0
        %3198 = vmatprep.subr.mxu0 0.0
        %3199 = vmatpush1.msra.mxu0 0.0
        %3200 = vmatprep.mubr.f32.mxu0 0.0
        %3201 = vmatmul.mubr.f32.gmra.mrb[0].mxu0 %v3131
        %v3202 = vpop.f32.mrb[0].mxu0
        %v3203 = vadd.f32 0.0, %v3202
        %v3204 = vpop.f32.mrb[0].mxu0
        %3205 = vdwg.mxu0
        %v3207 = vsel %vm260, %v271, 0
        %3209 = vmatprep.subr.mxu0 0.0
        %3210 = vmatpush1.msra.mxu0 %v3134
        %3211 = vmatprep.subr.mxu0 0.0
        %3212 = vmatpush1.msra.mxu0 0.0
        %3213 = vmatprep.subr.mxu0 0.0
        %3214 = vmatpush1.msra.mxu0 0.0
        %3215 = vmatprep.subr.mxu0 0.0
        %3216 = vmatpush1.msra.mxu0 0.0
        %3217 = vmatprep.subr.mxu0 0.0
        %3218 = vmatpush1.msra.mxu0 0.0
        %3219 = vmatprep.subr.mxu0 0.0
        %3220 = vmatpush1.msra.mxu0 0.0
        %3221 = vmatprep.subr.mxu0 0.0
        %3222 = vmatpush1.msra.mxu0 0.0
        %3223 = vmatprep.subr.mxu0 0.0
        %3224 = vmatpush1.msra.mxu0 0.0
        %3225 = vmatprep.subr.mxu0 0.0
        %3226 = vmatpush1.msra.mxu0 0.0
        %3227 = vmatprep.subr.mxu0 0.0
        %3228 = vmatpush1.msra.mxu0 0.0
        %3229 = vmatprep.subr.mxu0 0.0
        %3230 = vmatpush1.msra.mxu0 0.0
        %3231 = vmatprep.subr.mxu0 0.0
        %3232 = vmatpush1.msra.mxu0 0.0
        %3233 = vmatprep.subr.mxu0 0.0
        %3234 = vmatpush1.msra.mxu0 0.0
        %3235 = vmatprep.subr.mxu0 0.0
        %3236 = vmatpush1.msra.mxu0 0.0
        %3237 = vmatprep.subr.mxu0 0.0
        %3238 = vmatpush1.msra.mxu0 0.0
        %3239 = vmatprep.subr.mxu0 0.0
        %3240 = vmatpush1.msra.mxu0 0.0
        %3241 = vmatprep.subr.mxu0 0.0
        %3242 = vmatpush1.msra.mxu0 0.0
        %3243 = vmatprep.subr.mxu0 0.0
        %3244 = vmatpush1.msra.mxu0 0.0
        %3245 = vmatprep.subr.mxu0 0.0
        %3246 = vmatpush1.msra.mxu0 0.0
        %3247 = vmatprep.subr.mxu0 0.0
        %3248 = vmatpush1.msra.mxu0 0.0
        %3249 = vmatprep.subr.mxu0 0.0
        %3250 = vmatpush1.msra.mxu0 0.0
        %3251 = vmatprep.subr.mxu0 0.0
        %3252 = vmatpush1.msra.mxu0 0.0
        %3253 = vmatprep.subr.mxu0 0.0
        %3254 = vmatpush1.msra.mxu0 0.0
        %3255 = vmatprep.subr.mxu0 0.0
        %3256 = vmatpush1.msra.mxu0 0.0
        %3257 = vmatprep.subr.mxu0 0.0
        %3258 = vmatpush1.msra.mxu0 0.0
        %3259 = vmatprep.subr.mxu0 0.0
        %3260 = vmatpush1.msra.mxu0 0.0
        %3261 = vmatprep.subr.mxu0 0.0
        %3262 = vmatpush1.msra.mxu0 0.0
        %3263 = vmatprep.subr.mxu0 0.0
        %3264 = vmatpush1.msra.mxu0 0.0
        %3265 = vmatprep.subr.mxu0 0.0
        %3266 = vmatpush1.msra.mxu0 0.0
        %3267 = vmatprep.subr.mxu0 0.0
        %3268 = vmatpush1.msra.mxu0 0.0
        %3269 = vmatprep.subr.mxu0 0.0
        %3270 = vmatpush1.msra.mxu0 0.0
        %3271 = vmatprep.subr.mxu0 0.0
        %3272 = vmatpush1.msra.mxu0 0.0
        %3273 = vmatprep.mubr.f32.mxu0 0.0
        %3274 = vmatmul.mubr.f32.gmra.mrb[0].mxu0 %v3207
        %v3275 = vpop.f32.mrb[0].mxu0
        %v3276 = vadd.f32 0.0, %v3275
        %v3277 = vpop.f32.mrb[0].mxu0
        %3278 = vdwg.mxu0
        %v3279 = vmul.f32 %v3128, %v3203
        %v3280 = vadd.f32 %v3279, %v3276
        %3281 = vst [vmem:[%s255] sm:$0x1] %v3280
        %p3282 = scmp.lt.s32.totalorder %s17, 1
        %s3283 = scalar_select %p3282, %s17, 1
        %s3284 = scalar_lea.vmem %s5, %s3283
        // Predicated region
        $region45: #{model_forward.1} parent=39 // pred_check
          %p3285 = pneg %p150
        $region46: #{model_forward.1} parent=39 // pred_check_branch
          %3287 = sbr.rel (%p3285) target = $region48
        $region47: #{model_forward.1} parent=39 // pred_region
          _
        $region48: #{model_forward.1} parent=39 // pred_fallthru
          _
      $region40: #{model_forward.1} parent=5 // pred_fallthru
        _
      %p3288 = scmp.le.s32.totalorder 2, %s12
      // Predicated region
      $region49: #{model_forward.1} parent=5 // pred_check
        %p3289 = pneg %p3288
      $region50: #{model_forward.1} parent=5 // pred_check_branch
        %3291 = sbr.rel (%p3289) target = $region52
      $region51: #{model_forward.1} parent=5 // pred_region
        %s3292 = ssub.s32 %s12, 2
        // Predicated region
        $region53: #{model_forward.1} parent=51 // pred_check
          %p3293 = pneg %p156
        $region54: #{model_forward.1} parent=51 // pred_check_branch
          %3295 = sbr.rel (%p3293) target = $region56
        $region55: #{model_forward.1} parent=51 // pred_region
          %p3296 = scmp.lt.s32.totalorder %s18, 1
          %s3297 = scalar_select %p3296, %s18, 1
          %s3298 = scalar_lea.vmem %s5, %s3297
        $region56: #{model_forward.1} parent=51 // pred_fallthru
          _
      $region52: #{model_forward.1} parent=5 // pred_fallthru
        _
    $region6: #{model_forward.1} parent=1 // loop_footer
      %s16 = sadd.s32 1, %s12
    $region7: #{model_forward.1} parent=1 // loop_footer_branch
      %11 = sbr.rel target = $region3
    $region8: #{model_forward.1} parent=1 // loop_exit
      _
    %3299 = vsyncpa [#allocation3], 1
    %s3300 = scalar_lea.sflag [#allocation3], 1
    %3301 = vsyncpa %s3300, 1

</llo_original>
